<compile_context>
chip_gen: v6e
topology: v6e:2x2x1
jax: 0.10.0
libtpu: 0.0.40
codegen_flags: <defaults>
</compile_context>

<pallas_src>
import functools

import jax
import jax.numpy as jnp
import numpy as np
from jax.experimental import pallas as pl
from jax.experimental.pallas import tpu as pltpu

NEG_SLOPE = 0.01   # nn.LeakyReLU default
EPS = 1e-5         # InstanceNorm3d eps


def _leaky(y):
    # max(y, 0.01*y) == LeakyReLU(y) for slope < 1
    return jnp.maximum(y, NEG_SLOPE * y)


def _resblock_kernel(x_ref, mask_ref, a1_ref, g1_ref, be1_ref,
                     a2_ref, g2_ref, be2_ref, out_ref, taps_ref,
                     *, NC, S, KPAD, shifts, center):
    """Whole batch in one step, channels-first flat layout.

    x_ref    : (NC, S)       NC = N*C rows, S = D*H*W on the lane axis
    mask_ref : (27, NC, S)   f32 halo masks (host-precomputed, pre-broadcast)
    aN_ref   : (NC, KPAD)    im2col conv matrix [kron(I_N, W_k)]_k, zero-padded
    gN/beN   : (NC, 1)       InstanceNorm affine gamma/beta tiled per batch
    out_ref  : (NC, S)
    taps_ref : (KPAD, S)     VMEM scratch holding the 27*NC im2col tap rows
    """
    x = x_ref[...]                                    # (NC, S) f32

    ntap_rows = len(shifts) * NC
    if KPAD > ntap_rows:
        # Zero the contraction-dim padding rows once (matching A columns are
        # zero too); both convs only overwrite rows [0, ntap_rows).
        taps_ref[ntap_rows:, :] = jnp.zeros((KPAD - ntap_rows, S), jnp.float32)

    def conv3x3x3(src, a_ref):
        # im2col: 27 lane-rolled + halo-masked taps -> taps scratch, then one
        # MXU matmul does the whole channel mix for all batch elements.
        # Rolls wrap within each (n, c) row's own S lanes; wrapped values are
        # zeroed by the halo mask, so the halo needs no padded copy.
        for k, sh in enumerate(shifts):
            if k == center:            # center tap: no shift, all-ones mask
                taps_ref[k * NC:(k + 1) * NC, :] = src
            else:
                xt = pltpu.roll(src, sh, axis=1)
                taps_ref[k * NC:(k + 1) * NC, :] = xt * mask_ref[k]
        # Conv bias intentionally omitted: the following InstanceNorm's
        # per-channel mean subtraction cancels it exactly (only valid while
        # conv -> norm stays fused).
        return jnp.dot(a_ref[...], taps_ref[...],
                       preferred_element_type=jnp.float32)

    def inorm(y, g_ref, be_ref):
        # One-pass statistics (f32) + folded affine: out = y*scale + shift.
        s1 = jnp.sum(y, axis=1, keepdims=True)        # (NC, 1)
        s2 = jnp.sum(y * y, axis=1, keepdims=True)    # (NC, 1)
        mean = s1 * (1.0 / S)
        var = s2 * (1.0 / S) - mean * mean            # biased variance
        scale = g_ref[...] * jax.lax.rsqrt(var + EPS)
        shift = be_ref[...] - mean * scale
        return y * scale + shift

    # ---- conv1 -> norm1 -> leaky_relu  (Dropout3d == identity in eval) ----
    h1 = _leaky(inorm(conv3x3x3(x, a1_ref), g1_ref, be1_ref))
    # ---- conv2 -> norm2 -> +residual -> leaky_relu ----
    h2 = inorm(conv3x3x3(h1, a2_ref), g2_ref, be2_ref)
    out_ref[...] = _leaky(h2 + x)


def resblock_pallas(x_ncdhw, params):
    """x_ncdhw: (N, C, D, H, W) float32 -> (N, C, D, H, W) float32."""
    w1, b1, g1, be1, w2, b2, g2, be2 = params
    del b1, b2   # cancelled exactly by the InstanceNorm mean subtraction
    N, C, D, H, W = x_ncdhw.shape
    S, NC = D * H * W, N * C
    K = 27 * NC
    KPAD = -(-K // 128) * 128           # pad contraction dim to a lane multiple

    # NCDHW -> (N*C, S): contiguous reshape (free), no transpose/pad in HBM.
    x = x_ncdhw.reshape(NC, S)

    # Tap order k = kd*9 + kh*3 + kw; the tap value at flat position p is
    # src[p + off], off = dd*H*W + dh*W + dw  ->  roll shift = (-off) mod S.
    taps = [(dd, dh, dw) for dd in (-1, 0, 1) for dh in (-1, 0, 1)
            for dw in (-1, 0, 1)]
    shifts = tuple((-(dd * H * W + dh * W + dw)) % S for dd, dh, dw in taps)
    center = taps.index((0, 0, 0))

    # Host-precomputed halo masks (compile-time constants of the shape),
    # pre-broadcast to (27, NC, S) so the kernel does plain elementwise vmuls.
    p = np.arange(S)
    d, h, w = p // (H * W), (p // W) % H, p % W
    m = np.empty((27, S), np.float32)
    for k, (dd, dh, dw) in enumerate(taps):
        ok = ((d + dd >= 0) & (d + dd < D) & (h + dh >= 0) & (h + dh < H)
              & (w + dw >= 0) & (w + dw < W))
        m[k] = ok.astype(np.float32)
    masks = jnp.asarray(
        np.ascontiguousarray(np.broadcast_to(m[:, None, :], (27, NC, S))))

    # im2col conv matrices: A[n*C+co, k*NC + n*C+ci] = W[co, ci, kd, kh, kw];
    # block-diagonal per tap (kron with I_N) so batch elements never mix.
    eye_n = jnp.eye(N, dtype=jnp.float32)

    def build_a(wt):
        wk = jnp.transpose(wt, (2, 3, 4, 0, 1)).reshape(27, C, C)  # (27,Co,Ci)
        big = jnp.einsum('ab,kij->kaibj', eye_n, wk).reshape(27, NC, NC)
        a = jnp.transpose(big, (1, 0, 2)).reshape(NC, K)
        return jnp.pad(a, ((0, 0), (0, KPAD - K)))

    a1, a2 = build_a(w1), build_a(w2)

    g1k, be1k = jnp.tile(g1, N).reshape(NC, 1), jnp.tile(be1, N).reshape(NC, 1)
    g2k, be2k = jnp.tile(g2, N).reshape(NC, 1), jnp.tile(be2, N).reshape(NC, 1)

    kernel = functools.partial(_resblock_kernel, NC=NC, S=S, KPAD=KPAD,
                               shifts=shifts, center=center)
    const = lambda *nd: pl.BlockSpec(nd, lambda i: (0,) * len(nd))

    # TODO(synk): on v7x (2 TensorCores) grid=(1,) idles one core at NC=8; for
    # N*C >= 16 split the batch over a "parallel" grid axis keeping >= 8 rows
    # per block.  For production spatial sizes add a D-tile grid axis with
    # explicit overlapping halos (a roll across a tiled S would wrap into the
    # wrong tile) and raise vmem_limit_bytes for v7x's 64 MiB VMEM.
    out = pl.pallas_call(
        kernel,
        out_shape=jax.ShapeDtypeStruct((NC, S), jnp.float32),
        grid_spec=pltpu.PrefetchScalarGridSpec(
            num_scalar_prefetch=0,
            grid=(1,),
            in_specs=[
                const(NC, S),                                  # x
                const(27, NC, S),                              # halo masks
                const(NC, KPAD), const(NC, 1), const(NC, 1),   # conv1 / norm1
                const(NC, KPAD), const(NC, 1), const(NC, 1),   # conv2 / norm2
            ],
            out_specs=const(NC, S),
            scratch_shapes=[pltpu.VMEM((KPAD, S), jnp.float32)],
        ),
        compiler_params=pltpu.CompilerParams(
            dimension_semantics=("arbitrary",)),
    )(x, masks, a1, g1k, be1k, a2, g2k, be2k)

    return out.reshape(N, C, D, H, W)


def resblock_reference(x, params):
    """Pure-JAX reference (mirrors the PyTorch forward, eval mode)."""
    w1, b1, g1, be1, w2, b2, g2, be2 = params

    def conv(x, w, b):
        y = jax.lax.conv_general_dilated(
            x, w, window_strides=(1, 1, 1), padding=[(1, 1)] * 3,
            dimension_numbers=("NCDHW", "OIDHW", "NCDHW"),
            precision=jax.lax.Precision.HIGHEST)
        return y + b[None, :, None, None, None]

    def inorm(y, g, be):
        mean = y.mean(axis=(2, 3, 4), keepdims=True)
        var = ((y - mean) ** 2).mean(axis=(2, 3, 4), keepdims=True)
        yhat = (y - mean) * jax.lax.rsqrt(var + EPS)
        return yhat * g[None, :, None, None, None] + be[None, :, None, None, None]

    h = _leaky(inorm(conv(x, w1, b1), g1, be1))
    h = inorm(conv(h, w2, b2), g2, be2)          # dropout = identity (eval)
    return _leaky(h + x)


if __name__ == "__main__":
    N, C, D, H, W = 2, 4, 8, 8, 8   # in_channels == out_channels == 4

    key = jax.random.PRNGKey(0)
    kx, k1, k2, k3, k4, k5, k6, k7, k8 = jax.random.split(key, 9)

    x = jax.random.normal(kx, (N, C, D, H, W), jnp.float32)

    # Deterministic synthetic parameters (Conv3d + InstanceNorm3d affine).
    scale = 0.2
    w1 = scale * jax.random.normal(k1, (C, C, 3, 3, 3), jnp.float32)
    b1 = scale * jax.random.normal(k2, (C,), jnp.float32)
    w2 = scale * jax.random.normal(k3, (C, C, 3, 3, 3), jnp.float32)
    b2 = scale * jax.random.normal(k4, (C,), jnp.float32)
    g1 = 1.0 + 0.1 * jax.random.normal(k5, (C,), jnp.float32)
    be1 = 0.1 * jax.random.normal(k6, (C,), jnp.float32)
    g2 = 1.0 + 0.1 * jax.random.normal(k7, (C,), jnp.float32)
    be2 = 0.1 * jax.random.normal(k8, (C,), jnp.float32)

    params = (w1, b1, g1, be1, w2, b2, g2, be2)

    out = resblock_pallas(x, params)
    out = jax.block_until_ready(out)

    ref = resblock_reference(x, params)
    assert out.shape == (N, C, D, H, W)
    assert jnp.allclose(out, ref, rtol=1e-4, atol=1e-4), (
        float(jnp.max(jnp.abs(out - ref))))

    print("KERNEL_OK")
</pallas_src>

<mosaic_0001>
module attributes {stable_mosaic.version = 11 : i64} {
  func.func @_resblock_kernel(%arg0: i32, %arg1: memref<8x512xf32, #tpu.memory_space<vmem>>, %arg2: memref<27x8x512xf32, #tpu.memory_space<vmem>>, %arg3: memref<8x256xf32, #tpu.memory_space<vmem>>, %arg4: memref<8x1xf32, #tpu.memory_space<vmem>>, %arg5: memref<8x1xf32, #tpu.memory_space<vmem>>, %arg6: memref<8x256xf32, #tpu.memory_space<vmem>>, %arg7: memref<8x1xf32, #tpu.memory_space<vmem>>, %arg8: memref<8x1xf32, #tpu.memory_space<vmem>>, %arg9: memref<8x512xf32, #tpu.memory_space<vmem>>, %arg10: memref<256x512xf32, #tpu.memory_space<vmem>>) attributes {dimension_semantics = [#tpu.dimension_semantics<arbitrary>], iteration_bounds = array<i64: 1>, scalar_prefetch = 0 : i64, scratch_operands = 1 : i64, tpu.core_type = #tpu.core_type<tc>, window_params = [{pipeline_mode = #tpu.pipeline_mode<synchronous>, transform_indices = @transform_0, window_bounds = array<i64: 8, 512>}, {pipeline_mode = #tpu.pipeline_mode<synchronous>, transform_indices = @transform_1, window_bounds = array<i64: 27, 8, 512>}, {pipeline_mode = #tpu.pipeline_mode<synchronous>, transform_indices = @transform_2, window_bounds = array<i64: 8, 256>}, {pipeline_mode = #tpu.pipeline_mode<synchronous>, transform_indices = @transform_3, window_bounds = array<i64: 8, 1>}, {pipeline_mode = #tpu.pipeline_mode<synchronous>, transform_indices = @transform_4, window_bounds = array<i64: 8, 1>}, {pipeline_mode = #tpu.pipeline_mode<synchronous>, transform_indices = @transform_5, window_bounds = array<i64: 8, 256>}, {pipeline_mode = #tpu.pipeline_mode<synchronous>, transform_indices = @transform_6, window_bounds = array<i64: 8, 1>}, {pipeline_mode = #tpu.pipeline_mode<synchronous>, transform_indices = @transform_7, window_bounds = array<i64: 8, 1>}, {pipeline_mode = #tpu.pipeline_mode<synchronous>, transform_indices = @transform_8, window_bounds = array<i64: 8, 512>}]} {
    %c0 = arith.constant 0 : index
    %c0_0 = arith.constant 0 : index
    %0 = vector.load %arg1[%c0, %c0_0] : memref<8x512xf32, #tpu.memory_space<vmem>>, vector<8x512xf32>
    %cst = arith.constant 0.000000e+00 : f32
    %1 = vector.broadcast %cst : f32 to vector<40x512xf32>
    %c216 = arith.constant 216 : index
    %c0_1 = arith.constant 0 : index
    %2 = vector.load %arg10[%c216, %c0_1] : memref<256x512xf32, #tpu.memory_space<vmem>>, vector<40x512xf32>
    tpu.vector_store %arg10[%c216, %c0_1], %1 {strides = array<i32>} : memref<256x512xf32, #tpu.memory_space<vmem>>, vector<40x512xf32>,
    %c73_i32 = arith.constant 73 : i32
    %3 = tpu.dynamic_rotate %0 by %c73_i32 dim 1 : vector<8x512xf32>, i32 -> vector<8x512xf32>
    %c0_2 = arith.constant 0 : index
    %c0_3 = arith.constant 0 : index
    %c0_4 = arith.constant 0 : index
    %4 = vector.load %arg2[%c0_2, %c0_3, %c0_4] : memref<27x8x512xf32, #tpu.memory_space<vmem>>, vector<1x8x512xf32>
    %5 = vector.shape_cast %4 : vector<1x8x512xf32> to vector<8x512xf32>
    %6 = arith.mulf %3, %5 : vector<8x512xf32>
    %c0_5 = arith.constant 0 : index
    %c0_6 = arith.constant 0 : index
    %7 = vector.load %arg10[%c0_5, %c0_6] : memref<256x512xf32, #tpu.memory_space<vmem>>, vector<8x512xf32>
    tpu.vector_store %arg10[%c0_5, %c0_6], %6 {strides = array<i32>} : memref<256x512xf32, #tpu.memory_space<vmem>>, vector<8x512xf32>,
    %c72_i32 = arith.constant 72 : i32
    %8 = tpu.dynamic_rotate %0 by %c72_i32 dim 1 : vector<8x512xf32>, i32 -> vector<8x512xf32>
    %c1 = arith.constant 1 : index
    %c0_7 = arith.constant 0 : index
    %c0_8 = arith.constant 0 : index
    %9 = vector.load %arg2[%c1, %c0_7, %c0_8] : memref<27x8x512xf32, #tpu.memory_space<vmem>>, vector<1x8x512xf32>
    %10 = vector.shape_cast %9 : vector<1x8x512xf32> to vector<8x512xf32>
    %11 = arith.mulf %8, %10 : vector<8x512xf32>
    %c8 = arith.constant 8 : index
    %c0_9 = arith.constant 0 : index
    %12 = vector.load %arg10[%c8, %c0_9] : memref<256x512xf32, #tpu.memory_space<vmem>>, vector<8x512xf32>
    tpu.vector_store %arg10[%c8, %c0_9], %11 {strides = array<i32>} : memref<256x512xf32, #tpu.memory_space<vmem>>, vector<8x512xf32>,
    %c71_i32 = arith.constant 71 : i32
    %13 = tpu.dynamic_rotate %0 by %c71_i32 dim 1 : vector<8x512xf32>, i32 -> vector<8x512xf32>
    %c2 = arith.constant 2 : index
    %c0_10 = arith.constant 0 : index
    %c0_11 = arith.constant 0 : index
    %14 = vector.load %arg2[%c2, %c0_10, %c0_11] : memref<27x8x512xf32, #tpu.memory_space<vmem>>, vector<1x8x512xf32>
    %15 = vector.shape_cast %14 : vector<1x8x512xf32> to vector<8x512xf32>
    %16 = arith.mulf %13, %15 : vector<8x512xf32>
    %c16 = arith.constant 16 : index
    %c0_12 = arith.constant 0 : index
    %17 = vector.load %arg10[%c16, %c0_12] : memref<256x512xf32, #tpu.memory_space<vmem>>, vector<8x512xf32>
    tpu.vector_store %arg10[%c16, %c0_12], %16 {strides = array<i32>} : memref<256x512xf32, #tpu.memory_space<vmem>>, vector<8x512xf32>,
    %c65_i32 = arith.constant 65 : i32
    %18 = tpu.dynamic_rotate %0 by %c65_i32 dim 1 : vector<8x512xf32>, i32 -> vector<8x512xf32>
    %c3 = arith.constant 3 : index
    %c0_13 = arith.constant 0 : index
    %c0_14 = arith.constant 0 : index
    %19 = vector.load %arg2[%c3, %c0_13, %c0_14] : memref<27x8x512xf32, #tpu.memory_space<vmem>>, vector<1x8x512xf32>
    %20 = vector.shape_cast %19 : vector<1x8x512xf32> to vector<8x512xf32>
    %21 = arith.mulf %18, %20 : vector<8x512xf32>
    %c24 = arith.constant 24 : index
    %c0_15 = arith.constant 0 : index
    %22 = vector.load %arg10[%c24, %c0_15] : memref<256x512xf32, #tpu.memory_space<vmem>>, vector<8x512xf32>
    tpu.vector_store %arg10[%c24, %c0_15], %21 {strides = array<i32>} : memref<256x512xf32, #tpu.memory_space<vmem>>, vector<8x512xf32>,
    %c64_i32 = arith.constant 64 : i32
    %23 = tpu.dynamic_rotate %0 by %c64_i32 dim 1 : vector<8x512xf32>, i32 -> vector<8x512xf32>
    %c4 = arith.constant 4 : index
    %c0_16 = arith.constant 0 : index
    %c0_17 = arith.constant 0 : index
    %24 = vector.load %arg2[%c4, %c0_16, %c0_17] : memref<27x8x512xf32, #tpu.memory_space<vmem>>, vector<1x8x512xf32>
    %25 = vector.shape_cast %24 : vector<1x8x512xf32> to vector<8x512xf32>
    %26 = arith.mulf %23, %25 : vector<8x512xf32>
    %c32 = arith.constant 32 : index
    %c0_18 = arith.constant 0 : index
    %27 = vector.load %arg10[%c32, %c0_18] : memref<256x512xf32, #tpu.memory_space<vmem>>, vector<8x512xf32>
    tpu.vector_store %arg10[%c32, %c0_18], %26 {strides = array<i32>} : memref<256x512xf32, #tpu.memory_space<vmem>>, vector<8x512xf32>,
    %c63_i32 = arith.constant 63 : i32
    %28 = tpu.dynamic_rotate %0 by %c63_i32 dim 1 : vector<8x512xf32>, i32 -> vector<8x512xf32>
    %c5 = arith.constant 5 : index
    %c0_19 = arith.constant 0 : index
    %c0_20 = arith.constant 0 : index
    %29 = vector.load %arg2[%c5, %c0_19, %c0_20] : memref<27x8x512xf32, #tpu.memory_space<vmem>>, vector<1x8x512xf32>
    %30 = vector.shape_cast %29 : vector<1x8x512xf32> to vector<8x512xf32>
    %31 = arith.mulf %28, %30 : vector<8x512xf32>
    %c40 = arith.constant 40 : index
    %c0_21 = arith.constant 0 : index
    %32 = vector.load %arg10[%c40, %c0_21] : memref<256x512xf32, #tpu.memory_space<vmem>>, vector<8x512xf32>
    tpu.vector_store %arg10[%c40, %c0_21], %31 {strides = array<i32>} : memref<256x512xf32, #tpu.memory_space<vmem>>, vector<8x512xf32>,
    %c57_i32 = arith.constant 57 : i32
    %33 = tpu.dynamic_rotate %0 by %c57_i32 dim 1 : vector<8x512xf32>, i32 -> vector<8x512xf32>
    %c6 = arith.constant 6 : index
    %c0_22 = arith.constant 0 : index
    %c0_23 = arith.constant 0 : index
    %34 = vector.load %arg2[%c6, %c0_22, %c0_23] : memref<27x8x512xf32, #tpu.memory_space<vmem>>, vector<1x8x512xf32>
    %35 = vector.shape_cast %34 : vector<1x8x512xf32> to vector<8x512xf32>
    %36 = arith.mulf %33, %35 : vector<8x512xf32>
    %c48 = arith.constant 48 : index
    %c0_24 = arith.constant 0 : index
    %37 = vector.load %arg10[%c48, %c0_24] : memref<256x512xf32, #tpu.memory_space<vmem>>, vector<8x512xf32>
    tpu.vector_store %arg10[%c48, %c0_24], %36 {strides = array<i32>} : memref<256x512xf32, #tpu.memory_space<vmem>>, vector<8x512xf32>,
    %c56_i32 = arith.constant 56 : i32
    %38 = tpu.dynamic_rotate %0 by %c56_i32 dim 1 : vector<8x512xf32>, i32 -> vector<8x512xf32>
    %c7 = arith.constant 7 : index
    %c0_25 = arith.constant 0 : index
    %c0_26 = arith.constant 0 : index
    %39 = vector.load %arg2[%c7, %c0_25, %c0_26] : memref<27x8x512xf32, #tpu.memory_space<vmem>>, vector<1x8x512xf32>
    %40 = vector.shape_cast %39 : vector<1x8x512xf32> to vector<8x512xf32>
    %41 = arith.mulf %38, %40 : vector<8x512xf32>
    %c56 = arith.constant 56 : index
    %c0_27 = arith.constant 0 : index
    %42 = vector.load %arg10[%c56, %c0_27] : memref<256x512xf32, #tpu.memory_space<vmem>>, vector<8x512xf32>
    tpu.vector_store %arg10[%c56, %c0_27], %41 {strides = array<i32>} : memref<256x512xf32, #tpu.memory_space<vmem>>, vector<8x512xf32>,
    %c55_i32 = arith.constant 55 : i32
    %43 = tpu.dynamic_rotate %0 by %c55_i32 dim 1 : vector<8x512xf32>, i32 -> vector<8x512xf32>
    %c8_28 = arith.constant 8 : index
    %c0_29 = arith.constant 0 : index
    %c0_30 = arith.constant 0 : index
    %44 = vector.load %arg2[%c8_28, %c0_29, %c0_30] : memref<27x8x512xf32, #tpu.memory_space<vmem>>, vector<1x8x512xf32>
    %45 = vector.shape_cast %44 : vector<1x8x512xf32> to vector<8x512xf32>
    %46 = arith.mulf %43, %45 : vector<8x512xf32>
    %c64 = arith.constant 64 : index
    %c0_31 = arith.constant 0 : index
    %47 = vector.load %arg10[%c64, %c0_31] : memref<256x512xf32, #tpu.memory_space<vmem>>, vector<8x512xf32>
    tpu.vector_store %arg10[%c64, %c0_31], %46 {strides = array<i32>} : memref<256x512xf32, #tpu.memory_space<vmem>>, vector<8x512xf32>,
    %c9_i32 = arith.constant 9 : i32
    %48 = tpu.dynamic_rotate %0 by %c9_i32 dim 1 : vector<8x512xf32>, i32 -> vector<8x512xf32>
    %c9 = arith.constant 9 : index
    %c0_32 = arith.constant 0 : index
    %c0_33 = arith.constant 0 : index
    %49 = vector.load %arg2[%c9, %c0_32, %c0_33] : memref<27x8x512xf32, #tpu.memory_space<vmem>>, vector<1x8x512xf32>
    %50 = vector.shape_cast %49 : vector<1x8x512xf32> to vector<8x512xf32>
    %51 = arith.mulf %48, %50 : vector<8x512xf32>
    %c72 = arith.constant 72 : index
    %c0_34 = arith.constant 0 : index
    %52 = vector.load %arg10[%c72, %c0_34] : memref<256x512xf32, #tpu.memory_space<vmem>>, vector<8x512xf32>
    tpu.vector_store %arg10[%c72, %c0_34], %51 {strides = array<i32>} : memref<256x512xf32, #tpu.memory_space<vmem>>, vector<8x512xf32>,
    %c8_i32 = arith.constant 8 : i32
    %53 = tpu.dynamic_rotate %0 by %c8_i32 dim 1 : vector<8x512xf32>, i32 -> vector<8x512xf32>
    %c10 = arith.constant 10 : index
    %c0_35 = arith.constant 0 : index
    %c0_36 = arith.constant 0 : index
    %54 = vector.load %arg2[%c10, %c0_35, %c0_36] : memref<27x8x512xf32, #tpu.memory_space<vmem>>, vector<1x8x512xf32>
    %55 = vector.shape_cast %54 : vector<1x8x512xf32> to vector<8x512xf32>
    %56 = arith.mulf %53, %55 : vector<8x512xf32>
    %c80 = arith.constant 80 : index
    %c0_37 = arith.constant 0 : index
    %57 = vector.load %arg10[%c80, %c0_37] : memref<256x512xf32, #tpu.memory_space<vmem>>, vector<8x512xf32>
    tpu.vector_store %arg10[%c80, %c0_37], %56 {strides = array<i32>} : memref<256x512xf32, #tpu.memory_space<vmem>>, vector<8x512xf32>,
    %c7_i32 = arith.constant 7 : i32
    %58 = tpu.dynamic_rotate %0 by %c7_i32 dim 1 : vector<8x512xf32>, i32 -> vector<8x512xf32>
    %c11 = arith.constant 11 : index
    %c0_38 = arith.constant 0 : index
    %c0_39 = arith.constant 0 : index
    %59 = vector.load %arg2[%c11, %c0_38, %c0_39] : memref<27x8x512xf32, #tpu.memory_space<vmem>>, vector<1x8x512xf32>
    %60 = vector.shape_cast %59 : vector<1x8x512xf32> to vector<8x512xf32>
    %61 = arith.mulf %58, %60 : vector<8x512xf32>
    %c88 = arith.constant 88 : index
    %c0_40 = arith.constant 0 : index
    %62 = vector.load %arg10[%c88, %c0_40] : memref<256x512xf32, #tpu.memory_space<vmem>>, vector<8x512xf32>
    tpu.vector_store %arg10[%c88, %c0_40], %61 {strides = array<i32>} : memref<256x512xf32, #tpu.memory_space<vmem>>, vector<8x512xf32>,
    %c1_i32 = arith.constant 1 : i32
    %63 = tpu.dynamic_rotate %0 by %c1_i32 dim 1 : vector<8x512xf32>, i32 -> vector<8x512xf32>
    %c12 = arith.constant 12 : index
    %c0_41 = arith.constant 0 : index
    %c0_42 = arith.constant 0 : index
    %64 = vector.load %arg2[%c12, %c0_41, %c0_42] : memref<27x8x512xf32, #tpu.memory_space<vmem>>, vector<1x8x512xf32>
    %65 = vector.shape_cast %64 : vector<1x8x512xf32> to vector<8x512xf32>
    %66 = arith.mulf %63, %65 : vector<8x512xf32>
    %c96 = arith.constant 96 : index
    %c0_43 = arith.constant 0 : index
    %67 = vector.load %arg10[%c96, %c0_43] : memref<256x512xf32, #tpu.memory_space<vmem>>, vector<8x512xf32>
    tpu.vector_store %arg10[%c96, %c0_43], %66 {strides = array<i32>} : memref<256x512xf32, #tpu.memory_space<vmem>>, vector<8x512xf32>,
    %c104 = arith.constant 104 : index
    %c0_44 = arith.constant 0 : index
    %68 = vector.load %arg10[%c104, %c0_44] : memref<256x512xf32, #tpu.memory_space<vmem>>, vector<8x512xf32>
    tpu.vector_store %arg10[%c104, %c0_44], %0 {strides = array<i32>} : memref<256x512xf32, #tpu.memory_space<vmem>>, vector<8x512xf32>,
    %c511_i32 = arith.constant 511 : i32
    %69 = tpu.dynamic_rotate %0 by %c511_i32 dim 1 : vector<8x512xf32>, i32 -> vector<8x512xf32>
    %c14 = arith.constant 14 : index
    %c0_45 = arith.constant 0 : index
    %c0_46 = arith.constant 0 : index
    %70 = vector.load %arg2[%c14, %c0_45, %c0_46] : memref<27x8x512xf32, #tpu.memory_space<vmem>>, vector<1x8x512xf32>
    %71 = vector.shape_cast %70 : vector<1x8x512xf32> to vector<8x512xf32>
    %72 = arith.mulf %69, %71 : vector<8x512xf32>
    %c112 = arith.constant 112 : index
    %c0_47 = arith.constant 0 : index
    %73 = vector.load %arg10[%c112, %c0_47] : memref<256x512xf32, #tpu.memory_space<vmem>>, vector<8x512xf32>
    tpu.vector_store %arg10[%c112, %c0_47], %72 {strides = array<i32>} : memref<256x512xf32, #tpu.memory_space<vmem>>, vector<8x512xf32>,
    %c505_i32 = arith.constant 505 : i32
    %74 = tpu.dynamic_rotate %0 by %c505_i32 dim 1 : vector<8x512xf32>, i32 -> vector<8x512xf32>
    %c15 = arith.constant 15 : index
    %c0_48 = arith.constant 0 : index
    %c0_49 = arith.constant 0 : index
    %75 = vector.load %arg2[%c15, %c0_48, %c0_49] : memref<27x8x512xf32, #tpu.memory_space<vmem>>, vector<1x8x512xf32>
    %76 = vector.shape_cast %75 : vector<1x8x512xf32> to vector<8x512xf32>
    %77 = arith.mulf %74, %76 : vector<8x512xf32>
    %c120 = arith.constant 120 : index
    %c0_50 = arith.constant 0 : index
    %78 = vector.load %arg10[%c120, %c0_50] : memref<256x512xf32, #tpu.memory_space<vmem>>, vector<8x512xf32>
    tpu.vector_store %arg10[%c120, %c0_50], %77 {strides = array<i32>} : memref<256x512xf32, #tpu.memory_space<vmem>>, vector<8x512xf32>,
    %c504_i32 = arith.constant 504 : i32
    %79 = tpu.dynamic_rotate %0 by %c504_i32 dim 1 : vector<8x512xf32>, i32 -> vector<8x512xf32>
    %c16_51 = arith.constant 16 : index
    %c0_52 = arith.constant 0 : index
    %c0_53 = arith.constant 0 : index
    %80 = vector.load %arg2[%c16_51, %c0_52, %c0_53] : memref<27x8x512xf32, #tpu.memory_space<vmem>>, vector<1x8x512xf32>
    %81 = vector.shape_cast %80 : vector<1x8x512xf32> to vector<8x512xf32>
    %82 = arith.mulf %79, %81 : vector<8x512xf32>
    %c128 = arith.constant 128 : index
    %c0_54 = arith.constant 0 : index
    %83 = vector.load %arg10[%c128, %c0_54] : memref<256x512xf32, #tpu.memory_space<vmem>>, vector<8x512xf32>
    tpu.vector_store %arg10[%c128, %c0_54], %82 {strides = array<i32>} : memref<256x512xf32, #tpu.memory_space<vmem>>, vector<8x512xf32>,
    %c503_i32 = arith.constant 503 : i32
    %84 = tpu.dynamic_rotate %0 by %c503_i32 dim 1 : vector<8x512xf32>, i32 -> vector<8x512xf32>
    %c17 = arith.constant 17 : index
    %c0_55 = arith.constant 0 : index
    %c0_56 = arith.constant 0 : index
    %85 = vector.load %arg2[%c17, %c0_55, %c0_56] : memref<27x8x512xf32, #tpu.memory_space<vmem>>, vector<1x8x512xf32>
    %86 = vector.shape_cast %85 : vector<1x8x512xf32> to vector<8x512xf32>
    %87 = arith.mulf %84, %86 : vector<8x512xf32>
    %c136 = arith.constant 136 : index
    %c0_57 = arith.constant 0 : index
    %88 = vector.load %arg10[%c136, %c0_57] : memref<256x512xf32, #tpu.memory_space<vmem>>, vector<8x512xf32>
    tpu.vector_store %arg10[%c136, %c0_57], %87 {strides = array<i32>} : memref<256x512xf32, #tpu.memory_space<vmem>>, vector<8x512xf32>,
    %c457_i32 = arith.constant 457 : i32
    %89 = tpu.dynamic_rotate %0 by %c457_i32 dim 1 : vector<8x512xf32>, i32 -> vector<8x512xf32>
    %c18 = arith.constant 18 : index
    %c0_58 = arith.constant 0 : index
    %c0_59 = arith.constant 0 : index
    %90 = vector.load %arg2[%c18, %c0_58, %c0_59] : memref<27x8x512xf32, #tpu.memory_space<vmem>>, vector<1x8x512xf32>
    %91 = vector.shape_cast %90 : vector<1x8x512xf32> to vector<8x512xf32>
    %92 = arith.mulf %89, %91 : vector<8x512xf32>
    %c144 = arith.constant 144 : index
    %c0_60 = arith.constant 0 : index
    %93 = vector.load %arg10[%c144, %c0_60] : memref<256x512xf32, #tpu.memory_space<vmem>>, vector<8x512xf32>
    tpu.vector_store %arg10[%c144, %c0_60], %92 {strides = array<i32>} : memref<256x512xf32, #tpu.memory_space<vmem>>, vector<8x512xf32>,
    %c456_i32 = arith.constant 456 : i32
    %94 = tpu.dynamic_rotate %0 by %c456_i32 dim 1 : vector<8x512xf32>, i32 -> vector<8x512xf32>
    %c19 = arith.constant 19 : index
    %c0_61 = arith.constant 0 : index
    %c0_62 = arith.constant 0 : index
    %95 = vector.load %arg2[%c19, %c0_61, %c0_62] : memref<27x8x512xf32, #tpu.memory_space<vmem>>, vector<1x8x512xf32>
    %96 = vector.shape_cast %95 : vector<1x8x512xf32> to vector<8x512xf32>
    %97 = arith.mulf %94, %96 : vector<8x512xf32>
    %c152 = arith.constant 152 : index
    %c0_63 = arith.constant 0 : index
    %98 = vector.load %arg10[%c152, %c0_63] : memref<256x512xf32, #tpu.memory_space<vmem>>, vector<8x512xf32>
    tpu.vector_store %arg10[%c152, %c0_63], %97 {strides = array<i32>} : memref<256x512xf32, #tpu.memory_space<vmem>>, vector<8x512xf32>,
    %c455_i32 = arith.constant 455 : i32
    %99 = tpu.dynamic_rotate %0 by %c455_i32 dim 1 : vector<8x512xf32>, i32 -> vector<8x512xf32>
    %c20 = arith.constant 20 : index
    %c0_64 = arith.constant 0 : index
    %c0_65 = arith.constant 0 : index
    %100 = vector.load %arg2[%c20, %c0_64, %c0_65] : memref<27x8x512xf32, #tpu.memory_space<vmem>>, vector<1x8x512xf32>
    %101 = vector.shape_cast %100 : vector<1x8x512xf32> to vector<8x512xf32>
    %102 = arith.mulf %99, %101 : vector<8x512xf32>
    %c160 = arith.constant 160 : index
    %c0_66 = arith.constant 0 : index
    %103 = vector.load %arg10[%c160, %c0_66] : memref<256x512xf32, #tpu.memory_space<vmem>>, vector<8x512xf32>
    tpu.vector_store %arg10[%c160, %c0_66], %102 {strides = array<i32>} : memref<256x512xf32, #tpu.memory_space<vmem>>, vector<8x512xf32>,
    %c449_i32 = arith.constant 449 : i32
    %104 = tpu.dynamic_rotate %0 by %c449_i32 dim 1 : vector<8x512xf32>, i32 -> vector<8x512xf32>
    %c21 = arith.constant 21 : index
    %c0_67 = arith.constant 0 : index
    %c0_68 = arith.constant 0 : index
    %105 = vector.load %arg2[%c21, %c0_67, %c0_68] : memref<27x8x512xf32, #tpu.memory_space<vmem>>, vector<1x8x512xf32>
    %106 = vector.shape_cast %105 : vector<1x8x512xf32> to vector<8x512xf32>
    %107 = arith.mulf %104, %106 : vector<8x512xf32>
    %c168 = arith.constant 168 : index
    %c0_69 = arith.constant 0 : index
    %108 = vector.load %arg10[%c168, %c0_69] : memref<256x512xf32, #tpu.memory_space<vmem>>, vector<8x512xf32>
    tpu.vector_store %arg10[%c168, %c0_69], %107 {strides = array<i32>} : memref<256x512xf32, #tpu.memory_space<vmem>>, vector<8x512xf32>,
    %c448_i32 = arith.constant 448 : i32
    %109 = tpu.dynamic_rotate %0 by %c448_i32 dim 1 : vector<8x512xf32>, i32 -> vector<8x512xf32>
    %c22 = arith.constant 22 : index
    %c0_70 = arith.constant 0 : index
    %c0_71 = arith.constant 0 : index
    %110 = vector.load %arg2[%c22, %c0_70, %c0_71] : memref<27x8x512xf32, #tpu.memory_space<vmem>>, vector<1x8x512xf32>
    %111 = vector.shape_cast %110 : vector<1x8x512xf32> to vector<8x512xf32>
    %112 = arith.mulf %109, %111 : vector<8x512xf32>
    %c176 = arith.constant 176 : index
    %c0_72 = arith.constant 0 : index
    %113 = vector.load %arg10[%c176, %c0_72] : memref<256x512xf32, #tpu.memory_space<vmem>>, vector<8x512xf32>
    tpu.vector_store %arg10[%c176, %c0_72], %112 {strides = array<i32>} : memref<256x512xf32, #tpu.memory_space<vmem>>, vector<8x512xf32>,
    %c447_i32 = arith.constant 447 : i32
    %114 = tpu.dynamic_rotate %0 by %c447_i32 dim 1 : vector<8x512xf32>, i32 -> vector<8x512xf32>
    %c23 = arith.constant 23 : index
    %c0_73 = arith.constant 0 : index
    %c0_74 = arith.constant 0 : index
    %115 = vector.load %arg2[%c23, %c0_73, %c0_74] : memref<27x8x512xf32, #tpu.memory_space<vmem>>, vector<1x8x512xf32>
    %116 = vector.shape_cast %115 : vector<1x8x512xf32> to vector<8x512xf32>
    %117 = arith.mulf %114, %116 : vector<8x512xf32>
    %c184 = arith.constant 184 : index
    %c0_75 = arith.constant 0 : index
    %118 = vector.load %arg10[%c184, %c0_75] : memref<256x512xf32, #tpu.memory_space<vmem>>, vector<8x512xf32>
    tpu.vector_store %arg10[%c184, %c0_75], %117 {strides = array<i32>} : memref<256x512xf32, #tpu.memory_space<vmem>>, vector<8x512xf32>,
    %c441_i32 = arith.constant 441 : i32
    %119 = tpu.dynamic_rotate %0 by %c441_i32 dim 1 : vector<8x512xf32>, i32 -> vector<8x512xf32>
    %c24_76 = arith.constant 24 : index
    %c0_77 = arith.constant 0 : index
    %c0_78 = arith.constant 0 : index
    %120 = vector.load %arg2[%c24_76, %c0_77, %c0_78] : memref<27x8x512xf32, #tpu.memory_space<vmem>>, vector<1x8x512xf32>
    %121 = vector.shape_cast %120 : vector<1x8x512xf32> to vector<8x512xf32>
    %122 = arith.mulf %119, %121 : vector<8x512xf32>
    %c192 = arith.constant 192 : index
    %c0_79 = arith.constant 0 : index
    %123 = vector.load %arg10[%c192, %c0_79] : memref<256x512xf32, #tpu.memory_space<vmem>>, vector<8x512xf32>
    tpu.vector_store %arg10[%c192, %c0_79], %122 {strides = array<i32>} : memref<256x512xf32, #tpu.memory_space<vmem>>, vector<8x512xf32>,
    %c440_i32 = arith.constant 440 : i32
    %124 = tpu.dynamic_rotate %0 by %c440_i32 dim 1 : vector<8x512xf32>, i32 -> vector<8x512xf32>
    %c25 = arith.constant 25 : index
    %c0_80 = arith.constant 0 : index
    %c0_81 = arith.constant 0 : index
    %125 = vector.load %arg2[%c25, %c0_80, %c0_81] : memref<27x8x512xf32, #tpu.memory_space<vmem>>, vector<1x8x512xf32>
    %126 = vector.shape_cast %125 : vector<1x8x512xf32> to vector<8x512xf32>
    %127 = arith.mulf %124, %126 : vector<8x512xf32>
    %c200 = arith.constant 200 : index
    %c0_82 = arith.constant 0 : index
    %128 = vector.load %arg10[%c200, %c0_82] : memref<256x512xf32, #tpu.memory_space<vmem>>, vector<8x512xf32>
    tpu.vector_store %arg10[%c200, %c0_82], %127 {strides = array<i32>} : memref<256x512xf32, #tpu.memory_space<vmem>>, vector<8x512xf32>,
    %c439_i32 = arith.constant 439 : i32
    %129 = tpu.dynamic_rotate %0 by %c439_i32 dim 1 : vector<8x512xf32>, i32 -> vector<8x512xf32>
    %c26 = arith.constant 26 : index
    %c0_83 = arith.constant 0 : index
    %c0_84 = arith.constant 0 : index
    %130 = vector.load %arg2[%c26, %c0_83, %c0_84] : memref<27x8x512xf32, #tpu.memory_space<vmem>>, vector<1x8x512xf32>
    %131 = vector.shape_cast %130 : vector<1x8x512xf32> to vector<8x512xf32>
    %132 = arith.mulf %129, %131 : vector<8x512xf32>
    %c208 = arith.constant 208 : index
    %c0_85 = arith.constant 0 : index
    %133 = vector.load %arg10[%c208, %c0_85] : memref<256x512xf32, #tpu.memory_space<vmem>>, vector<8x512xf32>
    tpu.vector_store %arg10[%c208, %c0_85], %132 {strides = array<i32>} : memref<256x512xf32, #tpu.memory_space<vmem>>, vector<8x512xf32>,
    %c0_86 = arith.constant 0 : index
    %c0_87 = arith.constant 0 : index
    %134 = vector.load %arg3[%c0_86, %c0_87] : memref<8x256xf32, #tpu.memory_space<vmem>>, vector<8x256xf32>
    %c0_88 = arith.constant 0 : index
    %c0_89 = arith.constant 0 : index
    %135 = vector.load %arg10[%c0_88, %c0_89] : memref<256x512xf32, #tpu.memory_space<vmem>>, vector<256x512xf32>
    %cst_90 = arith.constant dense<0.000000e+00> : vector<8x512xf32>
    %136 = tpu.matmul %134, %135, %cst_90 {dimension_numbers = #tpu.dot_dimension_numbers<[1], [0], [0], [1], [0, 0, 1, 1], [], []>} : vector<8x256xf32>, vector<256x512xf32>, vector<8x512xf32> -> vector<8x512xf32>
    %cst_91 = arith.constant dense<0.000000e+00> : vector<8xf32>
    %137 = vector.multi_reduction <add>, %136, %cst_91 [1] : vector<8x512xf32> to vector<8xf32>
    %138 = vector.shape_cast %137 : vector<8xf32> to vector<8x1xf32>
    %139 = arith.mulf %136, %136 : vector<8x512xf32>
    %cst_92 = arith.constant dense<0.000000e+00> : vector<8xf32>
    %140 = vector.multi_reduction <add>, %139, %cst_92 [1] : vector<8x512xf32> to vector<8xf32>
    %141 = vector.shape_cast %140 : vector<8xf32> to vector<8x1xf32>
    %cst_93 = arith.constant 0.001953125 : f32
    %142 = vector.broadcast %cst_93 : f32 to vector<8x1xf32>
    %143 = arith.mulf %138, %142 : vector<8x1xf32>
    %cst_94 = arith.constant 0.001953125 : f32
    %144 = vector.broadcast %cst_94 : f32 to vector<8x1xf32>
    %145 = arith.mulf %141, %144 : vector<8x1xf32>
    %146 = arith.mulf %143, %143 : vector<8x1xf32>
    %147 = arith.subf %145, %146 : vector<8x1xf32>
    %c0_95 = arith.constant 0 : index
    %c0_96 = arith.constant 0 : index
    %148 = vector.load %arg4[%c0_95, %c0_96] : memref<8x1xf32, #tpu.memory_space<vmem>>, vector<8x1xf32>
    %cst_97 = arith.constant 9.99999974E-6 : f32
    %149 = vector.broadcast %cst_97 : f32 to vector<8x1xf32>
    %150 = arith.addf %147, %149 : vector<8x1xf32>
    %151 = math.rsqrt %150 : vector<8x1xf32>
    %152 = arith.mulf %148, %151 : vector<8x1xf32>
    %c0_98 = arith.constant 0 : index
    %c0_99 = arith.constant 0 : index
    %153 = vector.load %arg5[%c0_98, %c0_99] : memref<8x1xf32, #tpu.memory_space<vmem>>, vector<8x1xf32>
    %154 = arith.mulf %143, %152 : vector<8x1xf32>
    %155 = arith.subf %153, %154 : vector<8x1xf32>
    %156 = vector.broadcast %152 : vector<8x1xf32> to vector<8x512xf32>
    %157 = arith.mulf %136, %156 : vector<8x512xf32>
    %158 = vector.broadcast %155 : vector<8x1xf32> to vector<8x512xf32>
    %159 = arith.addf %157, %158 : vector<8x512xf32>
    %cst_100 = arith.constant 0.00999999977 : f32
    %160 = vector.broadcast %cst_100 : f32 to vector<8x512xf32>
    %161 = arith.mulf %160, %159 : vector<8x512xf32>
    %162 = arith.maximumf %159, %161 : vector<8x512xf32>
    %c73_i32_101 = arith.constant 73 : i32
    %163 = tpu.dynamic_rotate %162 by %c73_i32_101 dim 1 : vector<8x512xf32>, i32 -> vector<8x512xf32>
    %c0_102 = arith.constant 0 : index
    %c0_103 = arith.constant 0 : index
    %c0_104 = arith.constant 0 : index
    %164 = vector.load %arg2[%c0_102, %c0_103, %c0_104] : memref<27x8x512xf32, #tpu.memory_space<vmem>>, vector<1x8x512xf32>
    %165 = vector.shape_cast %164 : vector<1x8x512xf32> to vector<8x512xf32>
    %166 = arith.mulf %163, %165 : vector<8x512xf32>
    %c0_105 = arith.constant 0 : index
    %c0_106 = arith.constant 0 : index
    %167 = vector.load %arg10[%c0_105, %c0_106] : memref<256x512xf32, #tpu.memory_space<vmem>>, vector<8x512xf32>
    tpu.vector_store %arg10[%c0_105, %c0_106], %166 {strides = array<i32>} : memref<256x512xf32, #tpu.memory_space<vmem>>, vector<8x512xf32>,
    %c72_i32_107 = arith.constant 72 : i32
    %168 = tpu.dynamic_rotate %162 by %c72_i32_107 dim 1 : vector<8x512xf32>, i32 -> vector<8x512xf32>
    %c1_108 = arith.constant 1 : index
    %c0_109 = arith.constant 0 : index
    %c0_110 = arith.constant 0 : index
    %169 = vector.load %arg2[%c1_108, %c0_109, %c0_110] : memref<27x8x512xf32, #tpu.memory_space<vmem>>, vector<1x8x512xf32>
    %170 = vector.shape_cast %169 : vector<1x8x512xf32> to vector<8x512xf32>
    %171 = arith.mulf %168, %170 : vector<8x512xf32>
    %c8_111 = arith.constant 8 : index
    %c0_112 = arith.constant 0 : index
    %172 = vector.load %arg10[%c8_111, %c0_112] : memref<256x512xf32, #tpu.memory_space<vmem>>, vector<8x512xf32>
    tpu.vector_store %arg10[%c8_111, %c0_112], %171 {strides = array<i32>} : memref<256x512xf32, #tpu.memory_space<vmem>>, vector<8x512xf32>,
    %c71_i32_113 = arith.constant 71 : i32
    %173 = tpu.dynamic_rotate %162 by %c71_i32_113 dim 1 : vector<8x512xf32>, i32 -> vector<8x512xf32>
    %c2_114 = arith.constant 2 : index
    %c0_115 = arith.constant 0 : index
    %c0_116 = arith.constant 0 : index
    %174 = vector.load %arg2[%c2_114, %c0_115, %c0_116] : memref<27x8x512xf32, #tpu.memory_space<vmem>>, vector<1x8x512xf32>
    %175 = vector.shape_cast %174 : vector<1x8x512xf32> to vector<8x512xf32>
    %176 = arith.mulf %173, %175 : vector<8x512xf32>
    %c16_117 = arith.constant 16 : index
    %c0_118 = arith.constant 0 : index
    %177 = vector.load %arg10[%c16_117, %c0_118] : memref<256x512xf32, #tpu.memory_space<vmem>>, vector<8x512xf32>
    tpu.vector_store %arg10[%c16_117, %c0_118], %176 {strides = array<i32>} : memref<256x512xf32, #tpu.memory_space<vmem>>, vector<8x512xf32>,
    %c65_i32_119 = arith.constant 65 : i32
    %178 = tpu.dynamic_rotate %162 by %c65_i32_119 dim 1 : vector<8x512xf32>, i32 -> vector<8x512xf32>
    %c3_120 = arith.constant 3 : index
    %c0_121 = arith.constant 0 : index
    %c0_122 = arith.constant 0 : index
    %179 = vector.load %arg2[%c3_120, %c0_121, %c0_122] : memref<27x8x512xf32, #tpu.memory_space<vmem>>, vector<1x8x512xf32>
    %180 = vector.shape_cast %179 : vector<1x8x512xf32> to vector<8x512xf32>
    %181 = arith.mulf %178, %180 : vector<8x512xf32>
    %c24_123 = arith.constant 24 : index
    %c0_124 = arith.constant 0 : index
    %182 = vector.load %arg10[%c24_123, %c0_124] : memref<256x512xf32, #tpu.memory_space<vmem>>, vector<8x512xf32>
    tpu.vector_store %arg10[%c24_123, %c0_124], %181 {strides = array<i32>} : memref<256x512xf32, #tpu.memory_space<vmem>>, vector<8x512xf32>,
    %c64_i32_125 = arith.constant 64 : i32
    %183 = tpu.dynamic_rotate %162 by %c64_i32_125 dim 1 : vector<8x512xf32>, i32 -> vector<8x512xf32>
    %c4_126 = arith.constant 4 : index
    %c0_127 = arith.constant 0 : index
    %c0_128 = arith.constant 0 : index
    %184 = vector.load %arg2[%c4_126, %c0_127, %c0_128] : memref<27x8x512xf32, #tpu.memory_space<vmem>>, vector<1x8x512xf32>
    %185 = vector.shape_cast %184 : vector<1x8x512xf32> to vector<8x512xf32>
    %186 = arith.mulf %183, %185 : vector<8x512xf32>
    %c32_129 = arith.constant 32 : index
    %c0_130 = arith.constant 0 : index
    %187 = vector.load %arg10[%c32_129, %c0_130] : memref<256x512xf32, #tpu.memory_space<vmem>>, vector<8x512xf32>
    tpu.vector_store %arg10[%c32_129, %c0_130], %186 {strides = array<i32>} : memref<256x512xf32, #tpu.memory_space<vmem>>, vector<8x512xf32>,
    %c63_i32_131 = arith.constant 63 : i32
    %188 = tpu.dynamic_rotate %162 by %c63_i32_131 dim 1 : vector<8x512xf32>, i32 -> vector<8x512xf32>
    %c5_132 = arith.constant 5 : index
    %c0_133 = arith.constant 0 : index
    %c0_134 = arith.constant 0 : index
    %189 = vector.load %arg2[%c5_132, %c0_133, %c0_134] : memref<27x8x512xf32, #tpu.memory_space<vmem>>, vector<1x8x512xf32>
    %190 = vector.shape_cast %189 : vector<1x8x512xf32> to vector<8x512xf32>
    %191 = arith.mulf %188, %190 : vector<8x512xf32>
    %c40_135 = arith.constant 40 : index
    %c0_136 = arith.constant 0 : index
    %192 = vector.load %arg10[%c40_135, %c0_136] : memref<256x512xf32, #tpu.memory_space<vmem>>, vector<8x512xf32>
    tpu.vector_store %arg10[%c40_135, %c0_136], %191 {strides = array<i32>} : memref<256x512xf32, #tpu.memory_space<vmem>>, vector<8x512xf32>,
    %c57_i32_137 = arith.constant 57 : i32
    %193 = tpu.dynamic_rotate %162 by %c57_i32_137 dim 1 : vector<8x512xf32>, i32 -> vector<8x512xf32>
    %c6_138 = arith.constant 6 : index
    %c0_139 = arith.constant 0 : index
    %c0_140 = arith.constant 0 : index
    %194 = vector.load %arg2[%c6_138, %c0_139, %c0_140] : memref<27x8x512xf32, #tpu.memory_space<vmem>>, vector<1x8x512xf32>
    %195 = vector.shape_cast %194 : vector<1x8x512xf32> to vector<8x512xf32>
    %196 = arith.mulf %193, %195 : vector<8x512xf32>
    %c48_141 = arith.constant 48 : index
    %c0_142 = arith.constant 0 : index
    %197 = vector.load %arg10[%c48_141, %c0_142] : memref<256x512xf32, #tpu.memory_space<vmem>>, vector<8x512xf32>
    tpu.vector_store %arg10[%c48_141, %c0_142], %196 {strides = array<i32>} : memref<256x512xf32, #tpu.memory_space<vmem>>, vector<8x512xf32>,
    %c56_i32_143 = arith.constant 56 : i32
    %198 = tpu.dynamic_rotate %162 by %c56_i32_143 dim 1 : vector<8x512xf32>, i32 -> vector<8x512xf32>
    %c7_144 = arith.constant 7 : index
    %c0_145 = arith.constant 0 : index
    %c0_146 = arith.constant 0 : index
    %199 = vector.load %arg2[%c7_144, %c0_145, %c0_146] : memref<27x8x512xf32, #tpu.memory_space<vmem>>, vector<1x8x512xf32>
    %200 = vector.shape_cast %199 : vector<1x8x512xf32> to vector<8x512xf32>
    %201 = arith.mulf %198, %200 : vector<8x512xf32>
    %c56_147 = arith.constant 56 : index
    %c0_148 = arith.constant 0 : index
    %202 = vector.load %arg10[%c56_147, %c0_148] : memref<256x512xf32, #tpu.memory_space<vmem>>, vector<8x512xf32>
    tpu.vector_store %arg10[%c56_147, %c0_148], %201 {strides = array<i32>} : memref<256x512xf32, #tpu.memory_space<vmem>>, vector<8x512xf32>,
    %c55_i32_149 = arith.constant 55 : i32
    %203 = tpu.dynamic_rotate %162 by %c55_i32_149 dim 1 : vector<8x512xf32>, i32 -> vector<8x512xf32>
    %c8_150 = arith.constant 8 : index
    %c0_151 = arith.constant 0 : index
    %c0_152 = arith.constant 0 : index
    %204 = vector.load %arg2[%c8_150, %c0_151, %c0_152] : memref<27x8x512xf32, #tpu.memory_space<vmem>>, vector<1x8x512xf32>
    %205 = vector.shape_cast %204 : vector<1x8x512xf32> to vector<8x512xf32>
    %206 = arith.mulf %203, %205 : vector<8x512xf32>
    %c64_153 = arith.constant 64 : index
    %c0_154 = arith.constant 0 : index
    %207 = vector.load %arg10[%c64_153, %c0_154] : memref<256x512xf32, #tpu.memory_space<vmem>>, vector<8x512xf32>
    tpu.vector_store %arg10[%c64_153, %c0_154], %206 {strides = array<i32>} : memref<256x512xf32, #tpu.memory_space<vmem>>, vector<8x512xf32>,
    %c9_i32_155 = arith.constant 9 : i32
    %208 = tpu.dynamic_rotate %162 by %c9_i32_155 dim 1 : vector<8x512xf32>, i32 -> vector<8x512xf32>
    %c9_156 = arith.constant 9 : index
    %c0_157 = arith.constant 0 : index
    %c0_158 = arith.constant 0 : index
    %209 = vector.load %arg2[%c9_156, %c0_157, %c0_158] : memref<27x8x512xf32, #tpu.memory_space<vmem>>, vector<1x8x512xf32>
    %210 = vector.shape_cast %209 : vector<1x8x512xf32> to vector<8x512xf32>
    %211 = arith.mulf %208, %210 : vector<8x512xf32>
    %c72_159 = arith.constant 72 : index
    %c0_160 = arith.constant 0 : index
    %212 = vector.load %arg10[%c72_159, %c0_160] : memref<256x512xf32, #tpu.memory_space<vmem>>, vector<8x512xf32>
    tpu.vector_store %arg10[%c72_159, %c0_160], %211 {strides = array<i32>} : memref<256x512xf32, #tpu.memory_space<vmem>>, vector<8x512xf32>,
    %c8_i32_161 = arith.constant 8 : i32
    %213 = tpu.dynamic_rotate %162 by %c8_i32_161 dim 1 : vector<8x512xf32>, i32 -> vector<8x512xf32>
    %c10_162 = arith.constant 10 : index
    %c0_163 = arith.constant 0 : index
    %c0_164 = arith.constant 0 : index
    %214 = vector.load %arg2[%c10_162, %c0_163, %c0_164] : memref<27x8x512xf32, #tpu.memory_space<vmem>>, vector<1x8x512xf32>
    %215 = vector.shape_cast %214 : vector<1x8x512xf32> to vector<8x512xf32>
    %216 = arith.mulf %213, %215 : vector<8x512xf32>
    %c80_165 = arith.constant 80 : index
    %c0_166 = arith.constant 0 : index
    %217 = vector.load %arg10[%c80_165, %c0_166] : memref<256x512xf32, #tpu.memory_space<vmem>>, vector<8x512xf32>
    tpu.vector_store %arg10[%c80_165, %c0_166], %216 {strides = array<i32>} : memref<256x512xf32, #tpu.memory_space<vmem>>, vector<8x512xf32>,
    %c7_i32_167 = arith.constant 7 : i32
    %218 = tpu.dynamic_rotate %162 by %c7_i32_167 dim 1 : vector<8x512xf32>, i32 -> vector<8x512xf32>
    %c11_168 = arith.constant 11 : index
    %c0_169 = arith.constant 0 : index
    %c0_170 = arith.constant 0 : index
    %219 = vector.load %arg2[%c11_168, %c0_169, %c0_170] : memref<27x8x512xf32, #tpu.memory_space<vmem>>, vector<1x8x512xf32>
    %220 = vector.shape_cast %219 : vector<1x8x512xf32> to vector<8x512xf32>
    %221 = arith.mulf %218, %220 : vector<8x512xf32>
    %c88_171 = arith.constant 88 : index
    %c0_172 = arith.constant 0 : index
    %222 = vector.load %arg10[%c88_171, %c0_172] : memref<256x512xf32, #tpu.memory_space<vmem>>, vector<8x512xf32>
    tpu.vector_store %arg10[%c88_171, %c0_172], %221 {strides = array<i32>} : memref<256x512xf32, #tpu.memory_space<vmem>>, vector<8x512xf32>,
    %c1_i32_173 = arith.constant 1 : i32
    %223 = tpu.dynamic_rotate %162 by %c1_i32_173 dim 1 : vector<8x512xf32>, i32 -> vector<8x512xf32>
    %c12_174 = arith.constant 12 : index
    %c0_175 = arith.constant 0 : index
    %c0_176 = arith.constant 0 : index
    %224 = vector.load %arg2[%c12_174, %c0_175, %c0_176] : memref<27x8x512xf32, #tpu.memory_space<vmem>>, vector<1x8x512xf32>
    %225 = vector.shape_cast %224 : vector<1x8x512xf32> to vector<8x512xf32>
    %226 = arith.mulf %223, %225 : vector<8x512xf32>
    %c96_177 = arith.constant 96 : index
    %c0_178 = arith.constant 0 : index
    %227 = vector.load %arg10[%c96_177, %c0_178] : memref<256x512xf32, #tpu.memory_space<vmem>>, vector<8x512xf32>
    tpu.vector_store %arg10[%c96_177, %c0_178], %226 {strides = array<i32>} : memref<256x512xf32, #tpu.memory_space<vmem>>, vector<8x512xf32>,
    %c104_179 = arith.constant 104 : index
    %c0_180 = arith.constant 0 : index
    %228 = vector.load %arg10[%c104_179, %c0_180] : memref<256x512xf32, #tpu.memory_space<vmem>>, vector<8x512xf32>
    tpu.vector_store %arg10[%c104_179, %c0_180], %162 {strides = array<i32>} : memref<256x512xf32, #tpu.memory_space<vmem>>, vector<8x512xf32>,
    %c511_i32_181 = arith.constant 511 : i32
    %229 = tpu.dynamic_rotate %162 by %c511_i32_181 dim 1 : vector<8x512xf32>, i32 -> vector<8x512xf32>
    %c14_182 = arith.constant 14 : index
    %c0_183 = arith.constant 0 : index
    %c0_184 = arith.constant 0 : index
    %230 = vector.load %arg2[%c14_182, %c0_183, %c0_184] : memref<27x8x512xf32, #tpu.memory_space<vmem>>, vector<1x8x512xf32>
    %231 = vector.shape_cast %230 : vector<1x8x512xf32> to vector<8x512xf32>
    %232 = arith.mulf %229, %231 : vector<8x512xf32>
    %c112_185 = arith.constant 112 : index
    %c0_186 = arith.constant 0 : index
    %233 = vector.load %arg10[%c112_185, %c0_186] : memref<256x512xf32, #tpu.memory_space<vmem>>, vector<8x512xf32>
    tpu.vector_store %arg10[%c112_185, %c0_186], %232 {strides = array<i32>} : memref<256x512xf32, #tpu.memory_space<vmem>>, vector<8x512xf32>,
    %c505_i32_187 = arith.constant 505 : i32
    %234 = tpu.dynamic_rotate %162 by %c505_i32_187 dim 1 : vector<8x512xf32>, i32 -> vector<8x512xf32>
    %c15_188 = arith.constant 15 : index
    %c0_189 = arith.constant 0 : index
    %c0_190 = arith.constant 0 : index
    %235 = vector.load %arg2[%c15_188, %c0_189, %c0_190] : memref<27x8x512xf32, #tpu.memory_space<vmem>>, vector<1x8x512xf32>
    %236 = vector.shape_cast %235 : vector<1x8x512xf32> to vector<8x512xf32>
    %237 = arith.mulf %234, %236 : vector<8x512xf32>
    %c120_191 = arith.constant 120 : index
    %c0_192 = arith.constant 0 : index
    %238 = vector.load %arg10[%c120_191, %c0_192] : memref<256x512xf32, #tpu.memory_space<vmem>>, vector<8x512xf32>
    tpu.vector_store %arg10[%c120_191, %c0_192], %237 {strides = array<i32>} : memref<256x512xf32, #tpu.memory_space<vmem>>, vector<8x512xf32>,
    %c504_i32_193 = arith.constant 504 : i32
    %239 = tpu.dynamic_rotate %162 by %c504_i32_193 dim 1 : vector<8x512xf32>, i32 -> vector<8x512xf32>
    %c16_194 = arith.constant 16 : index
    %c0_195 = arith.constant 0 : index
    %c0_196 = arith.constant 0 : index
    %240 = vector.load %arg2[%c16_194, %c0_195, %c0_196] : memref<27x8x512xf32, #tpu.memory_space<vmem>>, vector<1x8x512xf32>
    %241 = vector.shape_cast %240 : vector<1x8x512xf32> to vector<8x512xf32>
    %242 = arith.mulf %239, %241 : vector<8x512xf32>
    %c128_197 = arith.constant 128 : index
    %c0_198 = arith.constant 0 : index
    %243 = vector.load %arg10[%c128_197, %c0_198] : memref<256x512xf32, #tpu.memory_space<vmem>>, vector<8x512xf32>
    tpu.vector_store %arg10[%c128_197, %c0_198], %242 {strides = array<i32>} : memref<256x512xf32, #tpu.memory_space<vmem>>, vector<8x512xf32>,
    %c503_i32_199 = arith.constant 503 : i32
    %244 = tpu.dynamic_rotate %162 by %c503_i32_199 dim 1 : vector<8x512xf32>, i32 -> vector<8x512xf32>
    %c17_200 = arith.constant 17 : index
    %c0_201 = arith.constant 0 : index
    %c0_202 = arith.constant 0 : index
    %245 = vector.load %arg2[%c17_200, %c0_201, %c0_202] : memref<27x8x512xf32, #tpu.memory_space<vmem>>, vector<1x8x512xf32>
    %246 = vector.shape_cast %245 : vector<1x8x512xf32> to vector<8x512xf32>
    %247 = arith.mulf %244, %246 : vector<8x512xf32>
    %c136_203 = arith.constant 136 : index
    %c0_204 = arith.constant 0 : index
    %248 = vector.load %arg10[%c136_203, %c0_204] : memref<256x512xf32, #tpu.memory_space<vmem>>, vector<8x512xf32>
    tpu.vector_store %arg10[%c136_203, %c0_204], %247 {strides = array<i32>} : memref<256x512xf32, #tpu.memory_space<vmem>>, vector<8x512xf32>,
    %c457_i32_205 = arith.constant 457 : i32
    %249 = tpu.dynamic_rotate %162 by %c457_i32_205 dim 1 : vector<8x512xf32>, i32 -> vector<8x512xf32>
    %c18_206 = arith.constant 18 : index
    %c0_207 = arith.constant 0 : index
    %c0_208 = arith.constant 0 : index
    %250 = vector.load %arg2[%c18_206, %c0_207, %c0_208] : memref<27x8x512xf32, #tpu.memory_space<vmem>>, vector<1x8x512xf32>
    %251 = vector.shape_cast %250 : vector<1x8x512xf32> to vector<8x512xf32>
    %252 = arith.mulf %249, %251 : vector<8x512xf32>
    %c144_209 = arith.constant 144 : index
    %c0_210 = arith.constant 0 : index
    %253 = vector.load %arg10[%c144_209, %c0_210] : memref<256x512xf32, #tpu.memory_space<vmem>>, vector<8x512xf32>
    tpu.vector_store %arg10[%c144_209, %c0_210], %252 {strides = array<i32>} : memref<256x512xf32, #tpu.memory_space<vmem>>, vector<8x512xf32>,
    %c456_i32_211 = arith.constant 456 : i32
    %254 = tpu.dynamic_rotate %162 by %c456_i32_211 dim 1 : vector<8x512xf32>, i32 -> vector<8x512xf32>
    %c19_212 = arith.constant 19 : index
    %c0_213 = arith.constant 0 : index
    %c0_214 = arith.constant 0 : index
    %255 = vector.load %arg2[%c19_212, %c0_213, %c0_214] : memref<27x8x512xf32, #tpu.memory_space<vmem>>, vector<1x8x512xf32>
    %256 = vector.shape_cast %255 : vector<1x8x512xf32> to vector<8x512xf32>
    %257 = arith.mulf %254, %256 : vector<8x512xf32>
    %c152_215 = arith.constant 152 : index
    %c0_216 = arith.constant 0 : index
    %258 = vector.load %arg10[%c152_215, %c0_216] : memref<256x512xf32, #tpu.memory_space<vmem>>, vector<8x512xf32>
    tpu.vector_store %arg10[%c152_215, %c0_216], %257 {strides = array<i32>} : memref<256x512xf32, #tpu.memory_space<vmem>>, vector<8x512xf32>,
    %c455_i32_217 = arith.constant 455 : i32
    %259 = tpu.dynamic_rotate %162 by %c455_i32_217 dim 1 : vector<8x512xf32>, i32 -> vector<8x512xf32>
    %c20_218 = arith.constant 20 : index
    %c0_219 = arith.constant 0 : index
    %c0_220 = arith.constant 0 : index
    %260 = vector.load %arg2[%c20_218, %c0_219, %c0_220] : memref<27x8x512xf32, #tpu.memory_space<vmem>>, vector<1x8x512xf32>
    %261 = vector.shape_cast %260 : vector<1x8x512xf32> to vector<8x512xf32>
    %262 = arith.mulf %259, %261 : vector<8x512xf32>
    %c160_221 = arith.constant 160 : index
    %c0_222 = arith.constant 0 : index
    %263 = vector.load %arg10[%c160_221, %c0_222] : memref<256x512xf32, #tpu.memory_space<vmem>>, vector<8x512xf32>
    tpu.vector_store %arg10[%c160_221, %c0_222], %262 {strides = array<i32>} : memref<256x512xf32, #tpu.memory_space<vmem>>, vector<8x512xf32>,
    %c449_i32_223 = arith.constant 449 : i32
    %264 = tpu.dynamic_rotate %162 by %c449_i32_223 dim 1 : vector<8x512xf32>, i32 -> vector<8x512xf32>
    %c21_224 = arith.constant 21 : index
    %c0_225 = arith.constant 0 : index
    %c0_226 = arith.constant 0 : index
    %265 = vector.load %arg2[%c21_224, %c0_225, %c0_226] : memref<27x8x512xf32, #tpu.memory_space<vmem>>, vector<1x8x512xf32>
    %266 = vector.shape_cast %265 : vector<1x8x512xf32> to vector<8x512xf32>
    %267 = arith.mulf %264, %266 : vector<8x512xf32>
    %c168_227 = arith.constant 168 : index
    %c0_228 = arith.constant 0 : index
    %268 = vector.load %arg10[%c168_227, %c0_228] : memref<256x512xf32, #tpu.memory_space<vmem>>, vector<8x512xf32>
    tpu.vector_store %arg10[%c168_227, %c0_228], %267 {strides = array<i32>} : memref<256x512xf32, #tpu.memory_space<vmem>>, vector<8x512xf32>,
    %c448_i32_229 = arith.constant 448 : i32
    %269 = tpu.dynamic_rotate %162 by %c448_i32_229 dim 1 : vector<8x512xf32>, i32 -> vector<8x512xf32>
    %c22_230 = arith.constant 22 : index
    %c0_231 = arith.constant 0 : index
    %c0_232 = arith.constant 0 : index
    %270 = vector.load %arg2[%c22_230, %c0_231, %c0_232] : memref<27x8x512xf32, #tpu.memory_space<vmem>>, vector<1x8x512xf32>
    %271 = vector.shape_cast %270 : vector<1x8x512xf32> to vector<8x512xf32>
    %272 = arith.mulf %269, %271 : vector<8x512xf32>
    %c176_233 = arith.constant 176 : index
    %c0_234 = arith.constant 0 : index
    %273 = vector.load %arg10[%c176_233, %c0_234] : memref<256x512xf32, #tpu.memory_space<vmem>>, vector<8x512xf32>
    tpu.vector_store %arg10[%c176_233, %c0_234], %272 {strides = array<i32>} : memref<256x512xf32, #tpu.memory_space<vmem>>, vector<8x512xf32>,
    %c447_i32_235 = arith.constant 447 : i32
    %274 = tpu.dynamic_rotate %162 by %c447_i32_235 dim 1 : vector<8x512xf32>, i32 -> vector<8x512xf32>
    %c23_236 = arith.constant 23 : index
    %c0_237 = arith.constant 0 : index
    %c0_238 = arith.constant 0 : index
    %275 = vector.load %arg2[%c23_236, %c0_237, %c0_238] : memref<27x8x512xf32, #tpu.memory_space<vmem>>, vector<1x8x512xf32>
    %276 = vector.shape_cast %275 : vector<1x8x512xf32> to vector<8x512xf32>
    %277 = arith.mulf %274, %276 : vector<8x512xf32>
    %c184_239 = arith.constant 184 : index
    %c0_240 = arith.constant 0 : index
    %278 = vector.load %arg10[%c184_239, %c0_240] : memref<256x512xf32, #tpu.memory_space<vmem>>, vector<8x512xf32>
    tpu.vector_store %arg10[%c184_239, %c0_240], %277 {strides = array<i32>} : memref<256x512xf32, #tpu.memory_space<vmem>>, vector<8x512xf32>,
    %c441_i32_241 = arith.constant 441 : i32
    %279 = tpu.dynamic_rotate %162 by %c441_i32_241 dim 1 : vector<8x512xf32>, i32 -> vector<8x512xf32>
    %c24_242 = arith.constant 24 : index
    %c0_243 = arith.constant 0 : index
    %c0_244 = arith.constant 0 : index
    %280 = vector.load %arg2[%c24_242, %c0_243, %c0_244] : memref<27x8x512xf32, #tpu.memory_space<vmem>>, vector<1x8x512xf32>
    %281 = vector.shape_cast %280 : vector<1x8x512xf32> to vector<8x512xf32>
    %282 = arith.mulf %279, %281 : vector<8x512xf32>
    %c192_245 = arith.constant 192 : index
    %c0_246 = arith.constant 0 : index
    %283 = vector.load %arg10[%c192_245, %c0_246] : memref<256x512xf32, #tpu.memory_space<vmem>>, vector<8x512xf32>
    tpu.vector_store %arg10[%c192_245, %c0_246], %282 {strides = array<i32>} : memref<256x512xf32, #tpu.memory_space<vmem>>, vector<8x512xf32>,
    %c440_i32_247 = arith.constant 440 : i32
    %284 = tpu.dynamic_rotate %162 by %c440_i32_247 dim 1 : vector<8x512xf32>, i32 -> vector<8x512xf32>
    %c25_248 = arith.constant 25 : index
    %c0_249 = arith.constant 0 : index
    %c0_250 = arith.constant 0 : index
    %285 = vector.load %arg2[%c25_248, %c0_249, %c0_250] : memref<27x8x512xf32, #tpu.memory_space<vmem>>, vector<1x8x512xf32>
    %286 = vector.shape_cast %285 : vector<1x8x512xf32> to vector<8x512xf32>
    %287 = arith.mulf %284, %286 : vector<8x512xf32>
    %c200_251 = arith.constant 200 : index
    %c0_252 = arith.constant 0 : index
    %288 = vector.load %arg10[%c200_251, %c0_252] : memref<256x512xf32, #tpu.memory_space<vmem>>, vector<8x512xf32>
    tpu.vector_store %arg10[%c200_251, %c0_252], %287 {strides = array<i32>} : memref<256x512xf32, #tpu.memory_space<vmem>>, vector<8x512xf32>,
    %c439_i32_253 = arith.constant 439 : i32
    %289 = tpu.dynamic_rotate %162 by %c439_i32_253 dim 1 : vector<8x512xf32>, i32 -> vector<8x512xf32>
    %c26_254 = arith.constant 26 : index
    %c0_255 = arith.constant 0 : index
    %c0_256 = arith.constant 0 : index
    %290 = vector.load %arg2[%c26_254, %c0_255, %c0_256] : memref<27x8x512xf32, #tpu.memory_space<vmem>>, vector<1x8x512xf32>
    %291 = vector.shape_cast %290 : vector<1x8x512xf32> to vector<8x512xf32>
    %292 = arith.mulf %289, %291 : vector<8x512xf32>
    %c208_257 = arith.constant 208 : index
    %c0_258 = arith.constant 0 : index
    %293 = vector.load %arg10[%c208_257, %c0_258] : memref<256x512xf32, #tpu.memory_space<vmem>>, vector<8x512xf32>
    tpu.vector_store %arg10[%c208_257, %c0_258], %292 {strides = array<i32>} : memref<256x512xf32, #tpu.memory_space<vmem>>, vector<8x512xf32>,
    %c0_259 = arith.constant 0 : index
    %c0_260 = arith.constant 0 : index
    %294 = vector.load %arg6[%c0_259, %c0_260] : memref<8x256xf32, #tpu.memory_space<vmem>>, vector<8x256xf32>
    %c0_261 = arith.constant 0 : index
    %c0_262 = arith.constant 0 : index
    %295 = vector.load %arg10[%c0_261, %c0_262] : memref<256x512xf32, #tpu.memory_space<vmem>>, vector<256x512xf32>
    %cst_263 = arith.constant dense<0.000000e+00> : vector<8x512xf32>
    %296 = tpu.matmul %294, %295, %cst_263 {dimension_numbers = #tpu.dot_dimension_numbers<[1], [0], [0], [1], [0, 0, 1, 1], [], []>} : vector<8x256xf32>, vector<256x512xf32>, vector<8x512xf32> -> vector<8x512xf32>
    %cst_264 = arith.constant dense<0.000000e+00> : vector<8xf32>
    %297 = vector.multi_reduction <add>, %296, %cst_264 [1] : vector<8x512xf32> to vector<8xf32>
    %298 = vector.shape_cast %297 : vector<8xf32> to vector<8x1xf32>
    %299 = arith.mulf %296, %296 : vector<8x512xf32>
    %cst_265 = arith.constant dense<0.000000e+00> : vector<8xf32>
    %300 = vector.multi_reduction <add>, %299, %cst_265 [1] : vector<8x512xf32> to vector<8xf32>
    %301 = vector.shape_cast %300 : vector<8xf32> to vector<8x1xf32>
    %cst_266 = arith.constant 0.001953125 : f32
    %302 = vector.broadcast %cst_266 : f32 to vector<8x1xf32>
    %303 = arith.mulf %298, %302 : vector<8x1xf32>
    %cst_267 = arith.constant 0.001953125 : f32
    %304 = vector.broadcast %cst_267 : f32 to vector<8x1xf32>
    %305 = arith.mulf %301, %304 : vector<8x1xf32>
    %306 = arith.mulf %303, %303 : vector<8x1xf32>
    %307 = arith.subf %305, %306 : vector<8x1xf32>
    %c0_268 = arith.constant 0 : index
    %c0_269 = arith.constant 0 : index
    %308 = vector.load %arg7[%c0_268, %c0_269] : memref<8x1xf32, #tpu.memory_space<vmem>>, vector<8x1xf32>
    %cst_270 = arith.constant 9.99999974E-6 : f32
    %309 = vector.broadcast %cst_270 : f32 to vector<8x1xf32>
    %310 = arith.addf %307, %309 : vector<8x1xf32>
    %311 = math.rsqrt %310 : vector<8x1xf32>
    %312 = arith.mulf %308, %311 : vector<8x1xf32>
    %c0_271 = arith.constant 0 : index
    %c0_272 = arith.constant 0 : index
    %313 = vector.load %arg8[%c0_271, %c0_272] : memref<8x1xf32, #tpu.memory_space<vmem>>, vector<8x1xf32>
    %314 = arith.mulf %303, %312 : vector<8x1xf32>
    %315 = arith.subf %313, %314 : vector<8x1xf32>
    %316 = vector.broadcast %312 : vector<8x1xf32> to vector<8x512xf32>
    %317 = arith.mulf %296, %316 : vector<8x512xf32>
    %318 = vector.broadcast %315 : vector<8x1xf32> to vector<8x512xf32>
    %319 = arith.addf %317, %318 : vector<8x512xf32>
    %320 = arith.addf %319, %0 : vector<8x512xf32>
    %cst_273 = arith.constant 0.00999999977 : f32
    %321 = vector.broadcast %cst_273 : f32 to vector<8x512xf32>
    %322 = arith.mulf %321, %320 : vector<8x512xf32>
    %323 = arith.maximumf %320, %322 : vector<8x512xf32>
    %c0_274 = arith.constant 0 : index
    %c0_275 = arith.constant 0 : index
    %324 = vector.load %arg9[%c0_274, %c0_275] : memref<8x512xf32, #tpu.memory_space<vmem>>, vector<8x512xf32>
    tpu.vector_store %arg9[%c0_274, %c0_275], %323 {strides = array<i32>} : memref<8x512xf32, #tpu.memory_space<vmem>>, vector<8x512xf32>,
    return
  }
  func.func @transform_0(%arg0: i32) -> (i32, i32) {
    %c0_i32 = arith.constant 0 : i32
    %c0_i32_0 = arith.constant 0 : i32
    %c0_i32_1 = arith.constant 0 : i32
    return %c0_i32, %c0_i32_0 : i32, i32
  }
  func.func @transform_1(%arg0: i32) -> (i32, i32, i32) {
    %c0_i32 = arith.constant 0 : i32
    %c0_i32_0 = arith.constant 0 : i32
    %c0_i32_1 = arith.constant 0 : i32
    %c0_i32_2 = arith.constant 0 : i32
    return %c0_i32, %c0_i32_0, %c0_i32_1 : i32, i32, i32
  }
  func.func @transform_2(%arg0: i32) -> (i32, i32) {
    %c0_i32 = arith.constant 0 : i32
    %c0_i32_0 = arith.constant 0 : i32
    %c0_i32_1 = arith.constant 0 : i32
    return %c0_i32, %c0_i32_0 : i32, i32
  }
  func.func @transform_3(%arg0: i32) -> (i32, i32) {
    %c0_i32 = arith.constant 0 : i32
    %c0_i32_0 = arith.constant 0 : i32
    %c0_i32_1 = arith.constant 0 : i32
    return %c0_i32, %c0_i32_0 : i32, i32
  }
  func.func @transform_4(%arg0: i32) -> (i32, i32) {
    %c0_i32 = arith.constant 0 : i32
    %c0_i32_0 = arith.constant 0 : i32
    %c0_i32_1 = arith.constant 0 : i32
    return %c0_i32, %c0_i32_0 : i32, i32
  }
  func.func @transform_5(%arg0: i32) -> (i32, i32) {
    %c0_i32 = arith.constant 0 : i32
    %c0_i32_0 = arith.constant 0 : i32
    %c0_i32_1 = arith.constant 0 : i32
    return %c0_i32, %c0_i32_0 : i32, i32
  }
  func.func @transform_6(%arg0: i32) -> (i32, i32) {
    %c0_i32 = arith.constant 0 : i32
    %c0_i32_0 = arith.constant 0 : i32
    %c0_i32_1 = arith.constant 0 : i32
    return %c0_i32, %c0_i32_0 : i32, i32
  }
  func.func @transform_7(%arg0: i32) -> (i32, i32) {
    %c0_i32 = arith.constant 0 : i32
    %c0_i32_0 = arith.constant 0 : i32
    %c0_i32_1 = arith.constant 0 : i32
    return %c0_i32, %c0_i32_0 : i32, i32
  }
  func.func @transform_8(%arg0: i32) -> (i32, i32) {
    %c0_i32 = arith.constant 0 : i32
    %c0_i32_0 = arith.constant 0 : i32
    %c0_i32_1 = arith.constant 0 : i32
    return %c0_i32, %c0_i32_0 : i32, i32
  }
}

</mosaic_0001>

<llo_original>
// kernel: tpu_custom_call.1
$region0: #{tpu_custom_call.1}
  #allocation0 [shape = 'u32[]', space=smem, size = 0x4, offset = 0x4, fixed_abs, tag = 'smem constant byte address 0x4 - core index']
  #allocation1 [shape = 'u32[144,128]{1,0:T(1,128)}', space=vmem, size = 0x12000, scoped, tag = 'internal scratch']
  #allocation2 [shape = 'f32[256,512]{1,0:T(8,128)}', space=vmem, size = 0x80000, scoped, tag = 'scratch operand']
  %s0 = inlined_call_operand.vmem [shape: f32[8,512], index: 0, kind: input, shape index: {}]
  %s1 = inlined_call_operand.hbm [shape: f32[27,8,512], index: 1, kind: input, shape index: {}]
  %s2 = inlined_call_operand.hbm [shape: f32[8,256], index: 2, kind: input, shape index: {}]
  %s3 = inlined_call_operand.vmem [shape: f32[8,1], index: 3, kind: input, shape index: {}]
  %s4 = inlined_call_operand.vmem [shape: f32[8,1], index: 4, kind: input, shape index: {}]
  %s5 = inlined_call_operand.hbm [shape: f32[8,256], index: 5, kind: input, shape index: {}]
  %s6 = inlined_call_operand.vmem [shape: f32[8,1], index: 6, kind: input, shape index: {}]
  %s7 = inlined_call_operand.vmem [shape: f32[8,1], index: 7, kind: input, shape index: {}]
  %s8 = inlined_call_operand.hbm [shape: f32[8,512], index: 8, kind: output, shape index: {}]
  %s9 = sld [smem:[#allocation0]]
  $region54: #{tpu_custom_call.1} parent=0
    _
  %s11 = ssub.s32 1, %s9
  %s12 = scalar_select 0, %s11, %s9
  $region1: #{tpu_custom_call.1} parent=0
    #allocation3 [shape = 'u8[442368]{0}', space=vmem, size = 0x6c000, scoped, tag = 'input window, operand 1, single buffered']
    #allocation4 [shape = 's32[1]{0}', space=sflag, size = 0x4, scoped, tag = 'scoped memory for tpu_custom_call.1']
    #allocation5 [shape = 's32[1]{0}', space=sflag, size = 0x4, scoped, tag = 'scoped memory for tpu_custom_call.1']
    #allocation6 [shape = 'u8[8192]{0}', space=vmem, size = 0x2000, scoped, tag = 'input window, operand 2, single buffered']
    #allocation7 [shape = 's32[1]{0}', space=sflag, size = 0x4, scoped, tag = 'scoped memory for tpu_custom_call.1']
    #allocation8 [shape = 'u8[8192]{0}', space=vmem, size = 0x2000, scoped, tag = 'input window, operand 5, single buffered']
    #allocation9 [shape = 'u8[16384]{0}', space=vmem, size = 0x4000, scoped, tag = 'output window, operand 0, single buffered']
    %13 = vsyncpa [#allocation4], 0
    %14 = vsyncpa [#allocation7], 0
    %15 = vsyncpa [#allocation5], 0
    // Predicated region
    $region2: #{tpu_custom_call.1} parent=1 // pred_check
      _
    $region3: #{tpu_custom_call.1} parent=1 // pred_check_branch
      %17 = sbr.rel (0) target = $region5
    $region4: #{tpu_custom_call.1} parent=1 // pred_region
      _
    $region5: #{tpu_custom_call.1} parent=1 // pred_fallthru
      _
    // Predicated region
    $region6: #{tpu_custom_call.1} parent=1 // pred_check
      _
    $region7: #{tpu_custom_call.1} parent=1 // pred_check_branch
      %19 = sbr.rel (0) target = $region9
    $region8: #{tpu_custom_call.1} parent=1 // pred_region
      %s21 = ssub.s32 13824, 13824
      %22 = vsyncadd [#allocation4], %s21
      %s23 = sshll.u32 [#allocation3], 4
      %s24 = int_to_ptr.vmem [resolvable:$true] %s23
      %29 = dma.hbm_to_vmem [thread:$0]  %s1, 13824, %s24, [#allocation4], 512, 512, 32
    $region9: #{tpu_custom_call.1} parent=1 // pred_fallthru
      _
    // Predicated region
    $region10: #{tpu_custom_call.1} parent=1 // pred_check
      _
    $region11: #{tpu_custom_call.1} parent=1 // pred_check_branch
      %31 = sbr.rel (0) target = $region13
    $region12: #{tpu_custom_call.1} parent=1 // pred_region
      %s33 = ssub.s32 256, 256
      %34 = vsyncadd [#allocation7], %s33
      %s36 = sshll.u32 [#allocation6], 4
      %s37 = int_to_ptr.vmem [resolvable:$true] %s36
      %39 = dma.hbm_to_vmem [thread:$0]  %s2, 256, %s37, [#allocation7]
    $region13: #{tpu_custom_call.1} parent=1 // pred_fallthru
      _
    // Predicated region
    $region14: #{tpu_custom_call.1} parent=1 // pred_check
      _
    $region15: #{tpu_custom_call.1} parent=1 // pred_check_branch
      %41 = sbr.rel (0) target = $region17
    $region16: #{tpu_custom_call.1} parent=1 // pred_region
      _
    $region17: #{tpu_custom_call.1} parent=1 // pred_fallthru
      _
    // Predicated region
    $region18: #{tpu_custom_call.1} parent=1 // pred_check
      _
    $region19: #{tpu_custom_call.1} parent=1 // pred_check_branch
      %43 = sbr.rel (0) target = $region21
    $region20: #{tpu_custom_call.1} parent=1 // pred_region
      _
    $region21: #{tpu_custom_call.1} parent=1 // pred_fallthru
      _
    // Predicated region
    $region22: #{tpu_custom_call.1} parent=1 // pred_check
      _
    $region23: #{tpu_custom_call.1} parent=1 // pred_check_branch
      %45 = sbr.rel (0) target = $region25
    $region24: #{tpu_custom_call.1} parent=1 // pred_region
      %s47 = ssub.s32 256, 256
      %48 = vsyncadd [#allocation7], %s47
      %s50 = sshll.u32 [#allocation8], 4
      %s51 = int_to_ptr.vmem [resolvable:$true] %s50
      %53 = dma.hbm_to_vmem [thread:$0]  %s5, 256, %s51, [#allocation7]
    $region25: #{tpu_custom_call.1} parent=1 // pred_fallthru
      _
    // Predicated region
    $region26: #{tpu_custom_call.1} parent=1 // pred_check
      _
    $region27: #{tpu_custom_call.1} parent=1 // pred_check_branch
      %55 = sbr.rel (0) target = $region29
    $region28: #{tpu_custom_call.1} parent=1 // pred_region
      _
    $region29: #{tpu_custom_call.1} parent=1 // pred_fallthru
      _
    // Predicated region
    $region30: #{tpu_custom_call.1} parent=1 // pred_check
      _
    $region31: #{tpu_custom_call.1} parent=1 // pred_check_branch
      %57 = sbr.rel (0) target = $region33
    $region32: #{tpu_custom_call.1} parent=1 // pred_region
      _
    $region33: #{tpu_custom_call.1} parent=1 // pred_fallthru
      _
    // Predicated region
    $region34: #{tpu_custom_call.1} parent=1 // pred_check
      _
    $region35: #{tpu_custom_call.1} parent=1 // pred_check_branch
      %59 = sbr.rel (0) target = $region37
    $region36: #{tpu_custom_call.1} parent=1 // pred_region
      %60 = dma.done [#allocation4], 13824
    $region37: #{tpu_custom_call.1} parent=1 // pred_fallthru
      _
    // Predicated region
    $region38: #{tpu_custom_call.1} parent=1 // pred_check
      _
    $region39: #{tpu_custom_call.1} parent=1 // pred_check_branch
      %62 = sbr.rel (0) target = $region41
    $region40: #{tpu_custom_call.1} parent=1 // pred_region
      %63 = dma.done [#allocation7], 256
    $region41: #{tpu_custom_call.1} parent=1 // pred_fallthru
      _
    // Predicated region
    $region42: #{tpu_custom_call.1} parent=1 // pred_check
      _
    $region43: #{tpu_custom_call.1} parent=1 // pred_check_branch
      %65 = sbr.rel (0) target = $region45
    $region44: #{tpu_custom_call.1} parent=1 // pred_region
      %66 = dma.done [#allocation7], 256
    $region45: #{tpu_custom_call.1} parent=1 // pred_fallthru
      _
    %v67 = vld [vmem:[%s0] sm:$0xff]
    %v68 = vld [vmem:[%s0 + $0x8] sm:$0xff]
    %v69 = vld [vmem:[%s0 + $0x10] sm:$0xff]
    %v70 = vld [vmem:[%s0 + $0x18] sm:$0xff]
    %71 = vst [vmem:[#allocation2 + $0x360] sm:$0xff] 0.0
    %72 = vst [vmem:[#allocation2 + $0x368] sm:$0xff] 0.0
    %73 = vst [vmem:[#allocation2 + $0x370] sm:$0xff] 0.0
    %74 = vst [vmem:[#allocation2 + $0x378] sm:$0xff] 0.0
    %75 = vst [vmem:[#allocation2 + $0x380] sm:$0xff] 0.0
    %76 = vst [vmem:[#allocation2 + $0x388] sm:$0xff] 0.0
    %77 = vst [vmem:[#allocation2 + $0x390] sm:$0xff] 0.0
    %78 = vst [vmem:[#allocation2 + $0x398] sm:$0xff] 0.0
    %79 = vst [vmem:[#allocation2 + $0x3a0] sm:$0xff] 0.0
    %80 = vst [vmem:[#allocation2 + $0x3a8] sm:$0xff] 0.0
    %81 = vst [vmem:[#allocation2 + $0x3b0] sm:$0xff] 0.0
    %82 = vst [vmem:[#allocation2 + $0x3b8] sm:$0xff] 0.0
    %83 = vst [vmem:[#allocation2 + $0x3c0] sm:$0xff] 0.0
    %84 = vst [vmem:[#allocation2 + $0x3c8] sm:$0xff] 0.0
    %85 = vst [vmem:[#allocation2 + $0x3d0] sm:$0xff] 0.0
    %86 = vst [vmem:[#allocation2 + $0x3d8] sm:$0xff] 0.0
    %87 = vst [vmem:[#allocation2 + $0x3e0] sm:$0xff] 0.0
    %88 = vst [vmem:[#allocation2 + $0x3e8] sm:$0xff] 0.0
    %89 = vst [vmem:[#allocation2 + $0x3f0] sm:$0xff] 0.0
    %90 = vst [vmem:[#allocation2 + $0x3f8] sm:$0xff] 0.0
    %91 = vrot.lane.b32.xlu0 %v67, 73
    %v92 = vpop.permute.xlu0 %91
    %93 = vrot.lane.b32.xlu0 %v68, 73
    %v94 = vpop.permute.xlu0 %93
    %95 = vrot.lane.b32.xlu0 %v69, 73
    %v96 = vpop.permute.xlu0 %95
    %97 = vrot.lane.b32.xlu0 %v70, 73
    %v98 = vpop.permute.xlu0 %97
    %v99 = vlaneseq
    %v100 = vand.u32 %v99, 127
    %vm101 = vcmp.lt.s32.totalorder %v100, 73
    %v102 = vsel %vm101, %v96, %v98
    %v103 = vsel %vm101, %v94, %v96
    %v104 = vsel %vm101, %v92, %v94
    %v105 = vsel %vm101, %v98, %v92
    %v106 = vld [vmem:[#allocation3] sm:$0xff]
    %v107 = vld [vmem:[#allocation3 + $0x8] sm:$0xff]
    %v108 = vld [vmem:[#allocation3 + $0x10] sm:$0xff]
    %v109 = vld [vmem:[#allocation3 + $0x18] sm:$0xff]
    %v110 = vmul.f32 %v105, %v106
    %v111 = vmul.f32 %v104, %v107
    %v112 = vmul.f32 %v103, %v108
    %v113 = vmul.f32 %v102, %v109
    %114 = vst [vmem:[#allocation2] sm:$0xff] %v110
    %115 = vst [vmem:[#allocation2 + $0x8] sm:$0xff] %v111
    %116 = vst [vmem:[#allocation2 + $0x10] sm:$0xff] %v112
    %117 = vst [vmem:[#allocation2 + $0x18] sm:$0xff] %v113
    %118 = vrot.lane.b32.xlu0 %v67, 72
    %v119 = vpop.permute.xlu0 %118
    %120 = vrot.lane.b32.xlu0 %v68, 72
    %v121 = vpop.permute.xlu0 %120
    %122 = vrot.lane.b32.xlu0 %v69, 72
    %v123 = vpop.permute.xlu0 %122
    %124 = vrot.lane.b32.xlu0 %v70, 72
    %v125 = vpop.permute.xlu0 %124
    %vm126 = vcmp.lt.s32.totalorder %v100, 72
    %v127 = vsel %vm126, %v123, %v125
    %v128 = vsel %vm126, %v121, %v123
    %v129 = vsel %vm126, %v119, %v121
    %v130 = vsel %vm126, %v125, %v119
    %s131 = scalar_lea.vmem [#allocation3], 32
    %v132 = vld [vmem:[%s131] sm:$0xff]
    %v133 = vld [vmem:[%s131 + $0x8] sm:$0xff]
    %v134 = vld [vmem:[%s131 + $0x10] sm:$0xff]
    %v135 = vld [vmem:[%s131 + $0x18] sm:$0xff]
    %v136 = vmul.f32 %v130, %v132
    %v137 = vmul.f32 %v129, %v133
    %v138 = vmul.f32 %v128, %v134
    %v139 = vmul.f32 %v127, %v135
    %140 = vst [vmem:[#allocation2 + $0x20] sm:$0xff] %v136
    %141 = vst [vmem:[#allocation2 + $0x28] sm:$0xff] %v137
    %142 = vst [vmem:[#allocation2 + $0x30] sm:$0xff] %v138
    %143 = vst [vmem:[#allocation2 + $0x38] sm:$0xff] %v139
    %144 = vrot.lane.b32.xlu0 %v67, 71
    %v145 = vpop.permute.xlu0 %144
    %146 = vrot.lane.b32.xlu0 %v68, 71
    %v147 = vpop.permute.xlu0 %146
    %148 = vrot.lane.b32.xlu0 %v69, 71
    %v149 = vpop.permute.xlu0 %148
    %150 = vrot.lane.b32.xlu0 %v70, 71
    %v151 = vpop.permute.xlu0 %150
    %vm152 = vcmp.lt.s32.totalorder %v100, 71
    %v153 = vsel %vm152, %v149, %v151
    %v154 = vsel %vm152, %v147, %v149
    %v155 = vsel %vm152, %v145, %v147
    %v156 = vsel %vm152, %v151, %v145
    %s157 = scalar_lea.vmem [#allocation3], 64
    %v158 = vld [vmem:[%s157] sm:$0xff]
    %v159 = vld [vmem:[%s157 + $0x8] sm:$0xff]
    %v160 = vld [vmem:[%s157 + $0x10] sm:$0xff]
    %v161 = vld [vmem:[%s157 + $0x18] sm:$0xff]
    %v162 = vmul.f32 %v156, %v158
    %v163 = vmul.f32 %v155, %v159
    %v164 = vmul.f32 %v154, %v160
    %v165 = vmul.f32 %v153, %v161
    %166 = vst [vmem:[#allocation2 + $0x40] sm:$0xff] %v162
    %167 = vst [vmem:[#allocation2 + $0x48] sm:$0xff] %v163
    %168 = vst [vmem:[#allocation2 + $0x50] sm:$0xff] %v164
    %169 = vst [vmem:[#allocation2 + $0x58] sm:$0xff] %v165
    %170 = vrot.lane.b32.xlu0 %v67, 65
    %v171 = vpop.permute.xlu0 %170
    %172 = vrot.lane.b32.xlu0 %v68, 65
    %v173 = vpop.permute.xlu0 %172
    %174 = vrot.lane.b32.xlu0 %v69, 65
    %v175 = vpop.permute.xlu0 %174
    %176 = vrot.lane.b32.xlu0 %v70, 65
    %v177 = vpop.permute.xlu0 %176
    %vm178 = vcmp.lt.s32.totalorder %v100, 65
    %v179 = vsel %vm178, %v175, %v177
    %v180 = vsel %vm178, %v173, %v175
    %v181 = vsel %vm178, %v171, %v173
    %v182 = vsel %vm178, %v177, %v171
    %s183 = scalar_lea.vmem [#allocation3], 96
    %v184 = vld [vmem:[%s183] sm:$0xff]
    %v185 = vld [vmem:[%s183 + $0x8] sm:$0xff]
    %v186 = vld [vmem:[%s183 + $0x10] sm:$0xff]
    %v187 = vld [vmem:[%s183 + $0x18] sm:$0xff]
    %v188 = vmul.f32 %v182, %v184
    %v189 = vmul.f32 %v181, %v185
    %v190 = vmul.f32 %v180, %v186
    %v191 = vmul.f32 %v179, %v187
    %192 = vst [vmem:[#allocation2 + $0x60] sm:$0xff] %v188
    %193 = vst [vmem:[#allocation2 + $0x68] sm:$0xff] %v189
    %194 = vst [vmem:[#allocation2 + $0x70] sm:$0xff] %v190
    %195 = vst [vmem:[#allocation2 + $0x78] sm:$0xff] %v191
    %196 = vrot.lane.b32.xlu0 %v67, 64
    %v197 = vpop.permute.xlu0 %196
    %198 = vrot.lane.b32.xlu0 %v68, 64
    %v199 = vpop.permute.xlu0 %198
    %200 = vrot.lane.b32.xlu0 %v69, 64
    %v201 = vpop.permute.xlu0 %200
    %202 = vrot.lane.b32.xlu0 %v70, 64
    %v203 = vpop.permute.xlu0 %202
    %vm204 = vcmp.lt.s32.totalorder %v100, 64
    %v205 = vsel %vm204, %v201, %v203
    %v206 = vsel %vm204, %v199, %v201
    %v207 = vsel %vm204, %v197, %v199
    %v208 = vsel %vm204, %v203, %v197
    %s209 = scalar_lea.vmem [#allocation3], 128
    %v210 = vld [vmem:[%s209] sm:$0xff]
    %v211 = vld [vmem:[%s209 + $0x8] sm:$0xff]
    %v212 = vld [vmem:[%s209 + $0x10] sm:$0xff]
    %v213 = vld [vmem:[%s209 + $0x18] sm:$0xff]
    %v214 = vmul.f32 %v208, %v210
    %v215 = vmul.f32 %v207, %v211
    %v216 = vmul.f32 %v206, %v212
    %v217 = vmul.f32 %v205, %v213
    %218 = vst [vmem:[#allocation2 + $0x80] sm:$0xff] %v214
    %219 = vst [vmem:[#allocation2 + $0x88] sm:$0xff] %v215
    %220 = vst [vmem:[#allocation2 + $0x90] sm:$0xff] %v216
    %221 = vst [vmem:[#allocation2 + $0x98] sm:$0xff] %v217
    %222 = vrot.lane.b32.xlu0 %v67, 63
    %v223 = vpop.permute.xlu0 %222
    %224 = vrot.lane.b32.xlu0 %v68, 63
    %v225 = vpop.permute.xlu0 %224
    %226 = vrot.lane.b32.xlu0 %v69, 63
    %v227 = vpop.permute.xlu0 %226
    %228 = vrot.lane.b32.xlu0 %v70, 63
    %v229 = vpop.permute.xlu0 %228
    %vm230 = vcmp.lt.s32.totalorder %v100, 63
    %v231 = vsel %vm230, %v227, %v229
    %v232 = vsel %vm230, %v225, %v227
    %v233 = vsel %vm230, %v223, %v225
    %v234 = vsel %vm230, %v229, %v223
    %s235 = scalar_lea.vmem [#allocation3], 160
    %v236 = vld [vmem:[%s235] sm:$0xff]
    %v237 = vld [vmem:[%s235 + $0x8] sm:$0xff]
    %v238 = vld [vmem:[%s235 + $0x10] sm:$0xff]
    %v239 = vld [vmem:[%s235 + $0x18] sm:$0xff]
    %v240 = vmul.f32 %v234, %v236
    %v241 = vmul.f32 %v233, %v237
    %v242 = vmul.f32 %v232, %v238
    %v243 = vmul.f32 %v231, %v239
    %244 = vst [vmem:[#allocation2 + $0xa0] sm:$0xff] %v240
    %245 = vst [vmem:[#allocation2 + $0xa8] sm:$0xff] %v241
    %246 = vst [vmem:[#allocation2 + $0xb0] sm:$0xff] %v242
    %247 = vst [vmem:[#allocation2 + $0xb8] sm:$0xff] %v243
    %248 = vrot.lane.b32.xlu0 %v67, 57
    %v249 = vpop.permute.xlu0 %248
    %250 = vrot.lane.b32.xlu0 %v68, 57
    %v251 = vpop.permute.xlu0 %250
    %252 = vrot.lane.b32.xlu0 %v69, 57
    %v253 = vpop.permute.xlu0 %252
    %254 = vrot.lane.b32.xlu0 %v70, 57
    %v255 = vpop.permute.xlu0 %254
    %vm256 = vcmp.lt.s32.totalorder %v100, 57
    %v257 = vsel %vm256, %v253, %v255
    %v258 = vsel %vm256, %v251, %v253
    %v259 = vsel %vm256, %v249, %v251
    %v260 = vsel %vm256, %v255, %v249
    %s261 = scalar_lea.vmem [#allocation3], 192
    %v262 = vld [vmem:[%s261] sm:$0xff]
    %v263 = vld [vmem:[%s261 + $0x8] sm:$0xff]
    %v264 = vld [vmem:[%s261 + $0x10] sm:$0xff]
    %v265 = vld [vmem:[%s261 + $0x18] sm:$0xff]
    %v266 = vmul.f32 %v260, %v262
    %v267 = vmul.f32 %v259, %v263
    %v268 = vmul.f32 %v258, %v264
    %v269 = vmul.f32 %v257, %v265
    %270 = vst [vmem:[#allocation2 + $0xc0] sm:$0xff] %v266
    %271 = vst [vmem:[#allocation2 + $0xc8] sm:$0xff] %v267
    %272 = vst [vmem:[#allocation2 + $0xd0] sm:$0xff] %v268
    %273 = vst [vmem:[#allocation2 + $0xd8] sm:$0xff] %v269
    %274 = vrot.lane.b32.xlu0 %v67, 56
    %v275 = vpop.permute.xlu0 %274
    %276 = vrot.lane.b32.xlu0 %v68, 56
    %v277 = vpop.permute.xlu0 %276
    %278 = vrot.lane.b32.xlu0 %v69, 56
    %v279 = vpop.permute.xlu0 %278
    %280 = vrot.lane.b32.xlu0 %v70, 56
    %v281 = vpop.permute.xlu0 %280
    %vm282 = vcmp.lt.s32.totalorder %v100, 56
    %v283 = vsel %vm282, %v279, %v281
    %v284 = vsel %vm282, %v277, %v279
    %v285 = vsel %vm282, %v275, %v277
    %v286 = vsel %vm282, %v281, %v275
    %s287 = scalar_lea.vmem [#allocation3], 224
    %v288 = vld [vmem:[%s287] sm:$0xff]
    %v289 = vld [vmem:[%s287 + $0x8] sm:$0xff]
    %v290 = vld [vmem:[%s287 + $0x10] sm:$0xff]
    %v291 = vld [vmem:[%s287 + $0x18] sm:$0xff]
    %v292 = vmul.f32 %v286, %v288
    %v293 = vmul.f32 %v285, %v289
    %v294 = vmul.f32 %v284, %v290
    %v295 = vmul.f32 %v283, %v291
    %296 = vst [vmem:[#allocation2 + $0xe0] sm:$0xff] %v292
    %297 = vst [vmem:[#allocation2 + $0xe8] sm:$0xff] %v293
    %298 = vst [vmem:[#allocation2 + $0xf0] sm:$0xff] %v294
    %299 = vst [vmem:[#allocation2 + $0xf8] sm:$0xff] %v295
    %300 = vrot.lane.b32.xlu0 %v67, 55
    %v301 = vpop.permute.xlu0 %300
    %302 = vrot.lane.b32.xlu0 %v68, 55
    %v303 = vpop.permute.xlu0 %302
    %304 = vrot.lane.b32.xlu0 %v69, 55
    %v305 = vpop.permute.xlu0 %304
    %306 = vrot.lane.b32.xlu0 %v70, 55
    %v307 = vpop.permute.xlu0 %306
    %vm308 = vcmp.lt.s32.totalorder %v100, 55
    %v309 = vsel %vm308, %v305, %v307
    %v310 = vsel %vm308, %v303, %v305
    %v311 = vsel %vm308, %v301, %v303
    %v312 = vsel %vm308, %v307, %v301
    %s313 = scalar_lea.vmem [#allocation3], 256
    %v314 = vld [vmem:[%s313] sm:$0xff]
    %v315 = vld [vmem:[%s313 + $0x8] sm:$0xff]
    %v316 = vld [vmem:[%s313 + $0x10] sm:$0xff]
    %v317 = vld [vmem:[%s313 + $0x18] sm:$0xff]
    %v318 = vmul.f32 %v312, %v314
    %v319 = vmul.f32 %v311, %v315
    %v320 = vmul.f32 %v310, %v316
    %v321 = vmul.f32 %v309, %v317
    %322 = vst [vmem:[#allocation2 + $0x100] sm:$0xff] %v318
    %323 = vst [vmem:[#allocation2 + $0x108] sm:$0xff] %v319
    %324 = vst [vmem:[#allocation2 + $0x110] sm:$0xff] %v320
    %325 = vst [vmem:[#allocation2 + $0x118] sm:$0xff] %v321
    %326 = vrot.lane.b32.xlu0 %v67, 9
    %v327 = vpop.permute.xlu0 %326
    %328 = vrot.lane.b32.xlu0 %v68, 9
    %v329 = vpop.permute.xlu0 %328
    %330 = vrot.lane.b32.xlu0 %v69, 9
    %v331 = vpop.permute.xlu0 %330
    %332 = vrot.lane.b32.xlu0 %v70, 9
    %v333 = vpop.permute.xlu0 %332
    %vm334 = vcmp.lt.s32.totalorder %v100, 9
    %v335 = vsel %vm334, %v331, %v333
    %v336 = vsel %vm334, %v329, %v331
    %v337 = vsel %vm334, %v327, %v329
    %v338 = vsel %vm334, %v333, %v327
    %s339 = scalar_lea.vmem [#allocation3], 288
    %v340 = vld [vmem:[%s339] sm:$0xff]
    %v341 = vld [vmem:[%s339 + $0x8] sm:$0xff]
    %v342 = vld [vmem:[%s339 + $0x10] sm:$0xff]
    %v343 = vld [vmem:[%s339 + $0x18] sm:$0xff]
    %v344 = vmul.f32 %v338, %v340
    %v345 = vmul.f32 %v337, %v341
    %v346 = vmul.f32 %v336, %v342
    %v347 = vmul.f32 %v335, %v343
    %348 = vst [vmem:[#allocation2 + $0x120] sm:$0xff] %v344
    %349 = vst [vmem:[#allocation2 + $0x128] sm:$0xff] %v345
    %350 = vst [vmem:[#allocation2 + $0x130] sm:$0xff] %v346
    %351 = vst [vmem:[#allocation2 + $0x138] sm:$0xff] %v347
    %352 = vrot.lane.b32.xlu0 %v67, 8
    %v353 = vpop.permute.xlu0 %352
    %354 = vrot.lane.b32.xlu0 %v68, 8
    %v355 = vpop.permute.xlu0 %354
    %356 = vrot.lane.b32.xlu0 %v69, 8
    %v357 = vpop.permute.xlu0 %356
    %358 = vrot.lane.b32.xlu0 %v70, 8
    %v359 = vpop.permute.xlu0 %358
    %vm360 = vcmp.lt.s32.totalorder %v100, 8
    %v361 = vsel %vm360, %v357, %v359
    %v362 = vsel %vm360, %v355, %v357
    %v363 = vsel %vm360, %v353, %v355
    %v364 = vsel %vm360, %v359, %v353
    %s365 = scalar_lea.vmem [#allocation3], 320
    %v366 = vld [vmem:[%s365] sm:$0xff]
    %v367 = vld [vmem:[%s365 + $0x8] sm:$0xff]
    %v368 = vld [vmem:[%s365 + $0x10] sm:$0xff]
    %v369 = vld [vmem:[%s365 + $0x18] sm:$0xff]
    %v370 = vmul.f32 %v364, %v366
    %v371 = vmul.f32 %v363, %v367
    %v372 = vmul.f32 %v362, %v368
    %v373 = vmul.f32 %v361, %v369
    %374 = vst [vmem:[#allocation2 + $0x140] sm:$0xff] %v370
    %375 = vst [vmem:[#allocation2 + $0x148] sm:$0xff] %v371
    %376 = vst [vmem:[#allocation2 + $0x150] sm:$0xff] %v372
    %377 = vst [vmem:[#allocation2 + $0x158] sm:$0xff] %v373
    %378 = vrot.lane.b32.xlu0 %v67, 7
    %v379 = vpop.permute.xlu0 %378
    %380 = vrot.lane.b32.xlu0 %v68, 7
    %v381 = vpop.permute.xlu0 %380
    %382 = vrot.lane.b32.xlu0 %v69, 7
    %v383 = vpop.permute.xlu0 %382
    %384 = vrot.lane.b32.xlu0 %v70, 7
    %v385 = vpop.permute.xlu0 %384
    %vm386 = vcmp.lt.s32.totalorder %v100, 7
    %v387 = vsel %vm386, %v383, %v385
    %v388 = vsel %vm386, %v381, %v383
    %v389 = vsel %vm386, %v379, %v381
    %v390 = vsel %vm386, %v385, %v379
    %s391 = scalar_lea.vmem [#allocation3], 352
    %v392 = vld [vmem:[%s391] sm:$0xff]
    %v393 = vld [vmem:[%s391 + $0x8] sm:$0xff]
    %v394 = vld [vmem:[%s391 + $0x10] sm:$0xff]
    %v395 = vld [vmem:[%s391 + $0x18] sm:$0xff]
    %v396 = vmul.f32 %v390, %v392
    %v397 = vmul.f32 %v389, %v393
    %v398 = vmul.f32 %v388, %v394
    %v399 = vmul.f32 %v387, %v395
    %400 = vst [vmem:[#allocation2 + $0x160] sm:$0xff] %v396
    %401 = vst [vmem:[#allocation2 + $0x168] sm:$0xff] %v397
    %402 = vst [vmem:[#allocation2 + $0x170] sm:$0xff] %v398
    %403 = vst [vmem:[#allocation2 + $0x178] sm:$0xff] %v399
    %404 = vrot.lane.b32.xlu0 %v67, 1
    %v405 = vpop.permute.xlu0 %404
    %406 = vrot.lane.b32.xlu0 %v68, 1
    %v407 = vpop.permute.xlu0 %406
    %408 = vrot.lane.b32.xlu0 %v69, 1
    %v409 = vpop.permute.xlu0 %408
    %410 = vrot.lane.b32.xlu0 %v70, 1
    %v411 = vpop.permute.xlu0 %410
    %vm412 = vcmp.lt.s32.totalorder %v100, 1
    %v413 = vsel %vm412, %v409, %v411
    %v414 = vsel %vm412, %v407, %v409
    %v415 = vsel %vm412, %v405, %v407
    %v416 = vsel %vm412, %v411, %v405
    %s417 = scalar_lea.vmem [#allocation3], 384
    %v418 = vld [vmem:[%s417] sm:$0xff]
    %v419 = vld [vmem:[%s417 + $0x8] sm:$0xff]
    %v420 = vld [vmem:[%s417 + $0x10] sm:$0xff]
    %v421 = vld [vmem:[%s417 + $0x18] sm:$0xff]
    %v422 = vmul.f32 %v416, %v418
    %v423 = vmul.f32 %v415, %v419
    %v424 = vmul.f32 %v414, %v420
    %v425 = vmul.f32 %v413, %v421
    %426 = vst [vmem:[#allocation2 + $0x180] sm:$0xff] %v422
    %427 = vst [vmem:[#allocation2 + $0x188] sm:$0xff] %v423
    %428 = vst [vmem:[#allocation2 + $0x190] sm:$0xff] %v424
    %429 = vst [vmem:[#allocation2 + $0x198] sm:$0xff] %v425
    %430 = vst [vmem:[#allocation2 + $0x1a0] sm:$0xff] %v67
    %431 = vst [vmem:[#allocation2 + $0x1a8] sm:$0xff] %v68
    %432 = vst [vmem:[#allocation2 + $0x1b0] sm:$0xff] %v69
    %433 = vst [vmem:[#allocation2 + $0x1b8] sm:$0xff] %v70
    %434 = vrot.lane.b32.xlu0 %v67, 127
    %v435 = vpop.permute.xlu0 %434
    %436 = vrot.lane.b32.xlu0 %v68, 127
    %v437 = vpop.permute.xlu0 %436
    %438 = vrot.lane.b32.xlu0 %v69, 127
    %v439 = vpop.permute.xlu0 %438
    %440 = vrot.lane.b32.xlu0 %v70, 127
    %v441 = vpop.permute.xlu0 %440
    %vm442 = vcmp.lt.s32.totalorder %v100, 127
    %v443 = vsel %vm442, %v439, %v441
    %v444 = vsel %vm442, %v437, %v439
    %v445 = vsel %vm442, %v435, %v437
    %v446 = vsel %vm442, %v441, %v435
    %s447 = scalar_lea.vmem [#allocation3], 448
    %v448 = vld [vmem:[%s447] sm:$0xff]
    %v449 = vld [vmem:[%s447 + $0x8] sm:$0xff]
    %v450 = vld [vmem:[%s447 + $0x10] sm:$0xff]
    %v451 = vld [vmem:[%s447 + $0x18] sm:$0xff]
    %v452 = vmul.f32 %v445, %v448
    %v453 = vmul.f32 %v444, %v449
    %v454 = vmul.f32 %v443, %v450
    %v455 = vmul.f32 %v446, %v451
    %456 = vst [vmem:[#allocation2 + $0x1c0] sm:$0xff] %v452
    %457 = vst [vmem:[#allocation2 + $0x1c8] sm:$0xff] %v453
    %458 = vst [vmem:[#allocation2 + $0x1d0] sm:$0xff] %v454
    %459 = vst [vmem:[#allocation2 + $0x1d8] sm:$0xff] %v455
    %460 = vrot.lane.b32.xlu0 %v67, 121
    %v461 = vpop.permute.xlu0 %460
    %462 = vrot.lane.b32.xlu0 %v68, 121
    %v463 = vpop.permute.xlu0 %462
    %464 = vrot.lane.b32.xlu0 %v69, 121
    %v465 = vpop.permute.xlu0 %464
    %466 = vrot.lane.b32.xlu0 %v70, 121
    %v467 = vpop.permute.xlu0 %466
    %vm468 = vcmp.lt.s32.totalorder %v100, 121
    %v469 = vsel %vm468, %v465, %v467
    %v470 = vsel %vm468, %v463, %v465
    %v471 = vsel %vm468, %v461, %v463
    %v472 = vsel %vm468, %v467, %v461
    %s473 = scalar_lea.vmem [#allocation3], 480
    %v474 = vld [vmem:[%s473] sm:$0xff]
    %v475 = vld [vmem:[%s473 + $0x8] sm:$0xff]
    %v476 = vld [vmem:[%s473 + $0x10] sm:$0xff]
    %v477 = vld [vmem:[%s473 + $0x18] sm:$0xff]
    %v478 = vmul.f32 %v471, %v474
    %v479 = vmul.f32 %v470, %v475
    %v480 = vmul.f32 %v469, %v476
    %v481 = vmul.f32 %v472, %v477
    %482 = vst [vmem:[#allocation2 + $0x1e0] sm:$0xff] %v478
    %483 = vst [vmem:[#allocation2 + $0x1e8] sm:$0xff] %v479
    %484 = vst [vmem:[#allocation2 + $0x1f0] sm:$0xff] %v480
    %485 = vst [vmem:[#allocation2 + $0x1f8] sm:$0xff] %v481
    %486 = vrot.lane.b32.xlu0 %v67, 120
    %v487 = vpop.permute.xlu0 %486
    %488 = vrot.lane.b32.xlu0 %v68, 120
    %v489 = vpop.permute.xlu0 %488
    %490 = vrot.lane.b32.xlu0 %v69, 120
    %v491 = vpop.permute.xlu0 %490
    %492 = vrot.lane.b32.xlu0 %v70, 120
    %v493 = vpop.permute.xlu0 %492
    %vm494 = vcmp.lt.s32.totalorder %v100, 120
    %v495 = vsel %vm494, %v491, %v493
    %v496 = vsel %vm494, %v489, %v491
    %v497 = vsel %vm494, %v487, %v489
    %v498 = vsel %vm494, %v493, %v487
    %s499 = scalar_lea.vmem [#allocation3], 512
    %v500 = vld [vmem:[%s499] sm:$0xff]
    %v501 = vld [vmem:[%s499 + $0x8] sm:$0xff]
    %v502 = vld [vmem:[%s499 + $0x10] sm:$0xff]
    %v503 = vld [vmem:[%s499 + $0x18] sm:$0xff]
    %v504 = vmul.f32 %v497, %v500
    %v505 = vmul.f32 %v496, %v501
    %v506 = vmul.f32 %v495, %v502
    %v507 = vmul.f32 %v498, %v503
    %508 = vst [vmem:[#allocation2 + $0x200] sm:$0xff] %v504
    %509 = vst [vmem:[#allocation2 + $0x208] sm:$0xff] %v505
    %510 = vst [vmem:[#allocation2 + $0x210] sm:$0xff] %v506
    %511 = vst [vmem:[#allocation2 + $0x218] sm:$0xff] %v507
    %512 = vrot.lane.b32.xlu0 %v67, 119
    %v513 = vpop.permute.xlu0 %512
    %514 = vrot.lane.b32.xlu0 %v68, 119
    %v515 = vpop.permute.xlu0 %514
    %516 = vrot.lane.b32.xlu0 %v69, 119
    %v517 = vpop.permute.xlu0 %516
    %518 = vrot.lane.b32.xlu0 %v70, 119
    %v519 = vpop.permute.xlu0 %518
    %vm520 = vcmp.lt.s32.totalorder %v100, 119
    %v521 = vsel %vm520, %v517, %v519
    %v522 = vsel %vm520, %v515, %v517
    %v523 = vsel %vm520, %v513, %v515
    %v524 = vsel %vm520, %v519, %v513
    %s525 = scalar_lea.vmem [#allocation3], 544
    %v526 = vld [vmem:[%s525] sm:$0xff]
    %v527 = vld [vmem:[%s525 + $0x8] sm:$0xff]
    %v528 = vld [vmem:[%s525 + $0x10] sm:$0xff]
    %v529 = vld [vmem:[%s525 + $0x18] sm:$0xff]
    %v530 = vmul.f32 %v523, %v526
    %v531 = vmul.f32 %v522, %v527
    %v532 = vmul.f32 %v521, %v528
    %v533 = vmul.f32 %v524, %v529
    %534 = vst [vmem:[#allocation2 + $0x220] sm:$0xff] %v530
    %535 = vst [vmem:[#allocation2 + $0x228] sm:$0xff] %v531
    %536 = vst [vmem:[#allocation2 + $0x230] sm:$0xff] %v532
    %537 = vst [vmem:[#allocation2 + $0x238] sm:$0xff] %v533
    %s538 = scalar_lea.vmem [#allocation3], 576
    %v539 = vld [vmem:[%s538] sm:$0xff]
    %v540 = vld [vmem:[%s538 + $0x8] sm:$0xff]
    %v541 = vld [vmem:[%s538 + $0x10] sm:$0xff]
    %v542 = vld [vmem:[%s538 + $0x18] sm:$0xff]
    %v543 = vmul.f32 %v104, %v539
    %v544 = vmul.f32 %v103, %v540
    %v545 = vmul.f32 %v102, %v541
    %v546 = vmul.f32 %v105, %v542
    %547 = vst [vmem:[#allocation2 + $0x240] sm:$0xff] %v543
    %548 = vst [vmem:[#allocation2 + $0x248] sm:$0xff] %v544
    %549 = vst [vmem:[#allocation2 + $0x250] sm:$0xff] %v545
    %550 = vst [vmem:[#allocation2 + $0x258] sm:$0xff] %v546
    %s551 = scalar_lea.vmem [#allocation3], 608
    %v552 = vld [vmem:[%s551] sm:$0xff]
    %v553 = vld [vmem:[%s551 + $0x8] sm:$0xff]
    %v554 = vld [vmem:[%s551 + $0x10] sm:$0xff]
    %v555 = vld [vmem:[%s551 + $0x18] sm:$0xff]
    %v556 = vmul.f32 %v129, %v552
    %v557 = vmul.f32 %v128, %v553
    %v558 = vmul.f32 %v127, %v554
    %v559 = vmul.f32 %v130, %v555
    %560 = vst [vmem:[#allocation2 + $0x260] sm:$0xff] %v556
    %561 = vst [vmem:[#allocation2 + $0x268] sm:$0xff] %v557
    %562 = vst [vmem:[#allocation2 + $0x270] sm:$0xff] %v558
    %563 = vst [vmem:[#allocation2 + $0x278] sm:$0xff] %v559
    %s564 = scalar_lea.vmem [#allocation3], 640
    %v565 = vld [vmem:[%s564] sm:$0xff]
    %v566 = vld [vmem:[%s564 + $0x8] sm:$0xff]
    %v567 = vld [vmem:[%s564 + $0x10] sm:$0xff]
    %v568 = vld [vmem:[%s564 + $0x18] sm:$0xff]
    %v569 = vmul.f32 %v155, %v565
    %v570 = vmul.f32 %v154, %v566
    %v571 = vmul.f32 %v153, %v567
    %v572 = vmul.f32 %v156, %v568
    %573 = vst [vmem:[#allocation2 + $0x280] sm:$0xff] %v569
    %574 = vst [vmem:[#allocation2 + $0x288] sm:$0xff] %v570
    %575 = vst [vmem:[#allocation2 + $0x290] sm:$0xff] %v571
    %576 = vst [vmem:[#allocation2 + $0x298] sm:$0xff] %v572
    %s577 = scalar_lea.vmem [#allocation3], 672
    %v578 = vld [vmem:[%s577] sm:$0xff]
    %v579 = vld [vmem:[%s577 + $0x8] sm:$0xff]
    %v580 = vld [vmem:[%s577 + $0x10] sm:$0xff]
    %v581 = vld [vmem:[%s577 + $0x18] sm:$0xff]
    %v582 = vmul.f32 %v181, %v578
    %v583 = vmul.f32 %v180, %v579
    %v584 = vmul.f32 %v179, %v580
    %v585 = vmul.f32 %v182, %v581
    %586 = vst [vmem:[#allocation2 + $0x2a0] sm:$0xff] %v582
    %587 = vst [vmem:[#allocation2 + $0x2a8] sm:$0xff] %v583
    %588 = vst [vmem:[#allocation2 + $0x2b0] sm:$0xff] %v584
    %589 = vst [vmem:[#allocation2 + $0x2b8] sm:$0xff] %v585
    %s590 = scalar_lea.vmem [#allocation3], 704
    %v591 = vld [vmem:[%s590] sm:$0xff]
    %v592 = vld [vmem:[%s590 + $0x8] sm:$0xff]
    %v593 = vld [vmem:[%s590 + $0x10] sm:$0xff]
    %v594 = vld [vmem:[%s590 + $0x18] sm:$0xff]
    %v595 = vmul.f32 %v207, %v591
    %v596 = vmul.f32 %v206, %v592
    %v597 = vmul.f32 %v205, %v593
    %v598 = vmul.f32 %v208, %v594
    %599 = vst [vmem:[#allocation2 + $0x2c0] sm:$0xff] %v595
    %600 = vst [vmem:[#allocation2 + $0x2c8] sm:$0xff] %v596
    %601 = vst [vmem:[#allocation2 + $0x2d0] sm:$0xff] %v597
    %602 = vst [vmem:[#allocation2 + $0x2d8] sm:$0xff] %v598
    %s603 = scalar_lea.vmem [#allocation3], 736
    %v604 = vld [vmem:[%s603] sm:$0xff]
    %v605 = vld [vmem:[%s603 + $0x8] sm:$0xff]
    %v606 = vld [vmem:[%s603 + $0x10] sm:$0xff]
    %v607 = vld [vmem:[%s603 + $0x18] sm:$0xff]
    %v608 = vmul.f32 %v233, %v604
    %v609 = vmul.f32 %v232, %v605
    %v610 = vmul.f32 %v231, %v606
    %v611 = vmul.f32 %v234, %v607
    %612 = vst [vmem:[#allocation2 + $0x2e0] sm:$0xff] %v608
    %613 = vst [vmem:[#allocation2 + $0x2e8] sm:$0xff] %v609
    %614 = vst [vmem:[#allocation2 + $0x2f0] sm:$0xff] %v610
    %615 = vst [vmem:[#allocation2 + $0x2f8] sm:$0xff] %v611
    %s616 = scalar_lea.vmem [#allocation3], 768
    %v617 = vld [vmem:[%s616] sm:$0xff]
    %v618 = vld [vmem:[%s616 + $0x8] sm:$0xff]
    %v619 = vld [vmem:[%s616 + $0x10] sm:$0xff]
    %v620 = vld [vmem:[%s616 + $0x18] sm:$0xff]
    %v621 = vmul.f32 %v259, %v617
    %v622 = vmul.f32 %v258, %v618
    %v623 = vmul.f32 %v257, %v619
    %v624 = vmul.f32 %v260, %v620
    %625 = vst [vmem:[#allocation2 + $0x300] sm:$0xff] %v621
    %626 = vst [vmem:[#allocation2 + $0x308] sm:$0xff] %v622
    %627 = vst [vmem:[#allocation2 + $0x310] sm:$0xff] %v623
    %628 = vst [vmem:[#allocation2 + $0x318] sm:$0xff] %v624
    %s629 = scalar_lea.vmem [#allocation3], 800
    %v630 = vld [vmem:[%s629] sm:$0xff]
    %v631 = vld [vmem:[%s629 + $0x8] sm:$0xff]
    %v632 = vld [vmem:[%s629 + $0x10] sm:$0xff]
    %v633 = vld [vmem:[%s629 + $0x18] sm:$0xff]
    %v634 = vmul.f32 %v285, %v630
    %v635 = vmul.f32 %v284, %v631
    %v636 = vmul.f32 %v283, %v632
    %v637 = vmul.f32 %v286, %v633
    %638 = vst [vmem:[#allocation2 + $0x320] sm:$0xff] %v634
    %639 = vst [vmem:[#allocation2 + $0x328] sm:$0xff] %v635
    %640 = vst [vmem:[#allocation2 + $0x330] sm:$0xff] %v636
    %641 = vst [vmem:[#allocation2 + $0x338] sm:$0xff] %v637
    %s642 = scalar_lea.vmem [#allocation3], 832
    %v643 = vld [vmem:[%s642] sm:$0xff]
    %v644 = vld [vmem:[%s642 + $0x8] sm:$0xff]
    %v645 = vld [vmem:[%s642 + $0x10] sm:$0xff]
    %v646 = vld [vmem:[%s642 + $0x18] sm:$0xff]
    %v647 = vmul.f32 %v311, %v643
    %v648 = vmul.f32 %v310, %v644
    %v649 = vmul.f32 %v309, %v645
    %v650 = vmul.f32 %v312, %v646
    %651 = vst [vmem:[#allocation2 + $0x340] sm:$0xff] %v647
    %652 = vst [vmem:[#allocation2 + $0x348] sm:$0xff] %v648
    %653 = vst [vmem:[#allocation2 + $0x350] sm:$0xff] %v649
    %654 = vst [vmem:[#allocation2 + $0x358] sm:$0xff] %v650
    %v655 = vld [vmem:[#allocation6] sm:$0xff]
    %v656 = vld [vmem:[#allocation6 + $0x8] sm:$0xff]
    %v657 = vld [vmem:[#allocation2] sm:$0xff]
    %v658 = vld [vmem:[#allocation2 + $0x8] sm:$0xff]
    %v659 = vld [vmem:[#allocation2 + $0x10] sm:$0xff]
    %v660 = vld [vmem:[#allocation2 + $0x18] sm:$0xff]
    %v661 = vld [vmem:[#allocation2 + $0x20] sm:$0xff]
    %v662 = vld [vmem:[#allocation2 + $0x28] sm:$0xff]
    %v663 = vld [vmem:[#allocation2 + $0x30] sm:$0xff]
    %v664 = vld [vmem:[#allocation2 + $0x38] sm:$0xff]
    %v665 = vld [vmem:[#allocation2 + $0x40] sm:$0xff]
    %v666 = vld [vmem:[#allocation2 + $0x48] sm:$0xff]
    %v667 = vld [vmem:[#allocation2 + $0x50] sm:$0xff]
    %v668 = vld [vmem:[#allocation2 + $0x58] sm:$0xff]
    %v669 = vld [vmem:[#allocation2 + $0x60] sm:$0xff]
    %v670 = vld [vmem:[#allocation2 + $0x68] sm:$0xff]
    %v671 = vld [vmem:[#allocation2 + $0x70] sm:$0xff]
    %v672 = vld [vmem:[#allocation2 + $0x78] sm:$0xff]
    %v673 = vld [vmem:[#allocation2 + $0x80] sm:$0xff]
    %v674 = vld [vmem:[#allocation2 + $0x88] sm:$0xff]
    %v675 = vld [vmem:[#allocation2 + $0x90] sm:$0xff]
    %v676 = vld [vmem:[#allocation2 + $0x98] sm:$0xff]
    %v677 = vld [vmem:[#allocation2 + $0xa0] sm:$0xff]
    %v678 = vld [vmem:[#allocation2 + $0xa8] sm:$0xff]
    %v679 = vld [vmem:[#allocation2 + $0xb0] sm:$0xff]
    %v680 = vld [vmem:[#allocation2 + $0xb8] sm:$0xff]
    %v681 = vld [vmem:[#allocation2 + $0xc0] sm:$0xff]
    %v682 = vld [vmem:[#allocation2 + $0xc8] sm:$0xff]
    %v683 = vld [vmem:[#allocation2 + $0xd0] sm:$0xff]
    %v684 = vld [vmem:[#allocation2 + $0xd8] sm:$0xff]
    %v685 = vld [vmem:[#allocation2 + $0xe0] sm:$0xff]
    %v686 = vld [vmem:[#allocation2 + $0xe8] sm:$0xff]
    %v687 = vld [vmem:[#allocation2 + $0xf0] sm:$0xff]
    %v688 = vld [vmem:[#allocation2 + $0xf8] sm:$0xff]
    %v689 = vld [vmem:[#allocation2 + $0x100] sm:$0xff]
    %v690 = vld [vmem:[#allocation2 + $0x108] sm:$0xff]
    %v691 = vld [vmem:[#allocation2 + $0x110] sm:$0xff]
    %v692 = vld [vmem:[#allocation2 + $0x118] sm:$0xff]
    %v693 = vld [vmem:[#allocation2 + $0x120] sm:$0xff]
    %v694 = vld [vmem:[#allocation2 + $0x128] sm:$0xff]
    %v695 = vld [vmem:[#allocation2 + $0x130] sm:$0xff]
    %v696 = vld [vmem:[#allocation2 + $0x138] sm:$0xff]
    %v697 = vld [vmem:[#allocation2 + $0x140] sm:$0xff]
    %v698 = vld [vmem:[#allocation2 + $0x148] sm:$0xff]
    %v699 = vld [vmem:[#allocation2 + $0x150] sm:$0xff]
    %v700 = vld [vmem:[#allocation2 + $0x158] sm:$0xff]
    %v701 = vld [vmem:[#allocation2 + $0x160] sm:$0xff]
    %v702 = vld [vmem:[#allocation2 + $0x168] sm:$0xff]
    %v703 = vld [vmem:[#allocation2 + $0x170] sm:$0xff]
    %v704 = vld [vmem:[#allocation2 + $0x178] sm:$0xff]
    %v705 = vld [vmem:[#allocation2 + $0x180] sm:$0xff]
    %v706 = vld [vmem:[#allocation2 + $0x188] sm:$0xff]
    %v707 = vld [vmem:[#allocation2 + $0x190] sm:$0xff]
    %v708 = vld [vmem:[#allocation2 + $0x198] sm:$0xff]
    %v709 = vld [vmem:[#allocation2 + $0x1a0] sm:$0xff]
    %v710 = vld [vmem:[#allocation2 + $0x1a8] sm:$0xff]
    %v711 = vld [vmem:[#allocation2 + $0x1b0] sm:$0xff]
    %v712 = vld [vmem:[#allocation2 + $0x1b8] sm:$0xff]
    %v713 = vld [vmem:[#allocation2 + $0x1c0] sm:$0xff]
    %v714 = vld [vmem:[#allocation2 + $0x1c8] sm:$0xff]
    %v715 = vld [vmem:[#allocation2 + $0x1d0] sm:$0xff]
    %v716 = vld [vmem:[#allocation2 + $0x1d8] sm:$0xff]
    %v717 = vld [vmem:[#allocation2 + $0x1e0] sm:$0xff]
    %v718 = vld [vmem:[#allocation2 + $0x1e8] sm:$0xff]
    %v719 = vld [vmem:[#allocation2 + $0x1f0] sm:$0xff]
    %v720 = vld [vmem:[#allocation2 + $0x1f8] sm:$0xff]
    %v721 = vld [vmem:[#allocation2 + $0x200] sm:$0xff]
    %v722 = vld [vmem:[#allocation2 + $0x208] sm:$0xff]
    %v723 = vld [vmem:[#allocation2 + $0x210] sm:$0xff]
    %v724 = vld [vmem:[#allocation2 + $0x218] sm:$0xff]
    %v725 = vld [vmem:[#allocation2 + $0x220] sm:$0xff]
    %v726 = vld [vmem:[#allocation2 + $0x228] sm:$0xff]
    %v727 = vld [vmem:[#allocation2 + $0x230] sm:$0xff]
    %v728 = vld [vmem:[#allocation2 + $0x238] sm:$0xff]
    %v729 = vld [vmem:[#allocation2 + $0x240] sm:$0xff]
    %v730 = vld [vmem:[#allocation2 + $0x248] sm:$0xff]
    %v731 = vld [vmem:[#allocation2 + $0x250] sm:$0xff]
    %v732 = vld [vmem:[#allocation2 + $0x258] sm:$0xff]
    %v733 = vld [vmem:[#allocation2 + $0x260] sm:$0xff]
    %v734 = vld [vmem:[#allocation2 + $0x268] sm:$0xff]
    %v735 = vld [vmem:[#allocation2 + $0x270] sm:$0xff]
    %v736 = vld [vmem:[#allocation2 + $0x278] sm:$0xff]
    %v737 = vld [vmem:[#allocation2 + $0x280] sm:$0xff]
    %v738 = vld [vmem:[#allocation2 + $0x288] sm:$0xff]
    %v739 = vld [vmem:[#allocation2 + $0x290] sm:$0xff]
    %v740 = vld [vmem:[#allocation2 + $0x298] sm:$0xff]
    %v741 = vld [vmem:[#allocation2 + $0x2a0] sm:$0xff]
    %v742 = vld [vmem:[#allocation2 + $0x2a8] sm:$0xff]
    %v743 = vld [vmem:[#allocation2 + $0x2b0] sm:$0xff]
    %v744 = vld [vmem:[#allocation2 + $0x2b8] sm:$0xff]
    %v745 = vld [vmem:[#allocation2 + $0x2c0] sm:$0xff]
    %v746 = vld [vmem:[#allocation2 + $0x2c8] sm:$0xff]
    %v747 = vld [vmem:[#allocation2 + $0x2d0] sm:$0xff]
    %v748 = vld [vmem:[#allocation2 + $0x2d8] sm:$0xff]
    %v749 = vld [vmem:[#allocation2 + $0x2e0] sm:$0xff]
    %v750 = vld [vmem:[#allocation2 + $0x2e8] sm:$0xff]
    %v751 = vld [vmem:[#allocation2 + $0x2f0] sm:$0xff]
    %v752 = vld [vmem:[#allocation2 + $0x2f8] sm:$0xff]
    %v753 = vld [vmem:[#allocation2 + $0x300] sm:$0xff]
    %v754 = vld [vmem:[#allocation2 + $0x308] sm:$0xff]
    %v755 = vld [vmem:[#allocation2 + $0x310] sm:$0xff]
    %v756 = vld [vmem:[#allocation2 + $0x318] sm:$0xff]
    %v757 = vld [vmem:[#allocation2 + $0x320] sm:$0xff]
    %v758 = vld [vmem:[#allocation2 + $0x328] sm:$0xff]
    %v759 = vld [vmem:[#allocation2 + $0x330] sm:$0xff]
    %v760 = vld [vmem:[#allocation2 + $0x338] sm:$0xff]
    %v761 = vld [vmem:[#allocation2 + $0x340] sm:$0xff]
    %v762 = vld [vmem:[#allocation2 + $0x348] sm:$0xff]
    %v763 = vld [vmem:[#allocation2 + $0x350] sm:$0xff]
    %v764 = vld [vmem:[#allocation2 + $0x358] sm:$0xff]
    %v765 = vld [vmem:[#allocation2 + $0x360] sm:$0xff]
    %v766 = vld [vmem:[#allocation2 + $0x368] sm:$0xff]
    %v767 = vld [vmem:[#allocation2 + $0x370] sm:$0xff]
    %v768 = vld [vmem:[#allocation2 + $0x378] sm:$0xff]
    %v769 = vld [vmem:[#allocation2 + $0x380] sm:$0xff]
    %v770 = vld [vmem:[#allocation2 + $0x388] sm:$0xff]
    %v771 = vld [vmem:[#allocation2 + $0x390] sm:$0xff]
    %v772 = vld [vmem:[#allocation2 + $0x398] sm:$0xff]
    %v773 = vld [vmem:[#allocation2 + $0x3a0] sm:$0xff]
    %v774 = vld [vmem:[#allocation2 + $0x3a8] sm:$0xff]
    %v775 = vld [vmem:[#allocation2 + $0x3b0] sm:$0xff]
    %v776 = vld [vmem:[#allocation2 + $0x3b8] sm:$0xff]
    %v777 = vld [vmem:[#allocation2 + $0x3c0] sm:$0xff]
    %v778 = vld [vmem:[#allocation2 + $0x3c8] sm:$0xff]
    %v779 = vld [vmem:[#allocation2 + $0x3d0] sm:$0xff]
    %v780 = vld [vmem:[#allocation2 + $0x3d8] sm:$0xff]
    %v781 = vld [vmem:[#allocation2 + $0x3e0] sm:$0xff]
    %v782 = vld [vmem:[#allocation2 + $0x3e8] sm:$0xff]
    %v783 = vld [vmem:[#allocation2 + $0x3f0] sm:$0xff]
    %v784 = vld [vmem:[#allocation2 + $0x3f8] sm:$0xff]
    %785 = vmatprep.subr.mxu0 %v718
    %786 = vmatpush1.msra.mxu0 %v717
    %787 = vmatprep.subr.mxu0 %v714
    %788 = vmatpush1.msra.mxu0 %v713
    %789 = vmatprep.subr.mxu0 %v710
    %790 = vmatpush1.msra.mxu0 %v709
    %791 = vmatprep.subr.mxu0 %v706
    %792 = vmatpush1.msra.mxu0 %v705
    %793 = vmatprep.subr.mxu0 %v702
    %794 = vmatpush1.msra.mxu0 %v701
    %795 = vmatprep.subr.mxu0 %v698
    %796 = vmatpush1.msra.mxu0 %v697
    %797 = vmatprep.subr.mxu0 %v694
    %798 = vmatpush1.msra.mxu0 %v693
    %799 = vmatprep.subr.mxu0 %v690
    %800 = vmatpush1.msra.mxu0 %v689
    %801 = vmatprep.subr.mxu0 %v686
    %802 = vmatpush1.msra.mxu0 %v685
    %803 = vmatprep.subr.mxu0 %v682
    %804 = vmatpush1.msra.mxu0 %v681
    %805 = vmatprep.subr.mxu0 %v678
    %806 = vmatpush1.msra.mxu0 %v677
    %807 = vmatprep.subr.mxu0 %v674
    %808 = vmatpush1.msra.mxu0 %v673
    %809 = vmatprep.subr.mxu0 %v670
    %810 = vmatpush1.msra.mxu0 %v669
    %811 = vmatprep.subr.mxu0 %v666
    %812 = vmatpush1.msra.mxu0 %v665
    %813 = vmatprep.subr.mxu0 %v662
    %814 = vmatpush1.msra.mxu0 %v661
    %815 = vmatprep.subr.mxu0 %v658
    %816 = vmatpush1.msra.mxu0 %v657
    %817 = vmatprep.subr.mxu0 %v782
    %818 = vmatpush2.msra.mxu0 %v781
    %819 = vmatprep.subr.mxu0 %v778
    %820 = vmatpush2.msra.mxu0 %v777
    %821 = vmatprep.subr.mxu0 %v774
    %822 = vmatpush2.msra.mxu0 %v773
    %823 = vmatprep.subr.mxu0 %v770
    %824 = vmatpush2.msra.mxu0 %v769
    %825 = vmatprep.subr.mxu0 %v766
    %826 = vmatpush2.msra.mxu0 %v765
    %827 = vmatprep.subr.mxu0 %v762
    %828 = vmatpush2.msra.mxu0 %v761
    %829 = vmatprep.subr.mxu0 %v758
    %830 = vmatpush2.msra.mxu0 %v757
    %831 = vmatprep.subr.mxu0 %v754
    %832 = vmatpush2.msra.mxu0 %v753
    %833 = vmatprep.subr.mxu0 %v750
    %834 = vmatpush2.msra.mxu0 %v749
    %835 = vmatprep.subr.mxu0 %v746
    %836 = vmatpush2.msra.mxu0 %v745
    %837 = vmatprep.subr.mxu0 %v742
    %838 = vmatpush2.msra.mxu0 %v741
    %839 = vmatprep.subr.mxu0 %v738
    %840 = vmatpush2.msra.mxu0 %v737
    %841 = vmatprep.subr.mxu0 %v734
    %842 = vmatpush2.msra.mxu0 %v733
    %843 = vmatprep.subr.mxu0 %v730
    %844 = vmatpush2.msra.mxu0 %v729
    %845 = vmatprep.subr.mxu0 %v726
    %846 = vmatpush2.msra.mxu0 %v725
    %847 = vmatprep.subr.mxu0 %v722
    %848 = vmatpush2.msra.mxu0 %v721
    %849 = vmatprep.mubr.f32.mxu0 %v656
    %850 = vmatmul.mubr.f32.gmra.mxu0 %v655
    %v851 = vpop.f32.mrf.mxu0
    %v852 = vadd.f32 0.0, %v851
    %v853 = vpop.f32.mrf.mxu0
    %v854 = vadd.f32 0.0, %v853
    %855 = vdwg.mxu0
    %856 = vmatprep.subr.mxu0 %v720
    %857 = vmatpush1.msra.mxu0 %v719
    %858 = vmatprep.subr.mxu0 %v716
    %859 = vmatpush1.msra.mxu0 %v715
    %860 = vmatprep.subr.mxu0 %v712
    %861 = vmatpush1.msra.mxu0 %v711
    %862 = vmatprep.subr.mxu0 %v708
    %863 = vmatpush1.msra.mxu0 %v707
    %864 = vmatprep.subr.mxu0 %v704
    %865 = vmatpush1.msra.mxu0 %v703
    %866 = vmatprep.subr.mxu0 %v700
    %867 = vmatpush1.msra.mxu0 %v699
    %868 = vmatprep.subr.mxu0 %v696
    %869 = vmatpush1.msra.mxu0 %v695
    %870 = vmatprep.subr.mxu0 %v692
    %871 = vmatpush1.msra.mxu0 %v691
    %872 = vmatprep.subr.mxu0 %v688
    %873 = vmatpush1.msra.mxu0 %v687
    %874 = vmatprep.subr.mxu0 %v684
    %875 = vmatpush1.msra.mxu0 %v683
    %876 = vmatprep.subr.mxu0 %v680
    %877 = vmatpush1.msra.mxu0 %v679
    %878 = vmatprep.subr.mxu0 %v676
    %879 = vmatpush1.msra.mxu0 %v675
    %880 = vmatprep.subr.mxu0 %v672
    %881 = vmatpush1.msra.mxu0 %v671
    %882 = vmatprep.subr.mxu0 %v668
    %883 = vmatpush1.msra.mxu0 %v667
    %884 = vmatprep.subr.mxu0 %v664
    %885 = vmatpush1.msra.mxu0 %v663
    %886 = vmatprep.subr.mxu0 %v660
    %887 = vmatpush1.msra.mxu0 %v659
    %888 = vmatprep.subr.mxu0 %v784
    %889 = vmatpush2.msra.mxu0 %v783
    %890 = vmatprep.subr.mxu0 %v780
    %891 = vmatpush2.msra.mxu0 %v779
    %892 = vmatprep.subr.mxu0 %v776
    %893 = vmatpush2.msra.mxu0 %v775
    %894 = vmatprep.subr.mxu0 %v772
    %895 = vmatpush2.msra.mxu0 %v771
    %896 = vmatprep.subr.mxu0 %v768
    %897 = vmatpush2.msra.mxu0 %v767
    %898 = vmatprep.subr.mxu0 %v764
    %899 = vmatpush2.msra.mxu0 %v763
    %900 = vmatprep.subr.mxu0 %v760
    %901 = vmatpush2.msra.mxu0 %v759
    %902 = vmatprep.subr.mxu0 %v756
    %903 = vmatpush2.msra.mxu0 %v755
    %904 = vmatprep.subr.mxu0 %v752
    %905 = vmatpush2.msra.mxu0 %v751
    %906 = vmatprep.subr.mxu0 %v748
    %907 = vmatpush2.msra.mxu0 %v747
    %908 = vmatprep.subr.mxu0 %v744
    %909 = vmatpush2.msra.mxu0 %v743
    %910 = vmatprep.subr.mxu0 %v740
    %911 = vmatpush2.msra.mxu0 %v739
    %912 = vmatprep.subr.mxu0 %v736
    %913 = vmatpush2.msra.mxu0 %v735
    %914 = vmatprep.subr.mxu0 %v732
    %915 = vmatpush2.msra.mxu0 %v731
    %916 = vmatprep.subr.mxu0 %v728
    %917 = vmatpush2.msra.mxu0 %v727
    %918 = vmatprep.subr.mxu0 %v724
    %919 = vmatpush2.msra.mxu0 %v723
    %920 = vmatprep.mubr.f32.mxu0 %v656
    %921 = vmatmul.mubr.f32.gmra.mxu0 %v655
    %v922 = vpop.f32.mrf.mxu0
    %v923 = vadd.f32 0.0, %v922
    %v924 = vpop.f32.mrf.mxu0
    %v925 = vadd.f32 0.0, %v924
    %926 = vdwg.mxu0
    %v927 = vadd.f32 %v852, %v854
    %v928 = vadd.f32 %v927, %v923
    %v929 = vadd.f32 %v928, %v925
    %930 = vadd.xlane.f32.xlu0 %v929
    %v931 = vpop.xlane.xlu0 %930
    %v932 = vmul.f32 %v852, %v852
    %v933 = vmul.f32 %v854, %v854
    %v934 = vmul.f32 %v923, %v923
    %v935 = vmul.f32 %v925, %v925
    %v936 = vadd.f32 %v932, %v933
    %v937 = vadd.f32 %v936, %v934
    %v938 = vadd.f32 %v937, %v935
    %939 = vadd.xlane.f32.xlu0 %v938
    %v940 = vpop.xlane.xlu0 %939
    %v941 = vmul.f32 %v931, 0.001953125
    %v942 = vmul.f32 %v940, 0.001953125
    %v943 = vmul.f32 %v941, %v941
    %v944 = vsub.f32 %v942, %v943
    %v945 = vld [vmem:[%s3] sm:$0xff]
    %v946 = vadd.f32 %v944, 1e-05
    %v947 = vrsqrt.pop %v946
    %v948 = vmul.f32 %v945, %v947
    %v949 = vld [vmem:[%s4] sm:$0xff]
    %v950 = vmul.f32 %v941, %v948
    %v951 = vsub.f32 %v949, %v950
    %953 = vset.pattern.permute.xlu0 0
    %954 = vperm.xlu0 %953, %v948
    %v955 = vpop.permute.xlu0 %954
    %v957 = vmul.f32 %v852, %v955
    %v958 = vmul.f32 %v854, %v955
    %v959 = vmul.f32 %v923, %v955
    %v960 = vmul.f32 %v925, %v955
    %962 = vset.pattern.permute.xlu0 0
    %963 = vperm.xlu0 %962, %v951
    %v964 = vpop.permute.xlu0 %963
    %v966 = vadd.f32 %v957, %v964
    %v967 = vadd.f32 %v958, %v964
    %v968 = vadd.f32 %v959, %v964
    %v969 = vadd.f32 %v960, %v964
    %v970 = vmul.f32 %v966, 0.01
    %v971 = vmul.f32 %v967, 0.01
    %v972 = vmul.f32 %v968, 0.01
    %v973 = vmul.f32 %v969, 0.01
    %v974 = vmax.f32 %v966, %v970
    %v975 = vmax.f32 %v967, %v971
    %v976 = vmax.f32 %v968, %v972
    %v977 = vmax.f32 %v969, %v973
    %978 = vrot.lane.b32.xlu0 %v974, 73
    %v979 = vpop.permute.xlu0 %978
    %980 = vrot.lane.b32.xlu0 %v975, 73
    %v981 = vpop.permute.xlu0 %980
    %982 = vrot.lane.b32.xlu0 %v976, 73
    %v983 = vpop.permute.xlu0 %982
    %984 = vrot.lane.b32.xlu0 %v977, 73
    %v985 = vpop.permute.xlu0 %984
    %v986 = vsel %vm101, %v983, %v985
    %v987 = vsel %vm101, %v981, %v983
    %v988 = vsel %vm101, %v979, %v981
    %v989 = vsel %vm101, %v985, %v979
    %v990 = vld [vmem:[#allocation3] sm:$0xff]
    %v991 = vld [vmem:[#allocation3 + $0x8] sm:$0xff]
    %v992 = vld [vmem:[#allocation3 + $0x10] sm:$0xff]
    %v993 = vld [vmem:[#allocation3 + $0x18] sm:$0xff]
    %v994 = vmul.f32 %v989, %v990
    %v995 = vmul.f32 %v988, %v991
    %v996 = vmul.f32 %v987, %v992
    %v997 = vmul.f32 %v986, %v993
    %998 = vst [vmem:[#allocation2] sm:$0xff] %v994
    %999 = vst [vmem:[#allocation2 + $0x8] sm:$0xff] %v995
    %1000 = vst [vmem:[#allocation2 + $0x10] sm:$0xff] %v996
    %1001 = vst [vmem:[#allocation2 + $0x18] sm:$0xff] %v997
    %1002 = vrot.lane.b32.xlu0 %v974, 72
    %v1003 = vpop.permute.xlu0 %1002
    %1004 = vrot.lane.b32.xlu0 %v975, 72
    %v1005 = vpop.permute.xlu0 %1004
    %1006 = vrot.lane.b32.xlu0 %v976, 72
    %v1007 = vpop.permute.xlu0 %1006
    %1008 = vrot.lane.b32.xlu0 %v977, 72
    %v1009 = vpop.permute.xlu0 %1008
    %v1010 = vsel %vm126, %v1007, %v1009
    %v1011 = vsel %vm126, %v1005, %v1007
    %v1012 = vsel %vm126, %v1003, %v1005
    %v1013 = vsel %vm126, %v1009, %v1003
    %v1014 = vld [vmem:[%s131] sm:$0xff]
    %v1015 = vld [vmem:[%s131 + $0x8] sm:$0xff]
    %v1016 = vld [vmem:[%s131 + $0x10] sm:$0xff]
    %v1017 = vld [vmem:[%s131 + $0x18] sm:$0xff]
    %v1018 = vmul.f32 %v1013, %v1014
    %v1019 = vmul.f32 %v1012, %v1015
    %v1020 = vmul.f32 %v1011, %v1016
    %v1021 = vmul.f32 %v1010, %v1017
    %1022 = vst [vmem:[#allocation2 + $0x20] sm:$0xff] %v1018
    %1023 = vst [vmem:[#allocation2 + $0x28] sm:$0xff] %v1019
    %1024 = vst [vmem:[#allocation2 + $0x30] sm:$0xff] %v1020
    %1025 = vst [vmem:[#allocation2 + $0x38] sm:$0xff] %v1021
    %1026 = vrot.lane.b32.xlu0 %v974, 71
    %v1027 = vpop.permute.xlu0 %1026
    %1028 = vrot.lane.b32.xlu0 %v975, 71
    %v1029 = vpop.permute.xlu0 %1028
    %1030 = vrot.lane.b32.xlu0 %v976, 71
    %v1031 = vpop.permute.xlu0 %1030
    %1032 = vrot.lane.b32.xlu0 %v977, 71
    %v1033 = vpop.permute.xlu0 %1032
    %v1034 = vsel %vm152, %v1031, %v1033
    %v1035 = vsel %vm152, %v1029, %v1031
    %v1036 = vsel %vm152, %v1027, %v1029
    %v1037 = vsel %vm152, %v1033, %v1027
    %v1038 = vld [vmem:[%s157] sm:$0xff]
    %v1039 = vld [vmem:[%s157 + $0x8] sm:$0xff]
    %v1040 = vld [vmem:[%s157 + $0x10] sm:$0xff]
    %v1041 = vld [vmem:[%s157 + $0x18] sm:$0xff]
    %v1042 = vmul.f32 %v1037, %v1038
    %v1043 = vmul.f32 %v1036, %v1039
    %v1044 = vmul.f32 %v1035, %v1040
    %v1045 = vmul.f32 %v1034, %v1041
    %1046 = vst [vmem:[#allocation2 + $0x40] sm:$0xff] %v1042
    %1047 = vst [vmem:[#allocation2 + $0x48] sm:$0xff] %v1043
    %1048 = vst [vmem:[#allocation2 + $0x50] sm:$0xff] %v1044
    %1049 = vst [vmem:[#allocation2 + $0x58] sm:$0xff] %v1045
    %1050 = vrot.lane.b32.xlu0 %v974, 65
    %v1051 = vpop.permute.xlu0 %1050
    %1052 = vrot.lane.b32.xlu0 %v975, 65
    %v1053 = vpop.permute.xlu0 %1052
    %1054 = vrot.lane.b32.xlu0 %v976, 65
    %v1055 = vpop.permute.xlu0 %1054
    %1056 = vrot.lane.b32.xlu0 %v977, 65
    %v1057 = vpop.permute.xlu0 %1056
    %v1058 = vsel %vm178, %v1055, %v1057
    %v1059 = vsel %vm178, %v1053, %v1055
    %v1060 = vsel %vm178, %v1051, %v1053
    %v1061 = vsel %vm178, %v1057, %v1051
    %v1062 = vld [vmem:[%s183] sm:$0xff]
    %v1063 = vld [vmem:[%s183 + $0x8] sm:$0xff]
    %v1064 = vld [vmem:[%s183 + $0x10] sm:$0xff]
    %v1065 = vld [vmem:[%s183 + $0x18] sm:$0xff]
    %v1066 = vmul.f32 %v1061, %v1062
    %v1067 = vmul.f32 %v1060, %v1063
    %v1068 = vmul.f32 %v1059, %v1064
    %v1069 = vmul.f32 %v1058, %v1065
    %1070 = vst [vmem:[#allocation2 + $0x60] sm:$0xff] %v1066
    %1071 = vst [vmem:[#allocation2 + $0x68] sm:$0xff] %v1067
    %1072 = vst [vmem:[#allocation2 + $0x70] sm:$0xff] %v1068
    %1073 = vst [vmem:[#allocation2 + $0x78] sm:$0xff] %v1069
    %1074 = vrot.lane.b32.xlu0 %v974, 64
    %v1075 = vpop.permute.xlu0 %1074
    %1076 = vrot.lane.b32.xlu0 %v975, 64
    %v1077 = vpop.permute.xlu0 %1076
    %1078 = vrot.lane.b32.xlu0 %v976, 64
    %v1079 = vpop.permute.xlu0 %1078
    %1080 = vrot.lane.b32.xlu0 %v977, 64
    %v1081 = vpop.permute.xlu0 %1080
    %v1082 = vsel %vm204, %v1079, %v1081
    %v1083 = vsel %vm204, %v1077, %v1079
    %v1084 = vsel %vm204, %v1075, %v1077
    %v1085 = vsel %vm204, %v1081, %v1075
    %v1086 = vld [vmem:[%s209] sm:$0xff]
    %v1087 = vld [vmem:[%s209 + $0x8] sm:$0xff]
    %v1088 = vld [vmem:[%s209 + $0x10] sm:$0xff]
    %v1089 = vld [vmem:[%s209 + $0x18] sm:$0xff]
    %v1090 = vmul.f32 %v1085, %v1086
    %v1091 = vmul.f32 %v1084, %v1087
    %v1092 = vmul.f32 %v1083, %v1088
    %v1093 = vmul.f32 %v1082, %v1089
    %1094 = vst [vmem:[#allocation2 + $0x80] sm:$0xff] %v1090
    %1095 = vst [vmem:[#allocation2 + $0x88] sm:$0xff] %v1091
    %1096 = vst [vmem:[#allocation2 + $0x90] sm:$0xff] %v1092
    %1097 = vst [vmem:[#allocation2 + $0x98] sm:$0xff] %v1093
    %1098 = vrot.lane.b32.xlu0 %v974, 63
    %v1099 = vpop.permute.xlu0 %1098
    %1100 = vrot.lane.b32.xlu0 %v975, 63
    %v1101 = vpop.permute.xlu0 %1100
    %1102 = vrot.lane.b32.xlu0 %v976, 63
    %v1103 = vpop.permute.xlu0 %1102
    %1104 = vrot.lane.b32.xlu0 %v977, 63
    %v1105 = vpop.permute.xlu0 %1104
    %v1106 = vsel %vm230, %v1103, %v1105
    %v1107 = vsel %vm230, %v1101, %v1103
    %v1108 = vsel %vm230, %v1099, %v1101
    %v1109 = vsel %vm230, %v1105, %v1099
    %v1110 = vld [vmem:[%s235] sm:$0xff]
    %v1111 = vld [vmem:[%s235 + $0x8] sm:$0xff]
    %v1112 = vld [vmem:[%s235 + $0x10] sm:$0xff]
    %v1113 = vld [vmem:[%s235 + $0x18] sm:$0xff]
    %v1114 = vmul.f32 %v1109, %v1110
    %v1115 = vmul.f32 %v1108, %v1111
    %v1116 = vmul.f32 %v1107, %v1112
    %v1117 = vmul.f32 %v1106, %v1113
    %1118 = vst [vmem:[#allocation2 + $0xa0] sm:$0xff] %v1114
    %1119 = vst [vmem:[#allocation2 + $0xa8] sm:$0xff] %v1115
    %1120 = vst [vmem:[#allocation2 + $0xb0] sm:$0xff] %v1116
    %1121 = vst [vmem:[#allocation2 + $0xb8] sm:$0xff] %v1117
    %1122 = vrot.lane.b32.xlu0 %v974, 57
    %v1123 = vpop.permute.xlu0 %1122
    %1124 = vrot.lane.b32.xlu0 %v975, 57
    %v1125 = vpop.permute.xlu0 %1124
    %1126 = vrot.lane.b32.xlu0 %v976, 57
    %v1127 = vpop.permute.xlu0 %1126
    %1128 = vrot.lane.b32.xlu0 %v977, 57
    %v1129 = vpop.permute.xlu0 %1128
    %v1130 = vsel %vm256, %v1127, %v1129
    %v1131 = vsel %vm256, %v1125, %v1127
    %v1132 = vsel %vm256, %v1123, %v1125
    %v1133 = vsel %vm256, %v1129, %v1123
    %v1134 = vld [vmem:[%s261] sm:$0xff]
    %v1135 = vld [vmem:[%s261 + $0x8] sm:$0xff]
    %v1136 = vld [vmem:[%s261 + $0x10] sm:$0xff]
    %v1137 = vld [vmem:[%s261 + $0x18] sm:$0xff]
    %v1138 = vmul.f32 %v1133, %v1134
    %v1139 = vmul.f32 %v1132, %v1135
    %v1140 = vmul.f32 %v1131, %v1136
    %v1141 = vmul.f32 %v1130, %v1137
    %1142 = vst [vmem:[#allocation2 + $0xc0] sm:$0xff] %v1138
    %1143 = vst [vmem:[#allocation2 + $0xc8] sm:$0xff] %v1139
    %1144 = vst [vmem:[#allocation2 + $0xd0] sm:$0xff] %v1140
    %1145 = vst [vmem:[#allocation2 + $0xd8] sm:$0xff] %v1141
    %1146 = vrot.lane.b32.xlu0 %v974, 56
    %v1147 = vpop.permute.xlu0 %1146
    %1148 = vrot.lane.b32.xlu0 %v975, 56
    %v1149 = vpop.permute.xlu0 %1148
    %1150 = vrot.lane.b32.xlu0 %v976, 56
    %v1151 = vpop.permute.xlu0 %1150
    %1152 = vrot.lane.b32.xlu0 %v977, 56
    %v1153 = vpop.permute.xlu0 %1152
    %v1154 = vsel %vm282, %v1151, %v1153
    %v1155 = vsel %vm282, %v1149, %v1151
    %v1156 = vsel %vm282, %v1147, %v1149
    %v1157 = vsel %vm282, %v1153, %v1147
    %v1158 = vld [vmem:[%s287] sm:$0xff]
    %v1159 = vld [vmem:[%s287 + $0x8] sm:$0xff]
    %v1160 = vld [vmem:[%s287 + $0x10] sm:$0xff]
    %v1161 = vld [vmem:[%s287 + $0x18] sm:$0xff]
    %v1162 = vmul.f32 %v1157, %v1158
    %v1163 = vmul.f32 %v1156, %v1159
    %v1164 = vmul.f32 %v1155, %v1160
    %v1165 = vmul.f32 %v1154, %v1161
    %1166 = vst [vmem:[#allocation2 + $0xe0] sm:$0xff] %v1162
    %1167 = vst [vmem:[#allocation2 + $0xe8] sm:$0xff] %v1163
    %1168 = vst [vmem:[#allocation2 + $0xf0] sm:$0xff] %v1164
    %1169 = vst [vmem:[#allocation2 + $0xf8] sm:$0xff] %v1165
    %1170 = vrot.lane.b32.xlu0 %v974, 55
    %v1171 = vpop.permute.xlu0 %1170
    %1172 = vrot.lane.b32.xlu0 %v975, 55
    %v1173 = vpop.permute.xlu0 %1172
    %1174 = vrot.lane.b32.xlu0 %v976, 55
    %v1175 = vpop.permute.xlu0 %1174
    %1176 = vrot.lane.b32.xlu0 %v977, 55
    %v1177 = vpop.permute.xlu0 %1176
    %v1178 = vsel %vm308, %v1175, %v1177
    %v1179 = vsel %vm308, %v1173, %v1175
    %v1180 = vsel %vm308, %v1171, %v1173
    %v1181 = vsel %vm308, %v1177, %v1171
    %v1182 = vld [vmem:[%s313] sm:$0xff]
    %v1183 = vld [vmem:[%s313 + $0x8] sm:$0xff]
    %v1184 = vld [vmem:[%s313 + $0x10] sm:$0xff]
    %v1185 = vld [vmem:[%s313 + $0x18] sm:$0xff]
    %v1186 = vmul.f32 %v1181, %v1182
    %v1187 = vmul.f32 %v1180, %v1183
    %v1188 = vmul.f32 %v1179, %v1184
    %v1189 = vmul.f32 %v1178, %v1185
    %1190 = vst [vmem:[#allocation2 + $0x100] sm:$0xff] %v1186
    %1191 = vst [vmem:[#allocation2 + $0x108] sm:$0xff] %v1187
    %1192 = vst [vmem:[#allocation2 + $0x110] sm:$0xff] %v1188
    %1193 = vst [vmem:[#allocation2 + $0x118] sm:$0xff] %v1189
    %1194 = vrot.lane.b32.xlu0 %v974, 9
    %v1195 = vpop.permute.xlu0 %1194
    %1196 = vrot.lane.b32.xlu0 %v975, 9
    %v1197 = vpop.permute.xlu0 %1196
    %1198 = vrot.lane.b32.xlu0 %v976, 9
    %v1199 = vpop.permute.xlu0 %1198
    %1200 = vrot.lane.b32.xlu0 %v977, 9
    %v1201 = vpop.permute.xlu0 %1200
    %v1202 = vsel %vm334, %v1199, %v1201
    %v1203 = vsel %vm334, %v1197, %v1199
    %v1204 = vsel %vm334, %v1195, %v1197
    %v1205 = vsel %vm334, %v1201, %v1195
    %v1206 = vld [vmem:[%s339] sm:$0xff]
    %v1207 = vld [vmem:[%s339 + $0x8] sm:$0xff]
    %v1208 = vld [vmem:[%s339 + $0x10] sm:$0xff]
    %v1209 = vld [vmem:[%s339 + $0x18] sm:$0xff]
    %v1210 = vmul.f32 %v1205, %v1206
    %v1211 = vmul.f32 %v1204, %v1207
    %v1212 = vmul.f32 %v1203, %v1208
    %v1213 = vmul.f32 %v1202, %v1209
    %1214 = vst [vmem:[#allocation2 + $0x120] sm:$0xff] %v1210
    %1215 = vst [vmem:[#allocation2 + $0x128] sm:$0xff] %v1211
    %1216 = vst [vmem:[#allocation2 + $0x130] sm:$0xff] %v1212
    %1217 = vst [vmem:[#allocation2 + $0x138] sm:$0xff] %v1213
    %1218 = vrot.lane.b32.xlu0 %v974, 8
    %v1219 = vpop.permute.xlu0 %1218
    %1220 = vrot.lane.b32.xlu0 %v975, 8
    %v1221 = vpop.permute.xlu0 %1220
    %1222 = vrot.lane.b32.xlu0 %v976, 8
    %v1223 = vpop.permute.xlu0 %1222
    %1224 = vrot.lane.b32.xlu0 %v977, 8
    %v1225 = vpop.permute.xlu0 %1224
    %v1226 = vsel %vm360, %v1223, %v1225
    %v1227 = vsel %vm360, %v1221, %v1223
    %v1228 = vsel %vm360, %v1219, %v1221
    %v1229 = vsel %vm360, %v1225, %v1219
    %v1230 = vld [vmem:[%s365] sm:$0xff]
    %v1231 = vld [vmem:[%s365 + $0x8] sm:$0xff]
    %v1232 = vld [vmem:[%s365 + $0x10] sm:$0xff]
    %v1233 = vld [vmem:[%s365 + $0x18] sm:$0xff]
    %v1234 = vmul.f32 %v1229, %v1230
    %v1235 = vmul.f32 %v1228, %v1231
    %v1236 = vmul.f32 %v1227, %v1232
    %v1237 = vmul.f32 %v1226, %v1233
    %1238 = vst [vmem:[#allocation2 + $0x140] sm:$0xff] %v1234
    %1239 = vst [vmem:[#allocation2 + $0x148] sm:$0xff] %v1235
    %1240 = vst [vmem:[#allocation2 + $0x150] sm:$0xff] %v1236
    %1241 = vst [vmem:[#allocation2 + $0x158] sm:$0xff] %v1237
    %1242 = vrot.lane.b32.xlu0 %v974, 7
    %v1243 = vpop.permute.xlu0 %1242
    %1244 = vrot.lane.b32.xlu0 %v975, 7
    %v1245 = vpop.permute.xlu0 %1244
    %1246 = vrot.lane.b32.xlu0 %v976, 7
    %v1247 = vpop.permute.xlu0 %1246
    %1248 = vrot.lane.b32.xlu0 %v977, 7
    %v1249 = vpop.permute.xlu0 %1248
    %v1250 = vsel %vm386, %v1247, %v1249
    %v1251 = vsel %vm386, %v1245, %v1247
    %v1252 = vsel %vm386, %v1243, %v1245
    %v1253 = vsel %vm386, %v1249, %v1243
    %v1254 = vld [vmem:[%s391] sm:$0xff]
    %v1255 = vld [vmem:[%s391 + $0x8] sm:$0xff]
    %v1256 = vld [vmem:[%s391 + $0x10] sm:$0xff]
    %v1257 = vld [vmem:[%s391 + $0x18] sm:$0xff]
    %v1258 = vmul.f32 %v1253, %v1254
    %v1259 = vmul.f32 %v1252, %v1255
    %v1260 = vmul.f32 %v1251, %v1256
    %v1261 = vmul.f32 %v1250, %v1257
    %1262 = vst [vmem:[#allocation2 + $0x160] sm:$0xff] %v1258
    %1263 = vst [vmem:[#allocation2 + $0x168] sm:$0xff] %v1259
    %1264 = vst [vmem:[#allocation2 + $0x170] sm:$0xff] %v1260
    %1265 = vst [vmem:[#allocation2 + $0x178] sm:$0xff] %v1261
    %1266 = vrot.lane.b32.xlu0 %v974, 1
    %v1267 = vpop.permute.xlu0 %1266
    %1268 = vrot.lane.b32.xlu0 %v975, 1
    %v1269 = vpop.permute.xlu0 %1268
    %1270 = vrot.lane.b32.xlu0 %v976, 1
    %v1271 = vpop.permute.xlu0 %1270
    %1272 = vrot.lane.b32.xlu0 %v977, 1
    %v1273 = vpop.permute.xlu0 %1272
    %v1274 = vsel %vm412, %v1271, %v1273
    %v1275 = vsel %vm412, %v1269, %v1271
    %v1276 = vsel %vm412, %v1267, %v1269
    %v1277 = vsel %vm412, %v1273, %v1267
    %v1278 = vld [vmem:[%s417] sm:$0xff]
    %v1279 = vld [vmem:[%s417 + $0x8] sm:$0xff]
    %v1280 = vld [vmem:[%s417 + $0x10] sm:$0xff]
    %v1281 = vld [vmem:[%s417 + $0x18] sm:$0xff]
    %v1282 = vmul.f32 %v1277, %v1278
    %v1283 = vmul.f32 %v1276, %v1279
    %v1284 = vmul.f32 %v1275, %v1280
    %v1285 = vmul.f32 %v1274, %v1281
    %1286 = vst [vmem:[#allocation2 + $0x180] sm:$0xff] %v1282
    %1287 = vst [vmem:[#allocation2 + $0x188] sm:$0xff] %v1283
    %1288 = vst [vmem:[#allocation2 + $0x190] sm:$0xff] %v1284
    %1289 = vst [vmem:[#allocation2 + $0x198] sm:$0xff] %v1285
    %1290 = vst [vmem:[#allocation2 + $0x1a0] sm:$0xff] %v974
    %1291 = vst [vmem:[#allocation2 + $0x1a8] sm:$0xff] %v975
    %1292 = vst [vmem:[#allocation2 + $0x1b0] sm:$0xff] %v976
    %1293 = vst [vmem:[#allocation2 + $0x1b8] sm:$0xff] %v977
    %1294 = vrot.lane.b32.xlu0 %v974, 127
    %v1295 = vpop.permute.xlu0 %1294
    %1296 = vrot.lane.b32.xlu0 %v975, 127
    %v1297 = vpop.permute.xlu0 %1296
    %1298 = vrot.lane.b32.xlu0 %v976, 127
    %v1299 = vpop.permute.xlu0 %1298
    %1300 = vrot.lane.b32.xlu0 %v977, 127
    %v1301 = vpop.permute.xlu0 %1300
    %v1302 = vsel %vm442, %v1299, %v1301
    %v1303 = vsel %vm442, %v1297, %v1299
    %v1304 = vsel %vm442, %v1295, %v1297
    %v1305 = vsel %vm442, %v1301, %v1295
    %v1306 = vld [vmem:[%s447] sm:$0xff]
    %v1307 = vld [vmem:[%s447 + $0x8] sm:$0xff]
    %v1308 = vld [vmem:[%s447 + $0x10] sm:$0xff]
    %v1309 = vld [vmem:[%s447 + $0x18] sm:$0xff]
    %v1310 = vmul.f32 %v1304, %v1306
    %v1311 = vmul.f32 %v1303, %v1307
    %v1312 = vmul.f32 %v1302, %v1308
    %v1313 = vmul.f32 %v1305, %v1309
    %1314 = vst [vmem:[#allocation2 + $0x1c0] sm:$0xff] %v1310
    %1315 = vst [vmem:[#allocation2 + $0x1c8] sm:$0xff] %v1311
    %1316 = vst [vmem:[#allocation2 + $0x1d0] sm:$0xff] %v1312
    %1317 = vst [vmem:[#allocation2 + $0x1d8] sm:$0xff] %v1313
    %1318 = vrot.lane.b32.xlu0 %v974, 121
    %v1319 = vpop.permute.xlu0 %1318
    %1320 = vrot.lane.b32.xlu0 %v975, 121
    %v1321 = vpop.permute.xlu0 %1320
    %1322 = vrot.lane.b32.xlu0 %v976, 121
    %v1323 = vpop.permute.xlu0 %1322
    %1324 = vrot.lane.b32.xlu0 %v977, 121
    %v1325 = vpop.permute.xlu0 %1324
    %v1326 = vsel %vm468, %v1323, %v1325
    %v1327 = vsel %vm468, %v1321, %v1323
    %v1328 = vsel %vm468, %v1319, %v1321
    %v1329 = vsel %vm468, %v1325, %v1319
    %v1330 = vld [vmem:[%s473] sm:$0xff]
    %v1331 = vld [vmem:[%s473 + $0x8] sm:$0xff]
    %v1332 = vld [vmem:[%s473 + $0x10] sm:$0xff]
    %v1333 = vld [vmem:[%s473 + $0x18] sm:$0xff]
    %v1334 = vmul.f32 %v1328, %v1330
    %v1335 = vmul.f32 %v1327, %v1331
    %v1336 = vmul.f32 %v1326, %v1332
    %v1337 = vmul.f32 %v1329, %v1333
    %1338 = vst [vmem:[#allocation2 + $0x1e0] sm:$0xff] %v1334
    %1339 = vst [vmem:[#allocation2 + $0x1e8] sm:$0xff] %v1335
    %1340 = vst [vmem:[#allocation2 + $0x1f0] sm:$0xff] %v1336
    %1341 = vst [vmem:[#allocation2 + $0x1f8] sm:$0xff] %v1337
    %1342 = vrot.lane.b32.xlu0 %v974, 120
    %v1343 = vpop.permute.xlu0 %1342
    %1344 = vrot.lane.b32.xlu0 %v975, 120
    %v1345 = vpop.permute.xlu0 %1344
    %1346 = vrot.lane.b32.xlu0 %v976, 120
    %v1347 = vpop.permute.xlu0 %1346
    %1348 = vrot.lane.b32.xlu0 %v977, 120
    %v1349 = vpop.permute.xlu0 %1348
    %v1350 = vsel %vm494, %v1347, %v1349
    %v1351 = vsel %vm494, %v1345, %v1347
    %v1352 = vsel %vm494, %v1343, %v1345
    %v1353 = vsel %vm494, %v1349, %v1343
    %v1354 = vld [vmem:[%s499] sm:$0xff]
    %v1355 = vld [vmem:[%s499 + $0x8] sm:$0xff]
    %v1356 = vld [vmem:[%s499 + $0x10] sm:$0xff]
    %v1357 = vld [vmem:[%s499 + $0x18] sm:$0xff]
    %v1358 = vmul.f32 %v1352, %v1354
    %v1359 = vmul.f32 %v1351, %v1355
    %v1360 = vmul.f32 %v1350, %v1356
    %v1361 = vmul.f32 %v1353, %v1357
    %1362 = vst [vmem:[#allocation2 + $0x200] sm:$0xff] %v1358
    %1363 = vst [vmem:[#allocation2 + $0x208] sm:$0xff] %v1359
    %1364 = vst [vmem:[#allocation2 + $0x210] sm:$0xff] %v1360
    %1365 = vst [vmem:[#allocation2 + $0x218] sm:$0xff] %v1361
    %1366 = vrot.lane.b32.xlu0 %v974, 119
    %v1367 = vpop.permute.xlu0 %1366
    %1368 = vrot.lane.b32.xlu0 %v975, 119
    %v1369 = vpop.permute.xlu0 %1368
    %1370 = vrot.lane.b32.xlu0 %v976, 119
    %v1371 = vpop.permute.xlu0 %1370
    %1372 = vrot.lane.b32.xlu0 %v977, 119
    %v1373 = vpop.permute.xlu0 %1372
    %v1374 = vsel %vm520, %v1371, %v1373
    %v1375 = vsel %vm520, %v1369, %v1371
    %v1376 = vsel %vm520, %v1367, %v1369
    %v1377 = vsel %vm520, %v1373, %v1367
    %v1378 = vld [vmem:[%s525] sm:$0xff]
    %v1379 = vld [vmem:[%s525 + $0x8] sm:$0xff]
    %v1380 = vld [vmem:[%s525 + $0x10] sm:$0xff]
    %v1381 = vld [vmem:[%s525 + $0x18] sm:$0xff]
    %v1382 = vmul.f32 %v1376, %v1378
    %v1383 = vmul.f32 %v1375, %v1379
    %v1384 = vmul.f32 %v1374, %v1380
    %v1385 = vmul.f32 %v1377, %v1381
    %1386 = vst [vmem:[#allocation2 + $0x220] sm:$0xff] %v1382
    %1387 = vst [vmem:[#allocation2 + $0x228] sm:$0xff] %v1383
    %1388 = vst [vmem:[#allocation2 + $0x230] sm:$0xff] %v1384
    %1389 = vst [vmem:[#allocation2 + $0x238] sm:$0xff] %v1385
    %v1390 = vld [vmem:[%s538] sm:$0xff]
    %v1391 = vld [vmem:[%s538 + $0x8] sm:$0xff]
    %v1392 = vld [vmem:[%s538 + $0x10] sm:$0xff]
    %v1393 = vld [vmem:[%s538 + $0x18] sm:$0xff]
    %v1394 = vmul.f32 %v988, %v1390
    %v1395 = vmul.f32 %v987, %v1391
    %v1396 = vmul.f32 %v986, %v1392
    %v1397 = vmul.f32 %v989, %v1393
    %1398 = vst [vmem:[#allocation2 + $0x240] sm:$0xff] %v1394
    %1399 = vst [vmem:[#allocation2 + $0x248] sm:$0xff] %v1395
    %1400 = vst [vmem:[#allocation2 + $0x250] sm:$0xff] %v1396
    %1401 = vst [vmem:[#allocation2 + $0x258] sm:$0xff] %v1397
    %v1402 = vld [vmem:[%s551] sm:$0xff]
    %v1403 = vld [vmem:[%s551 + $0x8] sm:$0xff]
    %v1404 = vld [vmem:[%s551 + $0x10] sm:$0xff]
    %v1405 = vld [vmem:[%s551 + $0x18] sm:$0xff]
    %v1406 = vmul.f32 %v1012, %v1402
    %v1407 = vmul.f32 %v1011, %v1403
    %v1408 = vmul.f32 %v1010, %v1404
    %v1409 = vmul.f32 %v1013, %v1405
    %1410 = vst [vmem:[#allocation2 + $0x260] sm:$0xff] %v1406
    %1411 = vst [vmem:[#allocation2 + $0x268] sm:$0xff] %v1407
    %1412 = vst [vmem:[#allocation2 + $0x270] sm:$0xff] %v1408
    %1413 = vst [vmem:[#allocation2 + $0x278] sm:$0xff] %v1409
    %v1414 = vld [vmem:[%s564] sm:$0xff]
    %v1415 = vld [vmem:[%s564 + $0x8] sm:$0xff]
    %v1416 = vld [vmem:[%s564 + $0x10] sm:$0xff]
    %v1417 = vld [vmem:[%s564 + $0x18] sm:$0xff]
    %v1418 = vmul.f32 %v1036, %v1414
    %v1419 = vmul.f32 %v1035, %v1415
    %v1420 = vmul.f32 %v1034, %v1416
    %v1421 = vmul.f32 %v1037, %v1417
    %1422 = vst [vmem:[#allocation2 + $0x280] sm:$0xff] %v1418
    %1423 = vst [vmem:[#allocation2 + $0x288] sm:$0xff] %v1419
    %1424 = vst [vmem:[#allocation2 + $0x290] sm:$0xff] %v1420
    %1425 = vst [vmem:[#allocation2 + $0x298] sm:$0xff] %v1421
    %v1426 = vld [vmem:[%s577] sm:$0xff]
    %v1427 = vld [vmem:[%s577 + $0x8] sm:$0xff]
    %v1428 = vld [vmem:[%s577 + $0x10] sm:$0xff]
    %v1429 = vld [vmem:[%s577 + $0x18] sm:$0xff]
    %v1430 = vmul.f32 %v1060, %v1426
    %v1431 = vmul.f32 %v1059, %v1427
    %v1432 = vmul.f32 %v1058, %v1428
    %v1433 = vmul.f32 %v1061, %v1429
    %1434 = vst [vmem:[#allocation2 + $0x2a0] sm:$0xff] %v1430
    %1435 = vst [vmem:[#allocation2 + $0x2a8] sm:$0xff] %v1431
    %1436 = vst [vmem:[#allocation2 + $0x2b0] sm:$0xff] %v1432
    %1437 = vst [vmem:[#allocation2 + $0x2b8] sm:$0xff] %v1433
    %v1438 = vld [vmem:[%s590] sm:$0xff]
    %v1439 = vld [vmem:[%s590 + $0x8] sm:$0xff]
    %v1440 = vld [vmem:[%s590 + $0x10] sm:$0xff]
    %v1441 = vld [vmem:[%s590 + $0x18] sm:$0xff]
    %v1442 = vmul.f32 %v1084, %v1438
    %v1443 = vmul.f32 %v1083, %v1439
    %v1444 = vmul.f32 %v1082, %v1440
    %v1445 = vmul.f32 %v1085, %v1441
    %1446 = vst [vmem:[#allocation2 + $0x2c0] sm:$0xff] %v1442
    %1447 = vst [vmem:[#allocation2 + $0x2c8] sm:$0xff] %v1443
    %1448 = vst [vmem:[#allocation2 + $0x2d0] sm:$0xff] %v1444
    %1449 = vst [vmem:[#allocation2 + $0x2d8] sm:$0xff] %v1445
    %v1450 = vld [vmem:[%s603] sm:$0xff]
    %v1451 = vld [vmem:[%s603 + $0x8] sm:$0xff]
    %v1452 = vld [vmem:[%s603 + $0x10] sm:$0xff]
    %v1453 = vld [vmem:[%s603 + $0x18] sm:$0xff]
    %v1454 = vmul.f32 %v1108, %v1450
    %v1455 = vmul.f32 %v1107, %v1451
    %v1456 = vmul.f32 %v1106, %v1452
    %v1457 = vmul.f32 %v1109, %v1453
    %1458 = vst [vmem:[#allocation2 + $0x2e0] sm:$0xff] %v1454
    %1459 = vst [vmem:[#allocation2 + $0x2e8] sm:$0xff] %v1455
    %1460 = vst [vmem:[#allocation2 + $0x2f0] sm:$0xff] %v1456
    %1461 = vst [vmem:[#allocation2 + $0x2f8] sm:$0xff] %v1457
    %v1462 = vld [vmem:[%s616] sm:$0xff]
    %v1463 = vld [vmem:[%s616 + $0x8] sm:$0xff]
    %v1464 = vld [vmem:[%s616 + $0x10] sm:$0xff]
    %v1465 = vld [vmem:[%s616 + $0x18] sm:$0xff]
    %v1466 = vmul.f32 %v1132, %v1462
    %v1467 = vmul.f32 %v1131, %v1463
    %v1468 = vmul.f32 %v1130, %v1464
    %v1469 = vmul.f32 %v1133, %v1465
    %1470 = vst [vmem:[#allocation2 + $0x300] sm:$0xff] %v1466
    %1471 = vst [vmem:[#allocation2 + $0x308] sm:$0xff] %v1467
    %1472 = vst [vmem:[#allocation2 + $0x310] sm:$0xff] %v1468
    %1473 = vst [vmem:[#allocation2 + $0x318] sm:$0xff] %v1469
    %v1474 = vld [vmem:[%s629] sm:$0xff]
    %v1475 = vld [vmem:[%s629 + $0x8] sm:$0xff]
    %v1476 = vld [vmem:[%s629 + $0x10] sm:$0xff]
    %v1477 = vld [vmem:[%s629 + $0x18] sm:$0xff]
    %v1478 = vmul.f32 %v1156, %v1474
    %v1479 = vmul.f32 %v1155, %v1475
    %v1480 = vmul.f32 %v1154, %v1476
    %v1481 = vmul.f32 %v1157, %v1477
    %1482 = vst [vmem:[#allocation2 + $0x320] sm:$0xff] %v1478
    %1483 = vst [vmem:[#allocation2 + $0x328] sm:$0xff] %v1479
    %1484 = vst [vmem:[#allocation2 + $0x330] sm:$0xff] %v1480
    %1485 = vst [vmem:[#allocation2 + $0x338] sm:$0xff] %v1481
    %v1486 = vld [vmem:[%s642] sm:$0xff]
    %v1487 = vld [vmem:[%s642 + $0x8] sm:$0xff]
    %v1488 = vld [vmem:[%s642 + $0x10] sm:$0xff]
    %v1489 = vld [vmem:[%s642 + $0x18] sm:$0xff]
    %v1490 = vmul.f32 %v1180, %v1486
    %v1491 = vmul.f32 %v1179, %v1487
    %v1492 = vmul.f32 %v1178, %v1488
    %v1493 = vmul.f32 %v1181, %v1489
    %1494 = vst [vmem:[#allocation2 + $0x340] sm:$0xff] %v1490
    %1495 = vst [vmem:[#allocation2 + $0x348] sm:$0xff] %v1491
    %1496 = vst [vmem:[#allocation2 + $0x350] sm:$0xff] %v1492
    %1497 = vst [vmem:[#allocation2 + $0x358] sm:$0xff] %v1493
    %v1498 = vld [vmem:[#allocation8] sm:$0xff]
    %v1499 = vld [vmem:[#allocation8 + $0x8] sm:$0xff]
    %v1500 = vld [vmem:[#allocation2] sm:$0xff]
    %v1501 = vld [vmem:[#allocation2 + $0x8] sm:$0xff]
    %v1502 = vld [vmem:[#allocation2 + $0x10] sm:$0xff]
    %v1503 = vld [vmem:[#allocation2 + $0x18] sm:$0xff]
    %v1504 = vld [vmem:[#allocation2 + $0x20] sm:$0xff]
    %v1505 = vld [vmem:[#allocation2 + $0x28] sm:$0xff]
    %v1506 = vld [vmem:[#allocation2 + $0x30] sm:$0xff]
    %v1507 = vld [vmem:[#allocation2 + $0x38] sm:$0xff]
    %v1508 = vld [vmem:[#allocation2 + $0x40] sm:$0xff]
    %v1509 = vld [vmem:[#allocation2 + $0x48] sm:$0xff]
    %v1510 = vld [vmem:[#allocation2 + $0x50] sm:$0xff]
    %v1511 = vld [vmem:[#allocation2 + $0x58] sm:$0xff]
    %v1512 = vld [vmem:[#allocation2 + $0x60] sm:$0xff]
    %v1513 = vld [vmem:[#allocation2 + $0x68] sm:$0xff]
    %v1514 = vld [vmem:[#allocation2 + $0x70] sm:$0xff]
    %v1515 = vld [vmem:[#allocation2 + $0x78] sm:$0xff]
    %v1516 = vld [vmem:[#allocation2 + $0x80] sm:$0xff]
    %v1517 = vld [vmem:[#allocation2 + $0x88] sm:$0xff]
    %v1518 = vld [vmem:[#allocation2 + $0x90] sm:$0xff]
    %v1519 = vld [vmem:[#allocation2 + $0x98] sm:$0xff]
    %v1520 = vld [vmem:[#allocation2 + $0xa0] sm:$0xff]
    %v1521 = vld [vmem:[#allocation2 + $0xa8] sm:$0xff]
    %v1522 = vld [vmem:[#allocation2 + $0xb0] sm:$0xff]
    %v1523 = vld [vmem:[#allocation2 + $0xb8] sm:$0xff]
    %v1524 = vld [vmem:[#allocation2 + $0xc0] sm:$0xff]
    %v1525 = vld [vmem:[#allocation2 + $0xc8] sm:$0xff]
    %v1526 = vld [vmem:[#allocation2 + $0xd0] sm:$0xff]
    %v1527 = vld [vmem:[#allocation2 + $0xd8] sm:$0xff]
    %v1528 = vld [vmem:[#allocation2 + $0xe0] sm:$0xff]
    %v1529 = vld [vmem:[#allocation2 + $0xe8] sm:$0xff]
    %v1530 = vld [vmem:[#allocation2 + $0xf0] sm:$0xff]
    %v1531 = vld [vmem:[#allocation2 + $0xf8] sm:$0xff]
    %v1532 = vld [vmem:[#allocation2 + $0x100] sm:$0xff]
    %v1533 = vld [vmem:[#allocation2 + $0x108] sm:$0xff]
    %v1534 = vld [vmem:[#allocation2 + $0x110] sm:$0xff]
    %v1535 = vld [vmem:[#allocation2 + $0x118] sm:$0xff]
    %v1536 = vld [vmem:[#allocation2 + $0x120] sm:$0xff]
    %v1537 = vld [vmem:[#allocation2 + $0x128] sm:$0xff]
    %v1538 = vld [vmem:[#allocation2 + $0x130] sm:$0xff]
    %v1539 = vld [vmem:[#allocation2 + $0x138] sm:$0xff]
    %v1540 = vld [vmem:[#allocation2 + $0x140] sm:$0xff]
    %v1541 = vld [vmem:[#allocation2 + $0x148] sm:$0xff]
    %v1542 = vld [vmem:[#allocation2 + $0x150] sm:$0xff]
    %v1543 = vld [vmem:[#allocation2 + $0x158] sm:$0xff]
    %v1544 = vld [vmem:[#allocation2 + $0x160] sm:$0xff]
    %v1545 = vld [vmem:[#allocation2 + $0x168] sm:$0xff]
    %v1546 = vld [vmem:[#allocation2 + $0x170] sm:$0xff]
    %v1547 = vld [vmem:[#allocation2 + $0x178] sm:$0xff]
    %v1548 = vld [vmem:[#allocation2 + $0x180] sm:$0xff]
    %v1549 = vld [vmem:[#allocation2 + $0x188] sm:$0xff]
    %v1550 = vld [vmem:[#allocation2 + $0x190] sm:$0xff]
    %v1551 = vld [vmem:[#allocation2 + $0x198] sm:$0xff]
    %v1552 = vld [vmem:[#allocation2 + $0x1a0] sm:$0xff]
    %v1553 = vld [vmem:[#allocation2 + $0x1a8] sm:$0xff]
    %v1554 = vld [vmem:[#allocation2 + $0x1b0] sm:$0xff]
    %v1555 = vld [vmem:[#allocation2 + $0x1b8] sm:$0xff]
    %v1556 = vld [vmem:[#allocation2 + $0x1c0] sm:$0xff]
    %v1557 = vld [vmem:[#allocation2 + $0x1c8] sm:$0xff]
    %v1558 = vld [vmem:[#allocation2 + $0x1d0] sm:$0xff]
    %v1559 = vld [vmem:[#allocation2 + $0x1d8] sm:$0xff]
    %v1560 = vld [vmem:[#allocation2 + $0x1e0] sm:$0xff]
    %v1561 = vld [vmem:[#allocation2 + $0x1e8] sm:$0xff]
    %v1562 = vld [vmem:[#allocation2 + $0x1f0] sm:$0xff]
    %v1563 = vld [vmem:[#allocation2 + $0x1f8] sm:$0xff]
    %v1564 = vld [vmem:[#allocation2 + $0x200] sm:$0xff]
    %v1565 = vld [vmem:[#allocation2 + $0x208] sm:$0xff]
    %v1566 = vld [vmem:[#allocation2 + $0x210] sm:$0xff]
    %v1567 = vld [vmem:[#allocation2 + $0x218] sm:$0xff]
    %v1568 = vld [vmem:[#allocation2 + $0x220] sm:$0xff]
    %v1569 = vld [vmem:[#allocation2 + $0x228] sm:$0xff]
    %v1570 = vld [vmem:[#allocation2 + $0x230] sm:$0xff]
    %v1571 = vld [vmem:[#allocation2 + $0x238] sm:$0xff]
    %v1572 = vld [vmem:[#allocation2 + $0x240] sm:$0xff]
    %v1573 = vld [vmem:[#allocation2 + $0x248] sm:$0xff]
    %v1574 = vld [vmem:[#allocation2 + $0x250] sm:$0xff]
    %v1575 = vld [vmem:[#allocation2 + $0x258] sm:$0xff]
    %v1576 = vld [vmem:[#allocation2 + $0x260] sm:$0xff]
    %v1577 = vld [vmem:[#allocation2 + $0x268] sm:$0xff]
    %v1578 = vld [vmem:[#allocation2 + $0x270] sm:$0xff]
    %v1579 = vld [vmem:[#allocation2 + $0x278] sm:$0xff]
    %v1580 = vld [vmem:[#allocation2 + $0x280] sm:$0xff]
    %v1581 = vld [vmem:[#allocation2 + $0x288] sm:$0xff]
    %v1582 = vld [vmem:[#allocation2 + $0x290] sm:$0xff]
    %v1583 = vld [vmem:[#allocation2 + $0x298] sm:$0xff]
    %v1584 = vld [vmem:[#allocation2 + $0x2a0] sm:$0xff]
    %v1585 = vld [vmem:[#allocation2 + $0x2a8] sm:$0xff]
    %v1586 = vld [vmem:[#allocation2 + $0x2b0] sm:$0xff]
    %v1587 = vld [vmem:[#allocation2 + $0x2b8] sm:$0xff]
    %v1588 = vld [vmem:[#allocation2 + $0x2c0] sm:$0xff]
    %v1589 = vld [vmem:[#allocation2 + $0x2c8] sm:$0xff]
    %v1590 = vld [vmem:[#allocation2 + $0x2d0] sm:$0xff]
    %v1591 = vld [vmem:[#allocation2 + $0x2d8] sm:$0xff]
    %v1592 = vld [vmem:[#allocation2 + $0x2e0] sm:$0xff]
    %v1593 = vld [vmem:[#allocation2 + $0x2e8] sm:$0xff]
    %v1594 = vld [vmem:[#allocation2 + $0x2f0] sm:$0xff]
    %v1595 = vld [vmem:[#allocation2 + $0x2f8] sm:$0xff]
    %v1596 = vld [vmem:[#allocation2 + $0x300] sm:$0xff]
    %v1597 = vld [vmem:[#allocation2 + $0x308] sm:$0xff]
    %v1598 = vld [vmem:[#allocation2 + $0x310] sm:$0xff]
    %v1599 = vld [vmem:[#allocation2 + $0x318] sm:$0xff]
    %v1600 = vld [vmem:[#allocation2 + $0x320] sm:$0xff]
    %v1601 = vld [vmem:[#allocation2 + $0x328] sm:$0xff]
    %v1602 = vld [vmem:[#allocation2 + $0x330] sm:$0xff]
    %v1603 = vld [vmem:[#allocation2 + $0x338] sm:$0xff]
    %v1604 = vld [vmem:[#allocation2 + $0x340] sm:$0xff]
    %v1605 = vld [vmem:[#allocation2 + $0x348] sm:$0xff]
    %v1606 = vld [vmem:[#allocation2 + $0x350] sm:$0xff]
    %v1607 = vld [vmem:[#allocation2 + $0x358] sm:$0xff]
    %v1608 = vld [vmem:[#allocation2 + $0x360] sm:$0xff]
    %v1609 = vld [vmem:[#allocation2 + $0x368] sm:$0xff]
    %v1610 = vld [vmem:[#allocation2 + $0x370] sm:$0xff]
    %v1611 = vld [vmem:[#allocation2 + $0x378] sm:$0xff]
    %v1612 = vld [vmem:[#allocation2 + $0x380] sm:$0xff]
    %v1613 = vld [vmem:[#allocation2 + $0x388] sm:$0xff]
    %v1614 = vld [vmem:[#allocation2 + $0x390] sm:$0xff]
    %v1615 = vld [vmem:[#allocation2 + $0x398] sm:$0xff]
    %v1616 = vld [vmem:[#allocation2 + $0x3a0] sm:$0xff]
    %v1617 = vld [vmem:[#allocation2 + $0x3a8] sm:$0xff]
    %v1618 = vld [vmem:[#allocation2 + $0x3b0] sm:$0xff]
    %v1619 = vld [vmem:[#allocation2 + $0x3b8] sm:$0xff]
    %v1620 = vld [vmem:[#allocation2 + $0x3c0] sm:$0xff]
    %v1621 = vld [vmem:[#allocation2 + $0x3c8] sm:$0xff]
    %v1622 = vld [vmem:[#allocation2 + $0x3d0] sm:$0xff]
    %v1623 = vld [vmem:[#allocation2 + $0x3d8] sm:$0xff]
    %v1624 = vld [vmem:[#allocation2 + $0x3e0] sm:$0xff]
    %v1625 = vld [vmem:[#allocation2 + $0x3e8] sm:$0xff]
    %v1626 = vld [vmem:[#allocation2 + $0x3f0] sm:$0xff]
    %v1627 = vld [vmem:[#allocation2 + $0x3f8] sm:$0xff]
    %1628 = vmatprep.subr.mxu0 %v1561
    %1629 = vmatpush1.msra.mxu0 %v1560
    %1630 = vmatprep.subr.mxu0 %v1557
    %1631 = vmatpush1.msra.mxu0 %v1556
    %1632 = vmatprep.subr.mxu0 %v1553
    %1633 = vmatpush1.msra.mxu0 %v1552
    %1634 = vmatprep.subr.mxu0 %v1549
    %1635 = vmatpush1.msra.mxu0 %v1548
    %1636 = vmatprep.subr.mxu0 %v1545
    %1637 = vmatpush1.msra.mxu0 %v1544
    %1638 = vmatprep.subr.mxu0 %v1541
    %1639 = vmatpush1.msra.mxu0 %v1540
    %1640 = vmatprep.subr.mxu0 %v1537
    %1641 = vmatpush1.msra.mxu0 %v1536
    %1642 = vmatprep.subr.mxu0 %v1533
    %1643 = vmatpush1.msra.mxu0 %v1532
    %1644 = vmatprep.subr.mxu0 %v1529
    %1645 = vmatpush1.msra.mxu0 %v1528
    %1646 = vmatprep.subr.mxu0 %v1525
    %1647 = vmatpush1.msra.mxu0 %v1524
    %1648 = vmatprep.subr.mxu0 %v1521
    %1649 = vmatpush1.msra.mxu0 %v1520
    %1650 = vmatprep.subr.mxu0 %v1517
    %1651 = vmatpush1.msra.mxu0 %v1516
    %1652 = vmatprep.subr.mxu0 %v1513
    %1653 = vmatpush1.msra.mxu0 %v1512
    %1654 = vmatprep.subr.mxu0 %v1509
    %1655 = vmatpush1.msra.mxu0 %v1508
    %1656 = vmatprep.subr.mxu0 %v1505
    %1657 = vmatpush1.msra.mxu0 %v1504
    %1658 = vmatprep.subr.mxu0 %v1501
    %1659 = vmatpush1.msra.mxu0 %v1500
    %1660 = vmatprep.subr.mxu0 %v1625
    %1661 = vmatpush2.msra.mxu0 %v1624
    %1662 = vmatprep.subr.mxu0 %v1621
    %1663 = vmatpush2.msra.mxu0 %v1620
    %1664 = vmatprep.subr.mxu0 %v1617
    %1665 = vmatpush2.msra.mxu0 %v1616
    %1666 = vmatprep.subr.mxu0 %v1613
    %1667 = vmatpush2.msra.mxu0 %v1612
    %1668 = vmatprep.subr.mxu0 %v1609
    %1669 = vmatpush2.msra.mxu0 %v1608
    %1670 = vmatprep.subr.mxu0 %v1605
    %1671 = vmatpush2.msra.mxu0 %v1604
    %1672 = vmatprep.subr.mxu0 %v1601
    %1673 = vmatpush2.msra.mxu0 %v1600
    %1674 = vmatprep.subr.mxu0 %v1597
    %1675 = vmatpush2.msra.mxu0 %v1596
    %1676 = vmatprep.subr.mxu0 %v1593
    %1677 = vmatpush2.msra.mxu0 %v1592
    %1678 = vmatprep.subr.mxu0 %v1589
    %1679 = vmatpush2.msra.mxu0 %v1588
    %1680 = vmatprep.subr.mxu0 %v1585
    %1681 = vmatpush2.msra.mxu0 %v1584
    %1682 = vmatprep.subr.mxu0 %v1581
    %1683 = vmatpush2.msra.mxu0 %v1580
    %1684 = vmatprep.subr.mxu0 %v1577
    %1685 = vmatpush2.msra.mxu0 %v1576
    %1686 = vmatprep.subr.mxu0 %v1573
    %1687 = vmatpush2.msra.mxu0 %v1572
    %1688 = vmatprep.subr.mxu0 %v1569
    %1689 = vmatpush2.msra.mxu0 %v1568
    %1690 = vmatprep.subr.mxu0 %v1565
    %1691 = vmatpush2.msra.mxu0 %v1564
    %1692 = vmatprep.mubr.f32.mxu0 %v1499
    %1693 = vmatmul.mubr.f32.gmra.mxu0 %v1498
    %v1694 = vpop.f32.mrf.mxu0
    %v1695 = vadd.f32 0.0, %v1694
    %v1696 = vpop.f32.mrf.mxu0
    %v1697 = vadd.f32 0.0, %v1696
    %1698 = vdwg.mxu0
    %1699 = vmatprep.subr.mxu0 %v1563
    %1700 = vmatpush1.msra.mxu0 %v1562
    %1701 = vmatprep.subr.mxu0 %v1559
    %1702 = vmatpush1.msra.mxu0 %v1558
    %1703 = vmatprep.subr.mxu0 %v1555
    %1704 = vmatpush1.msra.mxu0 %v1554
    %1705 = vmatprep.subr.mxu0 %v1551
    %1706 = vmatpush1.msra.mxu0 %v1550
    %1707 = vmatprep.subr.mxu0 %v1547
    %1708 = vmatpush1.msra.mxu0 %v1546
    %1709 = vmatprep.subr.mxu0 %v1543
    %1710 = vmatpush1.msra.mxu0 %v1542
    %1711 = vmatprep.subr.mxu0 %v1539
    %1712 = vmatpush1.msra.mxu0 %v1538
    %1713 = vmatprep.subr.mxu0 %v1535
    %1714 = vmatpush1.msra.mxu0 %v1534
    %1715 = vmatprep.subr.mxu0 %v1531
    %1716 = vmatpush1.msra.mxu0 %v1530
    %1717 = vmatprep.subr.mxu0 %v1527
    %1718 = vmatpush1.msra.mxu0 %v1526
    %1719 = vmatprep.subr.mxu0 %v1523
    %1720 = vmatpush1.msra.mxu0 %v1522
    %1721 = vmatprep.subr.mxu0 %v1519
    %1722 = vmatpush1.msra.mxu0 %v1518
    %1723 = vmatprep.subr.mxu0 %v1515
    %1724 = vmatpush1.msra.mxu0 %v1514
    %1725 = vmatprep.subr.mxu0 %v1511
    %1726 = vmatpush1.msra.mxu0 %v1510
    %1727 = vmatprep.subr.mxu0 %v1507
    %1728 = vmatpush1.msra.mxu0 %v1506
    %1729 = vmatprep.subr.mxu0 %v1503
    %1730 = vmatpush1.msra.mxu0 %v1502
    %1731 = vmatprep.subr.mxu0 %v1627
    %1732 = vmatpush2.msra.mxu0 %v1626
    %1733 = vmatprep.subr.mxu0 %v1623
    %1734 = vmatpush2.msra.mxu0 %v1622
    %1735 = vmatprep.subr.mxu0 %v1619
    %1736 = vmatpush2.msra.mxu0 %v1618
    %1737 = vmatprep.subr.mxu0 %v1615
    %1738 = vmatpush2.msra.mxu0 %v1614
    %1739 = vmatprep.subr.mxu0 %v1611
    %1740 = vmatpush2.msra.mxu0 %v1610
    %1741 = vmatprep.subr.mxu0 %v1607
    %1742 = vmatpush2.msra.mxu0 %v1606
    %1743 = vmatprep.subr.mxu0 %v1603
    %1744 = vmatpush2.msra.mxu0 %v1602
    %1745 = vmatprep.subr.mxu0 %v1599
    %1746 = vmatpush2.msra.mxu0 %v1598
    %1747 = vmatprep.subr.mxu0 %v1595
    %1748 = vmatpush2.msra.mxu0 %v1594
    %1749 = vmatprep.subr.mxu0 %v1591
    %1750 = vmatpush2.msra.mxu0 %v1590
    %1751 = vmatprep.subr.mxu0 %v1587
    %1752 = vmatpush2.msra.mxu0 %v1586
    %1753 = vmatprep.subr.mxu0 %v1583
    %1754 = vmatpush2.msra.mxu0 %v1582
    %1755 = vmatprep.subr.mxu0 %v1579
    %1756 = vmatpush2.msra.mxu0 %v1578
    %1757 = vmatprep.subr.mxu0 %v1575
    %1758 = vmatpush2.msra.mxu0 %v1574
    %1759 = vmatprep.subr.mxu0 %v1571
    %1760 = vmatpush2.msra.mxu0 %v1570
    %1761 = vmatprep.subr.mxu0 %v1567
    %1762 = vmatpush2.msra.mxu0 %v1566
    %1763 = vmatprep.mubr.f32.mxu0 %v1499
    %1764 = vmatmul.mubr.f32.gmra.mxu0 %v1498
    %v1765 = vpop.f32.mrf.mxu0
    %v1766 = vadd.f32 0.0, %v1765
    %v1767 = vpop.f32.mrf.mxu0
    %v1768 = vadd.f32 0.0, %v1767
    %1769 = vdwg.mxu0
    %v1770 = vadd.f32 %v1695, %v1697
    %v1771 = vadd.f32 %v1770, %v1766
    %v1772 = vadd.f32 %v1771, %v1768
    %1773 = vadd.xlane.f32.xlu0 %v1772
    %v1774 = vpop.xlane.xlu0 %1773
    %v1775 = vmul.f32 %v1695, %v1695
    %v1776 = vmul.f32 %v1697, %v1697
    %v1777 = vmul.f32 %v1766, %v1766
    %v1778 = vmul.f32 %v1768, %v1768
    %v1779 = vadd.f32 %v1775, %v1776
    %v1780 = vadd.f32 %v1779, %v1777
    %v1781 = vadd.f32 %v1780, %v1778
    %1782 = vadd.xlane.f32.xlu0 %v1781
    %v1783 = vpop.xlane.xlu0 %1782
    %v1784 = vmul.f32 %v1774, 0.001953125
    %v1785 = vmul.f32 %v1783, 0.001953125
    %v1786 = vmul.f32 %v1784, %v1784
    %v1787 = vsub.f32 %v1785, %v1786
    %v1788 = vld [vmem:[%s6] sm:$0xff]
    %v1789 = vadd.f32 %v1787, 1e-05
    %v1790 = vrsqrt.pop %v1789
    %v1791 = vmul.f32 %v1788, %v1790
    %v1792 = vld [vmem:[%s7] sm:$0xff]
    %v1793 = vmul.f32 %v1784, %v1791
    %v1794 = vsub.f32 %v1792, %v1793
    %1796 = vset.pattern.permute.xlu0 0
    %1797 = vperm.xlu0 %1796, %v1791
    %v1798 = vpop.permute.xlu0 %1797
    %v1800 = vmul.f32 %v1695, %v1798
    %v1801 = vmul.f32 %v1697, %v1798
    %v1802 = vmul.f32 %v1766, %v1798
    %v1803 = vmul.f32 %v1768, %v1798
    %1805 = vset.pattern.permute.xlu0 0
    %1806 = vperm.xlu0 %1805, %v1794
    %v1807 = vpop.permute.xlu0 %1806
    %v1809 = vadd.f32 %v1800, %v1807
    %v1810 = vadd.f32 %v1801, %v1807
    %v1811 = vadd.f32 %v1802, %v1807
    %v1812 = vadd.f32 %v1803, %v1807
    %v1813 = vadd.f32 %v1809, %v67
    %v1814 = vadd.f32 %v1810, %v68
    %v1815 = vadd.f32 %v1811, %v69
    %v1816 = vadd.f32 %v1812, %v70
    %v1817 = vmul.f32 %v1813, 0.01
    %v1818 = vmul.f32 %v1814, 0.01
    %v1819 = vmul.f32 %v1815, 0.01
    %v1820 = vmul.f32 %v1816, 0.01
    %v1821 = vmax.f32 %v1813, %v1817
    %v1822 = vmax.f32 %v1814, %v1818
    %v1823 = vmax.f32 %v1815, %v1819
    %v1824 = vmax.f32 %v1816, %v1820
    %1825 = vst [vmem:[#allocation9] sm:$0xff] %v1821
    %1826 = vst [vmem:[#allocation9 + $0x8] sm:$0xff] %v1822
    %1827 = vst [vmem:[#allocation9 + $0x10] sm:$0xff] %v1823
    %1828 = vst [vmem:[#allocation9 + $0x18] sm:$0xff] %v1824
    // Predicated region
    $region46: #{tpu_custom_call.1} parent=1 // pred_check
      _
    $region47: #{tpu_custom_call.1} parent=1 // pred_check_branch
      %1830 = sbr.rel (0) target = $region49
    $region48: #{tpu_custom_call.1} parent=1 // pred_region
      %s1832 = ssub.s32 512, 512
      %1833 = vsyncadd [#allocation5], %s1832
      %s1835 = sshll.u32 [#allocation9], 4
      %s1836 = int_to_ptr.vmem [resolvable:$true] %s1835
      %1838 = dma.vmem_to_hbm [thread:$0]  %s1836, 512, %s8, [#allocation5]
    $region49: #{tpu_custom_call.1} parent=1 // pred_fallthru
      _
    // Predicated region
    $region50: #{tpu_custom_call.1} parent=1 // pred_check
      _
    $region51: #{tpu_custom_call.1} parent=1 // pred_check_branch
      %1840 = sbr.rel (0) target = $region53
    $region52: #{tpu_custom_call.1} parent=1 // pred_region
      %1841 = dma.done [#allocation5], 512
    $region53: #{tpu_custom_call.1} parent=1 // pred_fallthru
      _
    %1842 = vsyncpa [#allocation4], 1
    %1843 = vsyncpa [#allocation7], 1
    %1844 = vsyncpa [#allocation5], 1

</llo_original>
